<compile_context>
chip_gen: v7x
topology: tpu7x:2x2x1
jax: 0.10.0
libtpu: 0.0.40
codegen_flags: <defaults>
</compile_context>

<pallas_src>
import jax
import jax.numpy as jnp
import numpy as np
from jax import lax
from jax.experimental import pallas as pl
from jax.experimental.pallas import tpu as pltpu


def _round_up(x, m):
    return ((x + m - 1) // m) * m


def _layer_geometry(H, W, Cin, Cout, k, s, p, P):
    """Geometry of one ConvTranspose2d expressed as a stride-1 conv (flipped kernel)
    on a dilated / zero-padded input laid out flat with a shared row pitch P."""
    assert 0 <= p <= k - 1, "padding must satisfy 0 <= padding <= kernel_size-1"
    ph = k - 1 - p                               # pad of the equivalent stride-1 conv
    Hd, Wd = (H - 1) * s + 1, (W - 1) * s + 1    # input after zero-insertion
    Hp, Wp = Hd + 2 * ph, Wd + 2 * ph            # padded input
    Ho, Wo = Hp - k + 1, Wp - k + 1              # == (H-1)*s - 2p + k
    assert P >= Wp, "shared pitch must cover this layer's padded row"
    N = Ho * P                                   # flat (over-computed) output columns
    L = (Hp + 1) * P                             # flat padded-input length (+1 slack row)
    Cr = _round_up(Cin, 8)                       # contraction dim padded to sublane tile
    # Static OOB guard: the furthest tap read must stay inside this layer's buffer.
    assert (k - 1) * (P + 1) + N <= L, "tap window would read past the flat input buffer"
    return dict(k=k, s=s, p=p, ph=ph, H=H, W=W, Hd=Hd, Wd=Wd, Hp=Hp, Wp=Wp,
                Ho=Ho, Wo=Wo, N=N, L=L, P=P, Cin=Cin, Cout=Cout, Cr=Cr)


# ---------------------------------------------------------------------------
# Fused kernel: all layers of a run, one grid step per batch element.
# ---------------------------------------------------------------------------
def _make_fused_kernel(geoms):
    n = len(geoms)
    # Static guards for the activation -> next-input slab placement.
    for l in range(n - 1):
        g, gn = geoms[l], geoms[l + 1]
        D = gn["ph"] * g["P"] + gn["ph"]
        assert D + g["N"] <= gn["L"]
        assert gn["Cr"] >= g["Cout"]

    def kernel(*refs):
        xp0_ref = refs[0]                                   # (1, Cr0, L0) per-batch block
        w_refs = [refs[1 + 2 * l] for l in range(n)]        # (k*k, Cout, Cr)
        b_refs = [refs[2 + 2 * l] for l in range(n)]        # (Cout, 1)
        mask_refs = [refs[1 + 2 * n + l] for l in range(n - 1)]   # (1, N_l) {0,1}
        out_ref = refs[3 * n]                               # (1, Cout_last, N_last)
        xp_scr = list(refs[3 * n + 1:])                     # per-non-final-layer input

        # Layer 0 reads its per-tap flat windows directly from the input block.
        def l0_read(off, size):
            return xp0_ref[0, :, off:off + size]

        read = l0_read
        for l, g in enumerate(geoms):
            k, P, N, Cout = g["k"], g["P"], g["N"], g["Cout"]

            # Per-tap dot-accumulate: k*k tiny MXU GEMMs against shifted flat views of
            # the padded input; no im2col replication, accumulation stays in vregs.
            acc = None
            for kh in range(k):
                for kw in range(k):
                    part = jnp.dot(w_refs[l][kh * k + kw],
                                   read(kh * P + kw, N),
                                   preferred_element_type=jnp.float32)
                    acc = part if acc is None else acc + part
            y = jnp.maximum(acc + b_refs[l][...], 0.0)      # bias + ReLU (f32)

            if l == n - 1:
                out_ref[0] = y.astype(out_ref.dtype)
            else:
                # Repack into the next layer's zero-padded flat input:
                #  * multiply by a {0,1} column mask so the over-computed pitch columns
                #    (which land on the next layer's zero padding) are exactly zero,
                #  * ONE contiguous slab store at the (ph, ph) offset,
                #  * re-zero only the small untouched border regions every step (safe
                #    under megacore grid splitting, unlike an init-once pl.when).
                gn = geoms[l + 1]
                xpn = xp_scr[l]
                D = gn["ph"] * P + gn["ph"]
                Ln = gn["L"]
                y = y * mask_refs[l][...]
                if D > 0:
                    xpn[0:Cout, 0:D] = jnp.zeros((Cout, D), jnp.float32)
                xpn[0:Cout, D + N:Ln] = jnp.zeros((Cout, Ln - D - N), jnp.float32)
                if gn["Cr"] > Cout:
                    # Channel rows added only for sublane alignment must be finite zero
                    # (their weight columns are zero, but 0 * uninitialized-NaN = NaN).
                    xpn[Cout:gn["Cr"], :] = jnp.zeros((gn["Cr"] - Cout, Ln), jnp.float32)
                xpn[0:Cout, D:D + N] = y

                def read(off, size, _xpn=xpn):              # next layer reads this buffer
                    return _xpn[:, off:off + size]

    return kernel


# ---------------------------------------------------------------------------
# One pallas_call for a "run" of layers (layers[1:] must have stride 1).
# ---------------------------------------------------------------------------
def _fused_run_forward(x_nchw, layers):
    B, C0, H, W = x_nchw.shape

    # Unified flat row pitch for the whole run = widest padded input row of any layer.
    h, w = H, W
    wps = []
    for (_, _, k, s, p) in layers:
        ph = k - 1 - p
        hd, wd = (h - 1) * s + 1, (w - 1) * s + 1
        wps.append(wd + 2 * ph)
        h, w = hd + 2 * ph - k + 1, wd + 2 * ph - k + 1
    P = max(wps)

    geoms = []
    h, w = H, W
    for (wt, bias, k, s, p) in layers:
        g = _layer_geometry(h, w, wt.shape[0], wt.shape[1], k, s, p, P)
        geoms.append(g)
        h, w = g["Ho"], g["Wo"]
    for (_, _, _, s, _) in layers[1:]:
        assert s == 1, "fused follow-on layers must have stride 1"

    g0, gl = geoms[0], geoms[-1]

    # ---- The only pre-kernel glue op: channel pad to the sublane tile + dilation by
    # stride (interior padding) + conv padding + pitch/slack padding, all in ONE
    # lax.pad, then a free reshape to the flat per-batch layout (B, Cr0, L0).
    x32 = x_nchw.astype(jnp.float32)
    pad_cfg = [(0, 0, 0),
               (0, g0["Cr"] - C0, 0),
               (g0["ph"], g0["ph"] + 1, g0["s"] - 1),
               (g0["ph"], P - g0["ph"] - g0["Wd"], g0["s"] - 1)]
    xp0 = lax.pad(x32, jnp.array(0.0, jnp.float32), pad_cfg)
    xp0 = xp0.reshape(B, g0["Cr"], g0["L"])

    in_arrays = [xp0]
    in_specs = [pl.BlockSpec((1, g0["Cr"], g0["L"]), lambda b: (b, 0, 0))]

    for (wt, bias, k, s, p), g in zip(layers, geoms):
        # PyTorch ConvTranspose2d weight [Cin, Cout, KH, KW] -> flipped stride-1-conv
        # per-tap matrices (KH*KW, Cout, Cr), Cin zero-padded to the sublane tile.
        wf = jnp.flip(wt, axis=(2, 3)).transpose(2, 3, 1, 0)       # (KH, KW, Cout, Cin)
        wf = jnp.pad(wf, ((0, 0), (0, 0), (0, 0), (0, g["Cr"] - g["Cin"])))
        wtap = wf.reshape(k * k, g["Cout"], g["Cr"]).astype(jnp.float32)
        bcol = bias.reshape(g["Cout"], 1).astype(jnp.float32)
        in_arrays += [wtap, bcol]
        in_specs += [pl.BlockSpec(wtap.shape, lambda b: (0, 0, 0)),
                     pl.BlockSpec(bcol.shape, lambda b: (0, 0))]

    # {0,1} column masks (host-side constants): zero the over-computed pitch columns of
    # each non-final layer's activation before it is repacked (they land on the next
    # layer's zero padding).
    for g in geoms[:-1]:
        m = (np.arange(g["N"]) % P < g["Wo"]).astype(np.float32)[None, :]
        m = jnp.asarray(m)
        in_arrays.append(m)
        in_specs.append(pl.BlockSpec(m.shape, lambda b: (0, 0)))

    # One flat padded-input buffer per fused follow-on layer (intermediates never
    # leave VMEM).
    scratch_shapes = [pltpu.VMEM((g["Cr"], g["L"]), jnp.float32) for g in geoms[1:]]

    out_shape = (B, gl["Cout"], gl["N"])
    out = pl.pallas_call(
        _make_fused_kernel(geoms),
        out_shape=jax.ShapeDtypeStruct(out_shape, jnp.float32),
        grid_spec=pltpu.PrefetchScalarGridSpec(
            num_scalar_prefetch=0,
            grid=(B,),                                    # one grid step per batch elem
            in_specs=in_specs,
            out_specs=pl.BlockSpec((1, gl["Cout"], gl["N"]), lambda b: (b, 0, 0)),
            scratch_shapes=scratch_shapes,
        ),
        compiler_params=pltpu.CompilerParams(
            dimension_semantics=("parallel",)),           # 2nd TensorCore on v7x
    )(*in_arrays)

    # (B, Cout, Ho*P) -> NCHW by dropping the over-computed pitch columns (one slice;
    # batch stays leading in the kernel output, so no transpose is needed).
    return out.reshape(B, gl["Cout"], gl["Ho"], P)[:, :, :, :gl["Wo"]]


# ---------------------------------------------------------------------------
# Model wrapper mirroring RevConv2dModel (ReLU, use_maxpool=False, dropout=0)
# ---------------------------------------------------------------------------
class RevConv2dModelPallas:
    def __init__(self, in_channels, channels, kernel_sizes, strides,
                 paddings=None, key=None):
        if paddings is None:
            paddings = [0 for _ in range(len(channels))]
        assert len(channels) == len(kernel_sizes) == len(strides) == len(paddings)
        in_chs = [in_channels] + list(channels[:-1])
        if key is None:
            key = jax.random.PRNGKey(0)
        self.layers = []
        for cin, cout, k, s, p in zip(in_chs, channels, kernel_sizes, strides, paddings):
            key, kw_, kb = jax.random.split(key, 3)
            bound = 1.0 / np.sqrt(cin * k * k)
            # PyTorch ConvTranspose2d weight layout: [Cin, Cout, KH, KW]
            w = jax.random.uniform(kw_, (cin, cout, k, k),
                                   minval=-bound, maxval=bound, dtype=jnp.float32)
            b = jax.random.uniform(kb, (cout,),
                                   minval=-bound, maxval=bound, dtype=jnp.float32)
            self.layers.append((w, b, k, s, p))
        # TODO(synk): dropout>0 / use_maxpool=True branches of the reference module are
        # not instantiated in this configuration (module defaults used).

    def __call__(self, x_nchw):
        # Group consecutive layers into fused runs: a follow-on layer joins the current
        # pallas_call as long as its stride is 1 (only in-kernel zero-padding needed);
        # a later stride>1 layer needs wrapper-side input dilation and starts a new run.
        runs = [[self.layers[0]]]
        for layer in self.layers[1:]:
            if layer[3] == 1:
                runs[-1].append(layer)
            else:
                runs.append([layer])
        x = x_nchw
        for run in runs:
            x = _fused_run_forward(x, run)
        return x


# ---------------------------------------------------------------------------
# Pure-JAX reference (exact ConvTranspose2d + ReLU semantics) for validation
# ---------------------------------------------------------------------------
def _reference_forward(model, x_nchw):
    y = x_nchw
    for (w_t, bias, k, stride, padding) in model.layers:
        w_oihw = jnp.flip(w_t, axis=(2, 3)).transpose(1, 0, 2, 3)   # [Cout,Cin,KH,KW]
        y = jax.lax.conv_general_dilated(
            y, w_oihw,
            window_strides=(1, 1),
            padding=[(k - 1 - padding, k - 1 - padding),
                     (k - 1 - padding, k - 1 - padding)],
            lhs_dilation=(stride, stride),
            dimension_numbers=("NCHW", "OIHW", "NCHW"),
        )
        y = jnp.maximum(y + bias.reshape(1, -1, 1, 1), 0.0)
    return y


if __name__ == "__main__":
    key = jax.random.PRNGKey(0)
    k_x, k_params = jax.random.split(key)

    # Small deterministic example: B=2, Cin=4, H=W=8 (NCHW, PyTorch convention).
    x = jax.random.normal(k_x, (2, 4, 8, 8), dtype=jnp.float32)

    model = RevConv2dModelPallas(
        in_channels=4,
        channels=[8, 4],
        kernel_sizes=[3, 3],
        strides=[2, 1],
        paddings=None,
        key=k_params,
    )

    fwd = jax.jit(lambda inp: model(inp))
    out = jax.block_until_ready(fwd(x))
    ref = jax.block_until_ready(_reference_forward(model, x))

    np.testing.assert_allclose(np.asarray(out), np.asarray(ref), rtol=1e-3, atol=1e-4)
    assert out.shape == (2, 4, 19, 19), out.shape   # (8-1)*2+3=17, then (17-1)*1+3=19

    print("KERNEL_OK")
</pallas_src>

<mosaic_0001>
module attributes {stable_mosaic.version = 11 : i64} {
  func.func @kernel(%arg0: i32, %arg1: memref<1x8x420xf32, #tpu.memory_space<vmem>>, %arg2: memref<9x8x8xf32, #tpu.memory_space<vmem>>, %arg3: memref<8x1xf32, #tpu.memory_space<vmem>>, %arg4: memref<9x4x8xf32, #tpu.memory_space<vmem>>, %arg5: memref<4x1xf32, #tpu.memory_space<vmem>>, %arg6: memref<1x357xf32, #tpu.memory_space<vmem>>, %arg7: memref<1x4x399xf32, #tpu.memory_space<vmem>>, %arg8: memref<8x462xf32, #tpu.memory_space<vmem>>) attributes {dimension_semantics = [#tpu.dimension_semantics<parallel>], iteration_bounds = array<i64: 2>, scalar_prefetch = 0 : i64, scratch_operands = 1 : i64, tpu.core_type = #tpu.core_type<tc>, window_params = [{transform_indices = @transform_0, window_bounds = array<i64: 1, 8, 420>}, {pipeline_mode = #tpu.pipeline_mode<synchronous>, transform_indices = @transform_1, window_bounds = array<i64: 9, 8, 8>}, {pipeline_mode = #tpu.pipeline_mode<synchronous>, transform_indices = @transform_2, window_bounds = array<i64: 8, 1>}, {pipeline_mode = #tpu.pipeline_mode<synchronous>, transform_indices = @transform_3, window_bounds = array<i64: 9, 4, 8>}, {pipeline_mode = #tpu.pipeline_mode<synchronous>, transform_indices = @transform_4, window_bounds = array<i64: 4, 1>}, {pipeline_mode = #tpu.pipeline_mode<synchronous>, transform_indices = @transform_5, window_bounds = array<i64: 1, 357>}, {transform_indices = @transform_6, window_bounds = array<i64: 1, 4, 399>}]} {
    %c0 = arith.constant 0 : index
    %c0_0 = arith.constant 0 : index
    %c0_1 = arith.constant 0 : index
    %0 = vector.load %arg2[%c0, %c0_0, %c0_1] : memref<9x8x8xf32, #tpu.memory_space<vmem>>, vector<1x8x8xf32>
    %1 = vector.shape_cast %0 : vector<1x8x8xf32> to vector<8x8xf32>
    %c0_2 = arith.constant 0 : index
    %c0_3 = arith.constant 0 : index
    %c0_4 = arith.constant 0 : index
    %2 = vector.load %arg1[%c0_2, %c0_3, %c0_4] : memref<1x8x420xf32, #tpu.memory_space<vmem>>, vector<1x8x357xf32>
    %3 = vector.shape_cast %2 : vector<1x8x357xf32> to vector<8x357xf32>
    %cst = arith.constant dense<0.000000e+00> : vector<8x357xf32>
    %4 = tpu.matmul %1, %3, %cst {dimension_numbers = #tpu.dot_dimension_numbers<[1], [0], [0], [1], [0, 0, 1, 1], [], []>} : vector<8x8xf32>, vector<8x357xf32>, vector<8x357xf32> -> vector<8x357xf32>
    %c1 = arith.constant 1 : index
    %c0_5 = arith.constant 0 : index
    %c0_6 = arith.constant 0 : index
    %5 = vector.load %arg2[%c1, %c0_5, %c0_6] : memref<9x8x8xf32, #tpu.memory_space<vmem>>, vector<1x8x8xf32>
    %6 = vector.shape_cast %5 : vector<1x8x8xf32> to vector<8x8xf32>
    %c0_7 = arith.constant 0 : index
    %c0_8 = arith.constant 0 : index
    %c1_9 = arith.constant 1 : index
    %7 = vector.load %arg1[%c0_7, %c0_8, %c1_9] : memref<1x8x420xf32, #tpu.memory_space<vmem>>, vector<1x8x357xf32>
    %8 = vector.shape_cast %7 : vector<1x8x357xf32> to vector<8x357xf32>
    %cst_10 = arith.constant dense<0.000000e+00> : vector<8x357xf32>
    %9 = tpu.matmul %6, %8, %cst_10 {dimension_numbers = #tpu.dot_dimension_numbers<[1], [0], [0], [1], [0, 0, 1, 1], [], []>} : vector<8x8xf32>, vector<8x357xf32>, vector<8x357xf32> -> vector<8x357xf32>
    %10 = arith.addf %4, %9 : vector<8x357xf32>
    %c2 = arith.constant 2 : index
    %c0_11 = arith.constant 0 : index
    %c0_12 = arith.constant 0 : index
    %11 = vector.load %arg2[%c2, %c0_11, %c0_12] : memref<9x8x8xf32, #tpu.memory_space<vmem>>, vector<1x8x8xf32>
    %12 = vector.shape_cast %11 : vector<1x8x8xf32> to vector<8x8xf32>
    %c0_13 = arith.constant 0 : index
    %c0_14 = arith.constant 0 : index
    %c2_15 = arith.constant 2 : index
    %13 = vector.load %arg1[%c0_13, %c0_14, %c2_15] : memref<1x8x420xf32, #tpu.memory_space<vmem>>, vector<1x8x357xf32>
    %14 = vector.shape_cast %13 : vector<1x8x357xf32> to vector<8x357xf32>
    %cst_16 = arith.constant dense<0.000000e+00> : vector<8x357xf32>
    %15 = tpu.matmul %12, %14, %cst_16 {dimension_numbers = #tpu.dot_dimension_numbers<[1], [0], [0], [1], [0, 0, 1, 1], [], []>} : vector<8x8xf32>, vector<8x357xf32>, vector<8x357xf32> -> vector<8x357xf32>
    %16 = arith.addf %10, %15 : vector<8x357xf32>
    %c3 = arith.constant 3 : index
    %c0_17 = arith.constant 0 : index
    %c0_18 = arith.constant 0 : index
    %17 = vector.load %arg2[%c3, %c0_17, %c0_18] : memref<9x8x8xf32, #tpu.memory_space<vmem>>, vector<1x8x8xf32>
    %18 = vector.shape_cast %17 : vector<1x8x8xf32> to vector<8x8xf32>
    %c0_19 = arith.constant 0 : index
    %c0_20 = arith.constant 0 : index
    %c21 = arith.constant 21 : index
    %19 = vector.load %arg1[%c0_19, %c0_20, %c21] : memref<1x8x420xf32, #tpu.memory_space<vmem>>, vector<1x8x357xf32>
    %20 = vector.shape_cast %19 : vector<1x8x357xf32> to vector<8x357xf32>
    %cst_21 = arith.constant dense<0.000000e+00> : vector<8x357xf32>
    %21 = tpu.matmul %18, %20, %cst_21 {dimension_numbers = #tpu.dot_dimension_numbers<[1], [0], [0], [1], [0, 0, 1, 1], [], []>} : vector<8x8xf32>, vector<8x357xf32>, vector<8x357xf32> -> vector<8x357xf32>
    %22 = arith.addf %16, %21 : vector<8x357xf32>
    %c4 = arith.constant 4 : index
    %c0_22 = arith.constant 0 : index
    %c0_23 = arith.constant 0 : index
    %23 = vector.load %arg2[%c4, %c0_22, %c0_23] : memref<9x8x8xf32, #tpu.memory_space<vmem>>, vector<1x8x8xf32>
    %24 = vector.shape_cast %23 : vector<1x8x8xf32> to vector<8x8xf32>
    %c0_24 = arith.constant 0 : index
    %c0_25 = arith.constant 0 : index
    %c22 = arith.constant 22 : index
    %25 = vector.load %arg1[%c0_24, %c0_25, %c22] : memref<1x8x420xf32, #tpu.memory_space<vmem>>, vector<1x8x357xf32>
    %26 = vector.shape_cast %25 : vector<1x8x357xf32> to vector<8x357xf32>
    %cst_26 = arith.constant dense<0.000000e+00> : vector<8x357xf32>
    %27 = tpu.matmul %24, %26, %cst_26 {dimension_numbers = #tpu.dot_dimension_numbers<[1], [0], [0], [1], [0, 0, 1, 1], [], []>} : vector<8x8xf32>, vector<8x357xf32>, vector<8x357xf32> -> vector<8x357xf32>
    %28 = arith.addf %22, %27 : vector<8x357xf32>
    %c5 = arith.constant 5 : index
    %c0_27 = arith.constant 0 : index
    %c0_28 = arith.constant 0 : index
    %29 = vector.load %arg2[%c5, %c0_27, %c0_28] : memref<9x8x8xf32, #tpu.memory_space<vmem>>, vector<1x8x8xf32>
    %30 = vector.shape_cast %29 : vector<1x8x8xf32> to vector<8x8xf32>
    %c0_29 = arith.constant 0 : index
    %c0_30 = arith.constant 0 : index
    %c23 = arith.constant 23 : index
    %31 = vector.load %arg1[%c0_29, %c0_30, %c23] : memref<1x8x420xf32, #tpu.memory_space<vmem>>, vector<1x8x357xf32>
    %32 = vector.shape_cast %31 : vector<1x8x357xf32> to vector<8x357xf32>
    %cst_31 = arith.constant dense<0.000000e+00> : vector<8x357xf32>
    %33 = tpu.matmul %30, %32, %cst_31 {dimension_numbers = #tpu.dot_dimension_numbers<[1], [0], [0], [1], [0, 0, 1, 1], [], []>} : vector<8x8xf32>, vector<8x357xf32>, vector<8x357xf32> -> vector<8x357xf32>
    %34 = arith.addf %28, %33 : vector<8x357xf32>
    %c6 = arith.constant 6 : index
    %c0_32 = arith.constant 0 : index
    %c0_33 = arith.constant 0 : index
    %35 = vector.load %arg2[%c6, %c0_32, %c0_33] : memref<9x8x8xf32, #tpu.memory_space<vmem>>, vector<1x8x8xf32>
    %36 = vector.shape_cast %35 : vector<1x8x8xf32> to vector<8x8xf32>
    %c0_34 = arith.constant 0 : index
    %c0_35 = arith.constant 0 : index
    %c42 = arith.constant 42 : index
    %37 = vector.load %arg1[%c0_34, %c0_35, %c42] : memref<1x8x420xf32, #tpu.memory_space<vmem>>, vector<1x8x357xf32>
    %38 = vector.shape_cast %37 : vector<1x8x357xf32> to vector<8x357xf32>
    %cst_36 = arith.constant dense<0.000000e+00> : vector<8x357xf32>
    %39 = tpu.matmul %36, %38, %cst_36 {dimension_numbers = #tpu.dot_dimension_numbers<[1], [0], [0], [1], [0, 0, 1, 1], [], []>} : vector<8x8xf32>, vector<8x357xf32>, vector<8x357xf32> -> vector<8x357xf32>
    %40 = arith.addf %34, %39 : vector<8x357xf32>
    %c7 = arith.constant 7 : index
    %c0_37 = arith.constant 0 : index
    %c0_38 = arith.constant 0 : index
    %41 = vector.load %arg2[%c7, %c0_37, %c0_38] : memref<9x8x8xf32, #tpu.memory_space<vmem>>, vector<1x8x8xf32>
    %42 = vector.shape_cast %41 : vector<1x8x8xf32> to vector<8x8xf32>
    %c0_39 = arith.constant 0 : index
    %c0_40 = arith.constant 0 : index
    %c43 = arith.constant 43 : index
    %43 = vector.load %arg1[%c0_39, %c0_40, %c43] : memref<1x8x420xf32, #tpu.memory_space<vmem>>, vector<1x8x357xf32>
    %44 = vector.shape_cast %43 : vector<1x8x357xf32> to vector<8x357xf32>
    %cst_41 = arith.constant dense<0.000000e+00> : vector<8x357xf32>
    %45 = tpu.matmul %42, %44, %cst_41 {dimension_numbers = #tpu.dot_dimension_numbers<[1], [0], [0], [1], [0, 0, 1, 1], [], []>} : vector<8x8xf32>, vector<8x357xf32>, vector<8x357xf32> -> vector<8x357xf32>
    %46 = arith.addf %40, %45 : vector<8x357xf32>
    %c8 = arith.constant 8 : index
    %c0_42 = arith.constant 0 : index
    %c0_43 = arith.constant 0 : index
    %47 = vector.load %arg2[%c8, %c0_42, %c0_43] : memref<9x8x8xf32, #tpu.memory_space<vmem>>, vector<1x8x8xf32>
    %48 = vector.shape_cast %47 : vector<1x8x8xf32> to vector<8x8xf32>
    %c0_44 = arith.constant 0 : index
    %c0_45 = arith.constant 0 : index
    %c44 = arith.constant 44 : index
    %49 = vector.load %arg1[%c0_44, %c0_45, %c44] : memref<1x8x420xf32, #tpu.memory_space<vmem>>, vector<1x8x357xf32>
    %50 = vector.shape_cast %49 : vector<1x8x357xf32> to vector<8x357xf32>
    %cst_46 = arith.constant dense<0.000000e+00> : vector<8x357xf32>
    %51 = tpu.matmul %48, %50, %cst_46 {dimension_numbers = #tpu.dot_dimension_numbers<[1], [0], [0], [1], [0, 0, 1, 1], [], []>} : vector<8x8xf32>, vector<8x357xf32>, vector<8x357xf32> -> vector<8x357xf32>
    %52 = arith.addf %46, %51 : vector<8x357xf32>
    %c0_47 = arith.constant 0 : index
    %c0_48 = arith.constant 0 : index
    %53 = vector.load %arg3[%c0_47, %c0_48] : memref<8x1xf32, #tpu.memory_space<vmem>>, vector<8x1xf32>
    %54 = vector.broadcast %53 : vector<8x1xf32> to vector<8x357xf32>
    %55 = arith.addf %52, %54 : vector<8x357xf32>
    %cst_49 = arith.constant 0.000000e+00 : f32
    %56 = vector.broadcast %cst_49 : f32 to vector<8x357xf32>
    %57 = arith.maximumf %55, %56 : vector<8x357xf32>
    %c0_50 = arith.constant 0 : index
    %c0_51 = arith.constant 0 : index
    %58 = vector.load %arg6[%c0_50, %c0_51] : memref<1x357xf32, #tpu.memory_space<vmem>>, vector<1x357xf32>
    %59 = vector.broadcast %58 : vector<1x357xf32> to vector<8x357xf32>
    %60 = arith.mulf %57, %59 : vector<8x357xf32>
    %cst_52 = arith.constant 0.000000e+00 : f32
    %61 = vector.broadcast %cst_52 : f32 to vector<8x44xf32>
    %c0_53 = arith.constant 0 : index
    %c0_54 = arith.constant 0 : index
    %62 = vector.load %arg8[%c0_53, %c0_54] : memref<8x462xf32, #tpu.memory_space<vmem>>, vector<8x44xf32>
    tpu.vector_store %arg8[%c0_53, %c0_54], %61 {strides = array<i32>} : memref<8x462xf32, #tpu.memory_space<vmem>>, vector<8x44xf32>,
    %cst_55 = arith.constant 0.000000e+00 : f32
    %63 = vector.broadcast %cst_55 : f32 to vector<8x61xf32>
    %c0_56 = arith.constant 0 : index
    %c401 = arith.constant 401 : index
    %64 = vector.load %arg8[%c0_56, %c401] : memref<8x462xf32, #tpu.memory_space<vmem>>, vector<8x61xf32>
    tpu.vector_store %arg8[%c0_56, %c401], %63 {strides = array<i32>} : memref<8x462xf32, #tpu.memory_space<vmem>>, vector<8x61xf32>,
    %c0_57 = arith.constant 0 : index
    %c44_58 = arith.constant 44 : index
    %65 = vector.load %arg8[%c0_57, %c44_58] : memref<8x462xf32, #tpu.memory_space<vmem>>, vector<8x357xf32>
    tpu.vector_store %arg8[%c0_57, %c44_58], %60 {strides = array<i32>} : memref<8x462xf32, #tpu.memory_space<vmem>>, vector<8x357xf32>,
    %c0_59 = arith.constant 0 : index
    %c0_60 = arith.constant 0 : index
    %c0_61 = arith.constant 0 : index
    %66 = vector.load %arg4[%c0_59, %c0_60, %c0_61] : memref<9x4x8xf32, #tpu.memory_space<vmem>>, vector<1x4x8xf32>
    %67 = vector.shape_cast %66 : vector<1x4x8xf32> to vector<4x8xf32>
    %c0_62 = arith.constant 0 : index
    %c0_63 = arith.constant 0 : index
    %68 = vector.load %arg8[%c0_62, %c0_63] : memref<8x462xf32, #tpu.memory_space<vmem>>, vector<8x399xf32>
    %cst_64 = arith.constant dense<0.000000e+00> : vector<4x399xf32>
    %69 = tpu.matmul %67, %68, %cst_64 {dimension_numbers = #tpu.dot_dimension_numbers<[1], [0], [0], [1], [0, 0, 1, 1], [], []>} : vector<4x8xf32>, vector<8x399xf32>, vector<4x399xf32> -> vector<4x399xf32>
    %c1_65 = arith.constant 1 : index
    %c0_66 = arith.constant 0 : index
    %c0_67 = arith.constant 0 : index
    %70 = vector.load %arg4[%c1_65, %c0_66, %c0_67] : memref<9x4x8xf32, #tpu.memory_space<vmem>>, vector<1x4x8xf32>
    %71 = vector.shape_cast %70 : vector<1x4x8xf32> to vector<4x8xf32>
    %c0_68 = arith.constant 0 : index
    %c1_69 = arith.constant 1 : index
    %72 = vector.load %arg8[%c0_68, %c1_69] : memref<8x462xf32, #tpu.memory_space<vmem>>, vector<8x399xf32>
    %cst_70 = arith.constant dense<0.000000e+00> : vector<4x399xf32>
    %73 = tpu.matmul %71, %72, %cst_70 {dimension_numbers = #tpu.dot_dimension_numbers<[1], [0], [0], [1], [0, 0, 1, 1], [], []>} : vector<4x8xf32>, vector<8x399xf32>, vector<4x399xf32> -> vector<4x399xf32>
    %74 = arith.addf %69, %73 : vector<4x399xf32>
    %c2_71 = arith.constant 2 : index
    %c0_72 = arith.constant 0 : index
    %c0_73 = arith.constant 0 : index
    %75 = vector.load %arg4[%c2_71, %c0_72, %c0_73] : memref<9x4x8xf32, #tpu.memory_space<vmem>>, vector<1x4x8xf32>
    %76 = vector.shape_cast %75 : vector<1x4x8xf32> to vector<4x8xf32>
    %c0_74 = arith.constant 0 : index
    %c2_75 = arith.constant 2 : index
    %77 = vector.load %arg8[%c0_74, %c2_75] : memref<8x462xf32, #tpu.memory_space<vmem>>, vector<8x399xf32>
    %cst_76 = arith.constant dense<0.000000e+00> : vector<4x399xf32>
    %78 = tpu.matmul %76, %77, %cst_76 {dimension_numbers = #tpu.dot_dimension_numbers<[1], [0], [0], [1], [0, 0, 1, 1], [], []>} : vector<4x8xf32>, vector<8x399xf32>, vector<4x399xf32> -> vector<4x399xf32>
    %79 = arith.addf %74, %78 : vector<4x399xf32>
    %c3_77 = arith.constant 3 : index
    %c0_78 = arith.constant 0 : index
    %c0_79 = arith.constant 0 : index
    %80 = vector.load %arg4[%c3_77, %c0_78, %c0_79] : memref<9x4x8xf32, #tpu.memory_space<vmem>>, vector<1x4x8xf32>
    %81 = vector.shape_cast %80 : vector<1x4x8xf32> to vector<4x8xf32>
    %c0_80 = arith.constant 0 : index
    %c21_81 = arith.constant 21 : index
    %82 = vector.load %arg8[%c0_80, %c21_81] : memref<8x462xf32, #tpu.memory_space<vmem>>, vector<8x399xf32>
    %cst_82 = arith.constant dense<0.000000e+00> : vector<4x399xf32>
    %83 = tpu.matmul %81, %82, %cst_82 {dimension_numbers = #tpu.dot_dimension_numbers<[1], [0], [0], [1], [0, 0, 1, 1], [], []>} : vector<4x8xf32>, vector<8x399xf32>, vector<4x399xf32> -> vector<4x399xf32>
    %84 = arith.addf %79, %83 : vector<4x399xf32>
    %c4_83 = arith.constant 4 : index
    %c0_84 = arith.constant 0 : index
    %c0_85 = arith.constant 0 : index
    %85 = vector.load %arg4[%c4_83, %c0_84, %c0_85] : memref<9x4x8xf32, #tpu.memory_space<vmem>>, vector<1x4x8xf32>
    %86 = vector.shape_cast %85 : vector<1x4x8xf32> to vector<4x8xf32>
    %c0_86 = arith.constant 0 : index
    %c22_87 = arith.constant 22 : index
    %87 = vector.load %arg8[%c0_86, %c22_87] : memref<8x462xf32, #tpu.memory_space<vmem>>, vector<8x399xf32>
    %cst_88 = arith.constant dense<0.000000e+00> : vector<4x399xf32>
    %88 = tpu.matmul %86, %87, %cst_88 {dimension_numbers = #tpu.dot_dimension_numbers<[1], [0], [0], [1], [0, 0, 1, 1], [], []>} : vector<4x8xf32>, vector<8x399xf32>, vector<4x399xf32> -> vector<4x399xf32>
    %89 = arith.addf %84, %88 : vector<4x399xf32>
    %c5_89 = arith.constant 5 : index
    %c0_90 = arith.constant 0 : index
    %c0_91 = arith.constant 0 : index
    %90 = vector.load %arg4[%c5_89, %c0_90, %c0_91] : memref<9x4x8xf32, #tpu.memory_space<vmem>>, vector<1x4x8xf32>
    %91 = vector.shape_cast %90 : vector<1x4x8xf32> to vector<4x8xf32>
    %c0_92 = arith.constant 0 : index
    %c23_93 = arith.constant 23 : index
    %92 = vector.load %arg8[%c0_92, %c23_93] : memref<8x462xf32, #tpu.memory_space<vmem>>, vector<8x399xf32>
    %cst_94 = arith.constant dense<0.000000e+00> : vector<4x399xf32>
    %93 = tpu.matmul %91, %92, %cst_94 {dimension_numbers = #tpu.dot_dimension_numbers<[1], [0], [0], [1], [0, 0, 1, 1], [], []>} : vector<4x8xf32>, vector<8x399xf32>, vector<4x399xf32> -> vector<4x399xf32>
    %94 = arith.addf %89, %93 : vector<4x399xf32>
    %c6_95 = arith.constant 6 : index
    %c0_96 = arith.constant 0 : index
    %c0_97 = arith.constant 0 : index
    %95 = vector.load %arg4[%c6_95, %c0_96, %c0_97] : memref<9x4x8xf32, #tpu.memory_space<vmem>>, vector<1x4x8xf32>
    %96 = vector.shape_cast %95 : vector<1x4x8xf32> to vector<4x8xf32>
    %c0_98 = arith.constant 0 : index
    %c42_99 = arith.constant 42 : index
    %97 = vector.load %arg8[%c0_98, %c42_99] : memref<8x462xf32, #tpu.memory_space<vmem>>, vector<8x399xf32>
    %cst_100 = arith.constant dense<0.000000e+00> : vector<4x399xf32>
    %98 = tpu.matmul %96, %97, %cst_100 {dimension_numbers = #tpu.dot_dimension_numbers<[1], [0], [0], [1], [0, 0, 1, 1], [], []>} : vector<4x8xf32>, vector<8x399xf32>, vector<4x399xf32> -> vector<4x399xf32>
    %99 = arith.addf %94, %98 : vector<4x399xf32>
    %c7_101 = arith.constant 7 : index
    %c0_102 = arith.constant 0 : index
    %c0_103 = arith.constant 0 : index
    %100 = vector.load %arg4[%c7_101, %c0_102, %c0_103] : memref<9x4x8xf32, #tpu.memory_space<vmem>>, vector<1x4x8xf32>
    %101 = vector.shape_cast %100 : vector<1x4x8xf32> to vector<4x8xf32>
    %c0_104 = arith.constant 0 : index
    %c43_105 = arith.constant 43 : index
    %102 = vector.load %arg8[%c0_104, %c43_105] : memref<8x462xf32, #tpu.memory_space<vmem>>, vector<8x399xf32>
    %cst_106 = arith.constant dense<0.000000e+00> : vector<4x399xf32>
    %103 = tpu.matmul %101, %102, %cst_106 {dimension_numbers = #tpu.dot_dimension_numbers<[1], [0], [0], [1], [0, 0, 1, 1], [], []>} : vector<4x8xf32>, vector<8x399xf32>, vector<4x399xf32> -> vector<4x399xf32>
    %104 = arith.addf %99, %103 : vector<4x399xf32>
    %c8_107 = arith.constant 8 : index
    %c0_108 = arith.constant 0 : index
    %c0_109 = arith.constant 0 : index
    %105 = vector.load %arg4[%c8_107, %c0_108, %c0_109] : memref<9x4x8xf32, #tpu.memory_space<vmem>>, vector<1x4x8xf32>
    %106 = vector.shape_cast %105 : vector<1x4x8xf32> to vector<4x8xf32>
    %c0_110 = arith.constant 0 : index
    %c44_111 = arith.constant 44 : index
    %107 = vector.load %arg8[%c0_110, %c44_111] : memref<8x462xf32, #tpu.memory_space<vmem>>, vector<8x399xf32>
    %cst_112 = arith.constant dense<0.000000e+00> : vector<4x399xf32>
    %108 = tpu.matmul %106, %107, %cst_112 {dimension_numbers = #tpu.dot_dimension_numbers<[1], [0], [0], [1], [0, 0, 1, 1], [], []>} : vector<4x8xf32>, vector<8x399xf32>, vector<4x399xf32> -> vector<4x399xf32>
    %109 = arith.addf %104, %108 : vector<4x399xf32>
    %c0_113 = arith.constant 0 : index
    %c0_114 = arith.constant 0 : index
    %110 = vector.load %arg5[%c0_113, %c0_114] : memref<4x1xf32, #tpu.memory_space<vmem>>, vector<4x1xf32>
    %111 = vector.broadcast %110 : vector<4x1xf32> to vector<4x399xf32>
    %112 = arith.addf %109, %111 : vector<4x399xf32>
    %cst_115 = arith.constant 0.000000e+00 : f32
    %113 = vector.broadcast %cst_115 : f32 to vector<4x399xf32>
    %114 = arith.maximumf %112, %113 : vector<4x399xf32>
    %c0_116 = arith.constant 0 : index
    %c0_117 = arith.constant 0 : index
    %c0_118 = arith.constant 0 : index
    %115 = vector.load %arg7[%c0_116, %c0_117, %c0_118] : memref<1x4x399xf32, #tpu.memory_space<vmem>>, vector<1x4x399xf32>
    %116 = vector.shape_cast %115 : vector<1x4x399xf32> to vector<4x399xf32>
    %117 = vector.shape_cast %114 : vector<4x399xf32> to vector<1x4x399xf32>
    tpu.vector_store %arg7[%c0_116, %c0_117, %c0_118], %117 {strides = array<i32>} : memref<1x4x399xf32, #tpu.memory_space<vmem>>, vector<1x4x399xf32>,
    return
  }
  func.func @transform_0(%arg0: i32) -> (i32, i32, i32) {
    %c0_i32 = arith.constant 0 : i32
    %c0_i32_0 = arith.constant 0 : i32
    %c0_i32_1 = arith.constant 0 : i32
    return %arg0, %c0_i32, %c0_i32_0 : i32, i32, i32
  }
  func.func @transform_1(%arg0: i32) -> (i32, i32, i32) {
    %c0_i32 = arith.constant 0 : i32
    %c0_i32_0 = arith.constant 0 : i32
    %c0_i32_1 = arith.constant 0 : i32
    %c0_i32_2 = arith.constant 0 : i32
    return %c0_i32, %c0_i32_0, %c0_i32_1 : i32, i32, i32
  }
  func.func @transform_2(%arg0: i32) -> (i32, i32) {
    %c0_i32 = arith.constant 0 : i32
    %c0_i32_0 = arith.constant 0 : i32
    %c0_i32_1 = arith.constant 0 : i32
    return %c0_i32, %c0_i32_0 : i32, i32
  }
  func.func @transform_3(%arg0: i32) -> (i32, i32, i32) {
    %c0_i32 = arith.constant 0 : i32
    %c0_i32_0 = arith.constant 0 : i32
    %c0_i32_1 = arith.constant 0 : i32
    %c0_i32_2 = arith.constant 0 : i32
    return %c0_i32, %c0_i32_0, %c0_i32_1 : i32, i32, i32
  }
  func.func @transform_4(%arg0: i32) -> (i32, i32) {
    %c0_i32 = arith.constant 0 : i32
    %c0_i32_0 = arith.constant 0 : i32
    %c0_i32_1 = arith.constant 0 : i32
    return %c0_i32, %c0_i32_0 : i32, i32
  }
  func.func @transform_5(%arg0: i32) -> (i32, i32) {
    %c0_i32 = arith.constant 0 : i32
    %c0_i32_0 = arith.constant 0 : i32
    %c0_i32_1 = arith.constant 0 : i32
    return %c0_i32, %c0_i32_0 : i32, i32
  }
  func.func @transform_6(%arg0: i32) -> (i32, i32, i32) {
    %c0_i32 = arith.constant 0 : i32
    %c0_i32_0 = arith.constant 0 : i32
    %c0_i32_1 = arith.constant 0 : i32
    return %arg0, %c0_i32, %c0_i32_0 : i32, i32, i32
  }
}

</mosaic_0001>

<llo_original>
// kernel: _lambda_.1
$region0: #{_lambda_.1}
  #allocation0 [shape = 'u32[]', space=smem, size = 0x4, offset = 0x4, fixed_abs, tag = 'smem constant byte address 0x4 - core index']
  #allocation1 [shape = 'u32[144,128]{1,0:T(1,128)}', space=vmem, size = 0x12000, scoped, tag = 'internal scratch']
  #allocation2 [shape = 'f32[8,462]{1,0:T(8,128)}', space=vmem, size = 0x4000, scoped, tag = 'scratch operand']
  %s0 = inlined_call_operand.vmem [shape: f32[2,8,420], index: 0, kind: input, shape index: {}]
  %s1 = inlined_call_operand.vmem [shape: f32[9,8,8], index: 1, kind: input, shape index: {}]
  %s2 = inlined_call_operand.vmem [shape: f32[8,1], index: 2, kind: input, shape index: {}]
  %s3 = inlined_call_operand.vmem [shape: f32[9,4,8], index: 3, kind: input, shape index: {}]
  %s4 = inlined_call_operand.vmem [shape: f32[4,1], index: 4, kind: input, shape index: {}]
  %s5 = inlined_call_operand.vmem [shape: f32[1,357], index: 5, kind: input, shape index: {}]
  %s6 = inlined_call_operand.vmem [shape: f32[2,4,399], index: 6, kind: output, shape index: {}]
  %s7 = sld [smem:[#allocation0]]
  $region57: #{_lambda_.1} parent=0
    _
  %s9 = ssub.s32 1, %s7
  %s10 = scalar_select 0, %s9, %s7
  loop: start=0, step=1, limit=4
  $region2: #{_lambda_.1} parent=0 // loop_pre_header
    _
  $region3: #{_lambda_.1} parent=0 // loop_header
    %s12 = sphi 0, %s16
    %p13 = scmp.ge.s32.totalorder %s12, 4
    %s22 = sphi 0, %s24
    %s25 = sphi 0, %s22
    %s26 = sphi 0, %s25
    %s42 = sphi 0, %s26
    %s46 = sphi 0, %s46
    %s48 = sphi 0, %s46
    %s49 = sphi 0, %s48
    %s63 = sphi 0, %s49
    %s67 = sphi 0, %s67
    %s69 = sphi 0, %s67
    %s70 = sphi 0, %s69
    %s84 = sphi 0, %s70
    %s88 = sphi 0, %s88
    %s90 = sphi 0, %s88
    %s91 = sphi 0, %s90
    %s105 = sphi 0, %s91
    %s109 = sphi 0, %s109
    %s111 = sphi 0, %s109
    %s112 = sphi 0, %s111
    %s126 = sphi 0, %s112
    %s130 = sphi 0, %s130
    %s132 = sphi 0, %s130
    %s133 = sphi 0, %s132
    %s147 = sphi 0, %s133
    %s153 = sphi 0, %s155
    %s156 = sphi 0, %s153
    %s157 = sphi 0, %s156
    %s173 = sphi 0, %s157
  $region4: #{_lambda_.1} parent=0 // loop_header_branch
    %15 = sbr.rel (%p13) target = $region8
  $region5: #{_lambda_.1} parent=0 // loop_body
    %s17 = ssub.s32 %s12, 1
    %s18 = ssub.s32 %s12, 2
    %s19 = sadd.s32 %s12, 1
    %s20 = ssub.s32 %s12, %s19
    %p21 = scmp.eq.s32.totalorder %s20, 0
    %s23 = sadd.s32 %s22, 1
    %s24 = scalar_select %p21, %s22, %s23
    %p27 = pneg %p21
    %p28 = scmp.eq.s32.totalorder %s12, 1
    %p29 = por %p27, %p28
    %p30 = scmp.ne.s32.totalorder %s22, %s25
    %p31 = scmp.eq.s32.totalorder %s12, 0
    %p32 = por %p30, %p31
    %p33 = scmp.ne.s32.totalorder %s22, %s25
    %p34 = scmp.eq.s32.totalorder %s17, 1
    %p35 = por %p33, %p34
    %p36 = scmp.ne.s32.totalorder %s25, %s26
    %p37 = scmp.eq.s32.totalorder %s17, 0
    %p38 = por %p36, %p37
    %p39 = scmp.ne.s32.totalorder %s25, %s26
    %p40 = scmp.eq.s32.totalorder %s18, 1
    %p41 = por %p39, %p40
    %p43 = scmp.ne.s32.totalorder %s26, %s42
    %p44 = scmp.eq.s32.totalorder %s18, 0
    %p45 = por %p43, %p44
    %s47 = sadd.s32 %s46, 1
    %p50 = scmp.eq.s32.totalorder %s12, 1
    %p51 = scmp.ne.s32.totalorder %s46, %s48
    %p52 = scmp.eq.s32.totalorder %s12, 0
    %p53 = por %p51, %p52
    %p54 = scmp.ne.s32.totalorder %s46, %s48
    %p55 = scmp.eq.s32.totalorder %s17, 1
    %p56 = por %p54, %p55
    %p57 = scmp.ne.s32.totalorder %s48, %s49
    %p58 = scmp.eq.s32.totalorder %s17, 0
    %p59 = por %p57, %p58
    %p60 = scmp.ne.s32.totalorder %s48, %s49
    %p61 = scmp.eq.s32.totalorder %s18, 1
    %p62 = por %p60, %p61
    %p64 = scmp.ne.s32.totalorder %s49, %s63
    %p65 = scmp.eq.s32.totalorder %s18, 0
    %p66 = por %p64, %p65
    %s68 = sadd.s32 %s67, 1
    %p71 = scmp.eq.s32.totalorder %s12, 1
    %p72 = scmp.ne.s32.totalorder %s67, %s69
    %p73 = scmp.eq.s32.totalorder %s12, 0
    %p74 = por %p72, %p73
    %p75 = scmp.ne.s32.totalorder %s67, %s69
    %p76 = scmp.eq.s32.totalorder %s17, 1
    %p77 = por %p75, %p76
    %p78 = scmp.ne.s32.totalorder %s69, %s70
    %p79 = scmp.eq.s32.totalorder %s17, 0
    %p80 = por %p78, %p79
    %p81 = scmp.ne.s32.totalorder %s69, %s70
    %p82 = scmp.eq.s32.totalorder %s18, 1
    %p83 = por %p81, %p82
    %p85 = scmp.ne.s32.totalorder %s70, %s84
    %p86 = scmp.eq.s32.totalorder %s18, 0
    %p87 = por %p85, %p86
    %s89 = sadd.s32 %s88, 1
    %p92 = scmp.eq.s32.totalorder %s12, 1
    %p93 = scmp.ne.s32.totalorder %s88, %s90
    %p94 = scmp.eq.s32.totalorder %s12, 0
    %p95 = por %p93, %p94
    %p96 = scmp.ne.s32.totalorder %s88, %s90
    %p97 = scmp.eq.s32.totalorder %s17, 1
    %p98 = por %p96, %p97
    %p99 = scmp.ne.s32.totalorder %s90, %s91
    %p100 = scmp.eq.s32.totalorder %s17, 0
    %p101 = por %p99, %p100
    %p102 = scmp.ne.s32.totalorder %s90, %s91
    %p103 = scmp.eq.s32.totalorder %s18, 1
    %p104 = por %p102, %p103
    %p106 = scmp.ne.s32.totalorder %s91, %s105
    %p107 = scmp.eq.s32.totalorder %s18, 0
    %p108 = por %p106, %p107
    %s110 = sadd.s32 %s109, 1
    %p113 = scmp.eq.s32.totalorder %s12, 1
    %p114 = scmp.ne.s32.totalorder %s109, %s111
    %p115 = scmp.eq.s32.totalorder %s12, 0
    %p116 = por %p114, %p115
    %p117 = scmp.ne.s32.totalorder %s109, %s111
    %p118 = scmp.eq.s32.totalorder %s17, 1
    %p119 = por %p117, %p118
    %p120 = scmp.ne.s32.totalorder %s111, %s112
    %p121 = scmp.eq.s32.totalorder %s17, 0
    %p122 = por %p120, %p121
    %p123 = scmp.ne.s32.totalorder %s111, %s112
    %p124 = scmp.eq.s32.totalorder %s18, 1
    %p125 = por %p123, %p124
    %p127 = scmp.ne.s32.totalorder %s112, %s126
    %p128 = scmp.eq.s32.totalorder %s18, 0
    %p129 = por %p127, %p128
    %s131 = sadd.s32 %s130, 1
    %p134 = scmp.eq.s32.totalorder %s12, 1
    %p135 = scmp.ne.s32.totalorder %s130, %s132
    %p136 = scmp.eq.s32.totalorder %s12, 0
    %p137 = por %p135, %p136
    %p138 = scmp.ne.s32.totalorder %s130, %s132
    %p139 = scmp.eq.s32.totalorder %s17, 1
    %p140 = por %p138, %p139
    %p141 = scmp.ne.s32.totalorder %s132, %s133
    %p142 = scmp.eq.s32.totalorder %s17, 0
    %p143 = por %p141, %p142
    %p144 = scmp.ne.s32.totalorder %s132, %s133
    %p145 = scmp.eq.s32.totalorder %s18, 1
    %p146 = por %p144, %p145
    %p148 = scmp.ne.s32.totalorder %s133, %s147
    %p149 = scmp.eq.s32.totalorder %s18, 0
    %p150 = por %p148, %p149
    %s151 = ssub.s32 %s12, %s19
    %p152 = scmp.eq.s32.totalorder %s151, 0
    %s154 = sadd.s32 %s153, 1
    %s155 = scalar_select %p152, %s153, %s154
    %p158 = pneg %p152
    %p159 = scmp.eq.s32.totalorder %s12, 1
    %p160 = por %p158, %p159
    %p161 = scmp.ne.s32.totalorder %s153, %s156
    %p162 = scmp.eq.s32.totalorder %s12, 0
    %p163 = por %p161, %p162
    %p164 = scmp.ne.s32.totalorder %s153, %s156
    %p165 = scmp.eq.s32.totalorder %s17, 1
    %p166 = por %p164, %p165
    %p167 = scmp.ne.s32.totalorder %s156, %s157
    %p168 = scmp.eq.s32.totalorder %s17, 0
    %p169 = por %p167, %p168
    %p170 = scmp.ne.s32.totalorder %s156, %s157
    %p171 = scmp.eq.s32.totalorder %s18, 1
    %p172 = por %p170, %p171
    %p174 = scmp.ne.s32.totalorder %s157, %s173
    %p175 = scmp.eq.s32.totalorder %s18, 0
    %p176 = por %p174, %p175
    %p177 = scmp.le.s32.totalorder 1, %s12
    %p178 = scmp.lt.s32.totalorder %s12, 3
    %p179 = pnand %p177, %p178
    %p180 = pneg %p179
    // Predicated region
    $region9: #{_lambda_.1} parent=5 // pred_check
      _
    $region10: #{_lambda_.1} parent=5 // pred_check_branch
      %182 = sbr.rel (%p179) target = $region12
    $region11: #{_lambda_.1} parent=5 // pred_region
      %s183 = ssub.s32 %s12, 1
      // Predicated region
      $region13: #{_lambda_.1} parent=11 // pred_check
        %p184 = pneg %p59
      $region14: #{_lambda_.1} parent=11 // pred_check_branch
        %186 = sbr.rel (%p184) target = $region16
      $region15: #{_lambda_.1} parent=11 // pred_region
        _
      $region16: #{_lambda_.1} parent=11 // pred_fallthru
        _
      // Predicated region
      $region17: #{_lambda_.1} parent=11 // pred_check
        %p187 = pneg %p80
      $region18: #{_lambda_.1} parent=11 // pred_check_branch
        %189 = sbr.rel (%p187) target = $region20
      $region19: #{_lambda_.1} parent=11 // pred_region
        _
      $region20: #{_lambda_.1} parent=11 // pred_fallthru
        _
      // Predicated region
      $region21: #{_lambda_.1} parent=11 // pred_check
        %p190 = pneg %p101
      $region22: #{_lambda_.1} parent=11 // pred_check_branch
        %192 = sbr.rel (%p190) target = $region24
      $region23: #{_lambda_.1} parent=11 // pred_region
        _
      $region24: #{_lambda_.1} parent=11 // pred_fallthru
        _
      // Predicated region
      $region25: #{_lambda_.1} parent=11 // pred_check
        %p193 = pneg %p122
      $region26: #{_lambda_.1} parent=11 // pred_check_branch
        %195 = sbr.rel (%p193) target = $region28
      $region27: #{_lambda_.1} parent=11 // pred_region
        _
      $region28: #{_lambda_.1} parent=11 // pred_fallthru
        _
      // Predicated region
      $region29: #{_lambda_.1} parent=11 // pred_check
        %p196 = pneg %p143
      $region30: #{_lambda_.1} parent=11 // pred_check_branch
        %198 = sbr.rel (%p196) target = $region32
      $region31: #{_lambda_.1} parent=11 // pred_region
        _
      $region32: #{_lambda_.1} parent=11 // pred_fallthru
        _
    $region12: #{_lambda_.1} parent=5 // pred_fallthru
      _
    %p199 = scmp.lt.s32.totalorder %s12, 2
    // Predicated region
    $region33: #{_lambda_.1} parent=5 // pred_check
      %p200 = pneg %p199
    $region34: #{_lambda_.1} parent=5 // pred_check_branch
      %202 = sbr.rel (%p200) target = $region36
    $region35: #{_lambda_.1} parent=5 // pred_region
      // Predicated region
      $region37: #{_lambda_.1} parent=35 // pred_check
        %p203 = pneg %p32
      $region38: #{_lambda_.1} parent=35 // pred_check_branch
        %205 = sbr.rel (%p203) target = $region40
      $region39: #{_lambda_.1} parent=35 // pred_region
        %p206 = scmp.lt.s32.totalorder %s12, 1
        %s207 = scalar_select %p206, %s12, 1
        %s208 = smul.addr %s207, 4
        %s209 = smul.addr %s208, 8
        %s210 = scalar_lea.vmem %s0, %s209
      $region40: #{_lambda_.1} parent=35 // pred_fallthru
        _
    $region36: #{_lambda_.1} parent=5 // pred_fallthru
      _
    %p211 = scmp.le.s32.totalorder 1, %s12
    %p212 = scmp.lt.s32.totalorder %s12, 3
    %p213 = pnand %p211, %p212
    %p214 = pneg %p213
    // Predicated region
    $region41: #{_lambda_.1} parent=5 // pred_check
      _
    $region42: #{_lambda_.1} parent=5 // pred_check_branch
      %216 = sbr.rel (%p213) target = $region44
    $region43: #{_lambda_.1} parent=5 // pred_region
      %s217 = ssub.s32 %s12, 1
      %p218 = scmp.lt.s32.totalorder %s17, 1
      %s219 = scalar_select %p218, %s17, 1
      %s220 = smul.addr %s219, 4
      %s221 = smul.addr %s220, 8
      %s222 = scalar_lea.vmem %s0, %s221
      %p223 = pneg %p38
      %p224 = pneg %p35
      %p225 = pneg %p59
      %p226 = pneg %p56
      %p227 = pneg %p80
      %p228 = pneg %p77
      %p229 = pneg %p101
      %p230 = pneg %p98
      %p231 = pneg %p122
      %p232 = pneg %p119
      %p233 = pneg %p143
      %p234 = pneg %p140
      %p235 = pneg %p169
      %p236 = pneg %p166
      %p237 = scmp.lt.s32.totalorder %s17, 1
      %s238 = scalar_select %p237, %s17, 1
      %s239 = smul.addr %s238, 4
      %s240 = smul.addr %s239, 4
      %s241 = scalar_lea.vmem %s6, %s240
      %p242 = scmp.lt.s32.totalorder %s17, 1
      %s243 = scalar_select %p242, %s17, 1
      %s244 = smul.addr %s243, 4
      %s245 = smul.addr %s244, 8
      %s246 = scalar_lea.vmem %s0, %s245
      %p247 = scmp.lt.s32.totalorder %s17, 1
      %s248 = scalar_select %p247, %s17, 1
      %s249 = smul.addr %s248, 4
      %s250 = smul.addr %s249, 4
      %s251 = scalar_lea.vmem %s6, %s250
      %v252 = vld [vmem:[%s1] sm:$0xff]
      %v253 = vld [vmem:[%s246] sm:$0xff]
      %v254 = vld [vmem:[%s246 + $0x8] sm:$0xff]
      %v255 = vld [vmem:[%s246 + $0x10] sm:$0xff]
      %s256 = scalar_lea.vmem %s1, 8
      %v257 = vld [vmem:[%s256] sm:$0xff]
      %261 = vrot.lane.b32.xlu0 %v253, 127
      %v262 = vpop.permute.xlu0 %261
      %263 = vrot.lane.b32.xlu0 %v254, 127
      %v264 = vpop.permute.xlu0 %263
      %265 = vrot.lane.b32.xlu0 %v255, 127
      %v266 = vpop.permute.xlu0 %265
      %vm267 = vcmask 1039360
      %v268 = vsel %vm267, %v262, %v264
      %v269 = vsel %vm267, %v264, %v266
      %vm273 = vcmask 64512
      %v275 = vsel %vm273, %v257, 0
      %277 = vmatprep.subr.mxu0 %v269
      %278 = vmatpush1.msra.mxu0 %v268
      %279 = vmatprep.subr.mxu0 0.0
      %280 = vmatpush1.msra.mxu0 0.0
      %281 = vmatprep.subr.mxu0 0.0
      %282 = vmatpush1.msra.mxu0 0.0
      %283 = vmatprep.subr.mxu0 0.0
      %284 = vmatpush1.msra.mxu0 0.0
      %285 = vmatprep.subr.mxu0 0.0
      %286 = vmatpush1.msra.mxu0 0.0
      %287 = vmatprep.subr.mxu0 0.0
      %288 = vmatpush1.msra.mxu0 0.0
      %289 = vmatprep.subr.mxu0 0.0
      %290 = vmatpush1.msra.mxu0 0.0
      %291 = vmatprep.subr.mxu0 0.0
      %292 = vmatpush1.msra.mxu0 0.0
      %293 = vmatprep.subr.mxu0 0.0
      %294 = vmatpush1.msra.mxu0 0.0
      %295 = vmatprep.subr.mxu0 0.0
      %296 = vmatpush1.msra.mxu0 0.0
      %297 = vmatprep.subr.mxu0 0.0
      %298 = vmatpush1.msra.mxu0 0.0
      %299 = vmatprep.subr.mxu0 0.0
      %300 = vmatpush1.msra.mxu0 0.0
      %301 = vmatprep.subr.mxu0 0.0
      %302 = vmatpush1.msra.mxu0 0.0
      %303 = vmatprep.subr.mxu0 0.0
      %304 = vmatpush1.msra.mxu0 0.0
      %305 = vmatprep.subr.mxu0 0.0
      %306 = vmatpush1.msra.mxu0 0.0
      %307 = vmatprep.subr.mxu0 0.0
      %308 = vmatpush1.msra.mxu0 0.0
      %309 = vmatprep.subr.mxu0 0.0
      %310 = vmatpush1.msra.mxu0 0.0
      %311 = vmatprep.subr.mxu0 0.0
      %312 = vmatpush1.msra.mxu0 0.0
      %313 = vmatprep.subr.mxu0 0.0
      %314 = vmatpush1.msra.mxu0 0.0
      %315 = vmatprep.subr.mxu0 0.0
      %316 = vmatpush1.msra.mxu0 0.0
      %317 = vmatprep.subr.mxu0 0.0
      %318 = vmatpush1.msra.mxu0 0.0
      %319 = vmatprep.subr.mxu0 0.0
      %320 = vmatpush1.msra.mxu0 0.0
      %321 = vmatprep.subr.mxu0 0.0
      %322 = vmatpush1.msra.mxu0 0.0
      %323 = vmatprep.subr.mxu0 0.0
      %324 = vmatpush1.msra.mxu0 0.0
      %325 = vmatprep.subr.mxu0 0.0
      %326 = vmatpush1.msra.mxu0 0.0
      %327 = vmatprep.subr.mxu0 0.0
      %328 = vmatpush1.msra.mxu0 0.0
      %329 = vmatprep.subr.mxu0 0.0
      %330 = vmatpush1.msra.mxu0 0.0
      %331 = vmatprep.subr.mxu0 0.0
      %332 = vmatpush1.msra.mxu0 0.0
      %333 = vmatprep.subr.mxu0 0.0
      %334 = vmatpush1.msra.mxu0 0.0
      %335 = vmatprep.subr.mxu0 0.0
      %336 = vmatpush1.msra.mxu0 0.0
      %337 = vmatprep.subr.mxu0 0.0
      %338 = vmatpush1.msra.mxu0 0.0
      %339 = vmatprep.subr.mxu0 0.0
      %340 = vmatpush1.msra.mxu0 0.0
      %341 = vmatprep.mubr.f32.mxu0 0.0
      %342 = vmatmul.mubr.f32.gmra.mrb[0].mxu0 %v275
      %v343 = vpop.f32.mrb[0].mxu0
      %v344 = vadd.f32 0.0, %v343
      %v345 = vpop.f32.mrb[0].mxu0
      %v346 = vadd.f32 0.0, %v345
      %347 = vdwg.mxu0
      %348 = vmatprep.subr.mxu0 0.0
      %349 = vmatpush1.msra.mxu0 %v266
      %350 = vmatprep.subr.mxu0 0.0
      %351 = vmatpush1.msra.mxu0 0.0
      %352 = vmatprep.subr.mxu0 0.0
      %353 = vmatpush1.msra.mxu0 0.0
      %354 = vmatprep.subr.mxu0 0.0
      %355 = vmatpush1.msra.mxu0 0.0
      %356 = vmatprep.subr.mxu0 0.0
      %357 = vmatpush1.msra.mxu0 0.0
      %358 = vmatprep.subr.mxu0 0.0
      %359 = vmatpush1.msra.mxu0 0.0
      %360 = vmatprep.subr.mxu0 0.0
      %361 = vmatpush1.msra.mxu0 0.0
      %362 = vmatprep.subr.mxu0 0.0
      %363 = vmatpush1.msra.mxu0 0.0
      %364 = vmatprep.subr.mxu0 0.0
      %365 = vmatpush1.msra.mxu0 0.0
      %366 = vmatprep.subr.mxu0 0.0
      %367 = vmatpush1.msra.mxu0 0.0
      %368 = vmatprep.subr.mxu0 0.0
      %369 = vmatpush1.msra.mxu0 0.0
      %370 = vmatprep.subr.mxu0 0.0
      %371 = vmatpush1.msra.mxu0 0.0
      %372 = vmatprep.subr.mxu0 0.0
      %373 = vmatpush1.msra.mxu0 0.0
      %374 = vmatprep.subr.mxu0 0.0
      %375 = vmatpush1.msra.mxu0 0.0
      %376 = vmatprep.subr.mxu0 0.0
      %377 = vmatpush1.msra.mxu0 0.0
      %378 = vmatprep.subr.mxu0 0.0
      %379 = vmatpush1.msra.mxu0 0.0
      %380 = vmatprep.subr.mxu0 0.0
      %381 = vmatpush1.msra.mxu0 0.0
      %382 = vmatprep.subr.mxu0 0.0
      %383 = vmatpush1.msra.mxu0 0.0
      %384 = vmatprep.subr.mxu0 0.0
      %385 = vmatpush1.msra.mxu0 0.0
      %386 = vmatprep.subr.mxu0 0.0
      %387 = vmatpush1.msra.mxu0 0.0
      %388 = vmatprep.subr.mxu0 0.0
      %389 = vmatpush1.msra.mxu0 0.0
      %390 = vmatprep.subr.mxu0 0.0
      %391 = vmatpush1.msra.mxu0 0.0
      %392 = vmatprep.subr.mxu0 0.0
      %393 = vmatpush1.msra.mxu0 0.0
      %394 = vmatprep.subr.mxu0 0.0
      %395 = vmatpush1.msra.mxu0 0.0
      %396 = vmatprep.subr.mxu0 0.0
      %397 = vmatpush1.msra.mxu0 0.0
      %398 = vmatprep.subr.mxu0 0.0
      %399 = vmatpush1.msra.mxu0 0.0
      %400 = vmatprep.subr.mxu0 0.0
      %401 = vmatpush1.msra.mxu0 0.0
      %402 = vmatprep.subr.mxu0 0.0
      %403 = vmatpush1.msra.mxu0 0.0
      %404 = vmatprep.subr.mxu0 0.0
      %405 = vmatpush1.msra.mxu0 0.0
      %406 = vmatprep.subr.mxu0 0.0
      %407 = vmatpush1.msra.mxu0 0.0
      %408 = vmatprep.subr.mxu0 0.0
      %409 = vmatpush1.msra.mxu0 0.0
      %410 = vmatprep.subr.mxu0 0.0
      %411 = vmatpush1.msra.mxu0 0.0
      %412 = vmatprep.mubr.f32.mxu0 0.0
      %413 = vmatmul.mubr.f32.gmra.mrb[0].mxu0 %v275
      %v414 = vpop.f32.mrb[0].mxu0
      %v415 = vadd.f32 0.0, %v414
      %v416 = vpop.f32.mrb[0].mxu0
      %417 = vdwg.mxu0
      %v419 = vsel %vm273, %v252, 0
      %421 = vmatprep.subr.mxu0 %v254
      %422 = vmatpush1.msra.mxu0 %v253
      %423 = vmatprep.subr.mxu0 0.0
      %424 = vmatpush1.msra.mxu0 0.0
      %425 = vmatprep.subr.mxu0 0.0
      %426 = vmatpush1.msra.mxu0 0.0
      %427 = vmatprep.subr.mxu0 0.0
      %428 = vmatpush1.msra.mxu0 0.0
      %429 = vmatprep.subr.mxu0 0.0
      %430 = vmatpush1.msra.mxu0 0.0
      %431 = vmatprep.subr.mxu0 0.0
      %432 = vmatpush1.msra.mxu0 0.0
      %433 = vmatprep.subr.mxu0 0.0
      %434 = vmatpush1.msra.mxu0 0.0
      %435 = vmatprep.subr.mxu0 0.0
      %436 = vmatpush1.msra.mxu0 0.0
      %437 = vmatprep.subr.mxu0 0.0
      %438 = vmatpush1.msra.mxu0 0.0
      %439 = vmatprep.subr.mxu0 0.0
      %440 = vmatpush1.msra.mxu0 0.0
      %441 = vmatprep.subr.mxu0 0.0
      %442 = vmatpush1.msra.mxu0 0.0
      %443 = vmatprep.subr.mxu0 0.0
      %444 = vmatpush1.msra.mxu0 0.0
      %445 = vmatprep.subr.mxu0 0.0
      %446 = vmatpush1.msra.mxu0 0.0
      %447 = vmatprep.subr.mxu0 0.0
      %448 = vmatpush1.msra.mxu0 0.0
      %449 = vmatprep.subr.mxu0 0.0
      %450 = vmatpush1.msra.mxu0 0.0
      %451 = vmatprep.subr.mxu0 0.0
      %452 = vmatpush1.msra.mxu0 0.0
      %453 = vmatprep.subr.mxu0 0.0
      %454 = vmatpush1.msra.mxu0 0.0
      %455 = vmatprep.subr.mxu0 0.0
      %456 = vmatpush1.msra.mxu0 0.0
      %457 = vmatprep.subr.mxu0 0.0
      %458 = vmatpush1.msra.mxu0 0.0
      %459 = vmatprep.subr.mxu0 0.0
      %460 = vmatpush1.msra.mxu0 0.0
      %461 = vmatprep.subr.mxu0 0.0
      %462 = vmatpush1.msra.mxu0 0.0
      %463 = vmatprep.subr.mxu0 0.0
      %464 = vmatpush1.msra.mxu0 0.0
      %465 = vmatprep.subr.mxu0 0.0
      %466 = vmatpush1.msra.mxu0 0.0
      %467 = vmatprep.subr.mxu0 0.0
      %468 = vmatpush1.msra.mxu0 0.0
      %469 = vmatprep.subr.mxu0 0.0
      %470 = vmatpush1.msra.mxu0 0.0
      %471 = vmatprep.subr.mxu0 0.0
      %472 = vmatpush1.msra.mxu0 0.0
      %473 = vmatprep.subr.mxu0 0.0
      %474 = vmatpush1.msra.mxu0 0.0
      %475 = vmatprep.subr.mxu0 0.0
      %476 = vmatpush1.msra.mxu0 0.0
      %477 = vmatprep.subr.mxu0 0.0
      %478 = vmatpush1.msra.mxu0 0.0
      %479 = vmatprep.subr.mxu0 0.0
      %480 = vmatpush1.msra.mxu0 0.0
      %481 = vmatprep.subr.mxu0 0.0
      %482 = vmatpush1.msra.mxu0 0.0
      %483 = vmatprep.subr.mxu0 0.0
      %484 = vmatpush1.msra.mxu0 0.0
      %485 = vmatprep.mubr.f32.mxu0 0.0
      %486 = vmatmul.mubr.f32.gmra.mrb[0].mxu0 %v419
      %v487 = vpop.f32.mrb[0].mxu0
      %v488 = vadd.f32 %v344, %v487
      %v489 = vpop.f32.mrb[0].mxu0
      %v490 = vadd.f32 %v346, %v489
      %491 = vdwg.mxu0
      %492 = vmatprep.subr.mxu0 0.0
      %493 = vmatpush1.msra.mxu0 %v255
      %494 = vmatprep.subr.mxu0 0.0
      %495 = vmatpush1.msra.mxu0 0.0
      %496 = vmatprep.subr.mxu0 0.0
      %497 = vmatpush1.msra.mxu0 0.0
      %498 = vmatprep.subr.mxu0 0.0
      %499 = vmatpush1.msra.mxu0 0.0
      %500 = vmatprep.subr.mxu0 0.0
      %501 = vmatpush1.msra.mxu0 0.0
      %502 = vmatprep.subr.mxu0 0.0
      %503 = vmatpush1.msra.mxu0 0.0
      %504 = vmatprep.subr.mxu0 0.0
      %505 = vmatpush1.msra.mxu0 0.0
      %506 = vmatprep.subr.mxu0 0.0
      %507 = vmatpush1.msra.mxu0 0.0
      %508 = vmatprep.subr.mxu0 0.0
      %509 = vmatpush1.msra.mxu0 0.0
      %510 = vmatprep.subr.mxu0 0.0
      %511 = vmatpush1.msra.mxu0 0.0
      %512 = vmatprep.subr.mxu0 0.0
      %513 = vmatpush1.msra.mxu0 0.0
      %514 = vmatprep.subr.mxu0 0.0
      %515 = vmatpush1.msra.mxu0 0.0
      %516 = vmatprep.subr.mxu0 0.0
      %517 = vmatpush1.msra.mxu0 0.0
      %518 = vmatprep.subr.mxu0 0.0
      %519 = vmatpush1.msra.mxu0 0.0
      %520 = vmatprep.subr.mxu0 0.0
      %521 = vmatpush1.msra.mxu0 0.0
      %522 = vmatprep.subr.mxu0 0.0
      %523 = vmatpush1.msra.mxu0 0.0
      %524 = vmatprep.subr.mxu0 0.0
      %525 = vmatpush1.msra.mxu0 0.0
      %526 = vmatprep.subr.mxu0 0.0
      %527 = vmatpush1.msra.mxu0 0.0
      %528 = vmatprep.subr.mxu0 0.0
      %529 = vmatpush1.msra.mxu0 0.0
      %530 = vmatprep.subr.mxu0 0.0
      %531 = vmatpush1.msra.mxu0 0.0
      %532 = vmatprep.subr.mxu0 0.0
      %533 = vmatpush1.msra.mxu0 0.0
      %534 = vmatprep.subr.mxu0 0.0
      %535 = vmatpush1.msra.mxu0 0.0
      %536 = vmatprep.subr.mxu0 0.0
      %537 = vmatpush1.msra.mxu0 0.0
      %538 = vmatprep.subr.mxu0 0.0
      %539 = vmatpush1.msra.mxu0 0.0
      %540 = vmatprep.subr.mxu0 0.0
      %541 = vmatpush1.msra.mxu0 0.0
      %542 = vmatprep.subr.mxu0 0.0
      %543 = vmatpush1.msra.mxu0 0.0
      %544 = vmatprep.subr.mxu0 0.0
      %545 = vmatpush1.msra.mxu0 0.0
      %546 = vmatprep.subr.mxu0 0.0
      %547 = vmatpush1.msra.mxu0 0.0
      %548 = vmatprep.subr.mxu0 0.0
      %549 = vmatpush1.msra.mxu0 0.0
      %550 = vmatprep.subr.mxu0 0.0
      %551 = vmatpush1.msra.mxu0 0.0
      %552 = vmatprep.subr.mxu0 0.0
      %553 = vmatpush1.msra.mxu0 0.0
      %554 = vmatprep.subr.mxu0 0.0
      %555 = vmatpush1.msra.mxu0 0.0
      %556 = vmatprep.mubr.f32.mxu0 0.0
      %557 = vmatmul.mubr.f32.gmra.mrb[0].mxu0 %v419
      %v558 = vpop.f32.mrb[0].mxu0
      %v559 = vadd.f32 %v415, %v558
      %v560 = vpop.f32.mrb[0].mxu0
      %561 = vdwg.mxu0
      %s562 = scalar_lea.vmem %s1, 16
      %v563 = vld [vmem:[%s562] sm:$0xff]
      %564 = vrot.lane.b32.xlu0 %v253, 126
      %v565 = vpop.permute.xlu0 %564
      %566 = vrot.lane.b32.xlu0 %v254, 126
      %v567 = vpop.permute.xlu0 %566
      %568 = vrot.lane.b32.xlu0 %v255, 126
      %v569 = vpop.permute.xlu0 %568
      %vm570 = vcmask 1031168
      %v571 = vsel %vm570, %v565, %v567
      %v572 = vsel %vm570, %v567, %v569
      %v577 = vsel %vm273, %v563, 0
      %579 = vmatprep.subr.mxu0 %v572
      %580 = vmatpush1.msra.mxu0 %v571
      %581 = vmatprep.subr.mxu0 0.0
      %582 = vmatpush1.msra.mxu0 0.0
      %583 = vmatprep.subr.mxu0 0.0
      %584 = vmatpush1.msra.mxu0 0.0
      %585 = vmatprep.subr.mxu0 0.0
      %586 = vmatpush1.msra.mxu0 0.0
      %587 = vmatprep.subr.mxu0 0.0
      %588 = vmatpush1.msra.mxu0 0.0
      %589 = vmatprep.subr.mxu0 0.0
      %590 = vmatpush1.msra.mxu0 0.0
      %591 = vmatprep.subr.mxu0 0.0
      %592 = vmatpush1.msra.mxu0 0.0
      %593 = vmatprep.subr.mxu0 0.0
      %594 = vmatpush1.msra.mxu0 0.0
      %595 = vmatprep.subr.mxu0 0.0
      %596 = vmatpush1.msra.mxu0 0.0
      %597 = vmatprep.subr.mxu0 0.0
      %598 = vmatpush1.msra.mxu0 0.0
      %599 = vmatprep.subr.mxu0 0.0
      %600 = vmatpush1.msra.mxu0 0.0
      %601 = vmatprep.subr.mxu0 0.0
      %602 = vmatpush1.msra.mxu0 0.0
      %603 = vmatprep.subr.mxu0 0.0
      %604 = vmatpush1.msra.mxu0 0.0
      %605 = vmatprep.subr.mxu0 0.0
      %606 = vmatpush1.msra.mxu0 0.0
      %607 = vmatprep.subr.mxu0 0.0
      %608 = vmatpush1.msra.mxu0 0.0
      %609 = vmatprep.subr.mxu0 0.0
      %610 = vmatpush1.msra.mxu0 0.0
      %611 = vmatprep.subr.mxu0 0.0
      %612 = vmatpush1.msra.mxu0 0.0
      %613 = vmatprep.subr.mxu0 0.0
      %614 = vmatpush1.msra.mxu0 0.0
      %615 = vmatprep.subr.mxu0 0.0
      %616 = vmatpush1.msra.mxu0 0.0
      %617 = vmatprep.subr.mxu0 0.0
      %618 = vmatpush1.msra.mxu0 0.0
      %619 = vmatprep.subr.mxu0 0.0
      %620 = vmatpush1.msra.mxu0 0.0
      %621 = vmatprep.subr.mxu0 0.0
      %622 = vmatpush1.msra.mxu0 0.0
      %623 = vmatprep.subr.mxu0 0.0
      %624 = vmatpush1.msra.mxu0 0.0
      %625 = vmatprep.subr.mxu0 0.0
      %626 = vmatpush1.msra.mxu0 0.0
      %627 = vmatprep.subr.mxu0 0.0
      %628 = vmatpush1.msra.mxu0 0.0
      %629 = vmatprep.subr.mxu0 0.0
      %630 = vmatpush1.msra.mxu0 0.0
      %631 = vmatprep.subr.mxu0 0.0
      %632 = vmatpush1.msra.mxu0 0.0
      %633 = vmatprep.subr.mxu0 0.0
      %634 = vmatpush1.msra.mxu0 0.0
      %635 = vmatprep.subr.mxu0 0.0
      %636 = vmatpush1.msra.mxu0 0.0
      %637 = vmatprep.subr.mxu0 0.0
      %638 = vmatpush1.msra.mxu0 0.0
      %639 = vmatprep.subr.mxu0 0.0
      %640 = vmatpush1.msra.mxu0 0.0
      %641 = vmatprep.subr.mxu0 0.0
      %642 = vmatpush1.msra.mxu0 0.0
      %643 = vmatprep.mubr.f32.mxu0 0.0
      %644 = vmatmul.mubr.f32.gmra.mrb[0].mxu0 %v577
      %v645 = vpop.f32.mrb[0].mxu0
      %v646 = vadd.f32 0.0, %v645
      %v647 = vpop.f32.mrb[0].mxu0
      %v648 = vadd.f32 0.0, %v647
      %649 = vdwg.mxu0
      %650 = vmatprep.subr.mxu0 0.0
      %651 = vmatpush1.msra.mxu0 %v569
      %652 = vmatprep.subr.mxu0 0.0
      %653 = vmatpush1.msra.mxu0 0.0
      %654 = vmatprep.subr.mxu0 0.0
      %655 = vmatpush1.msra.mxu0 0.0
      %656 = vmatprep.subr.mxu0 0.0
      %657 = vmatpush1.msra.mxu0 0.0
      %658 = vmatprep.subr.mxu0 0.0
      %659 = vmatpush1.msra.mxu0 0.0
      %660 = vmatprep.subr.mxu0 0.0
      %661 = vmatpush1.msra.mxu0 0.0
      %662 = vmatprep.subr.mxu0 0.0
      %663 = vmatpush1.msra.mxu0 0.0
      %664 = vmatprep.subr.mxu0 0.0
      %665 = vmatpush1.msra.mxu0 0.0
      %666 = vmatprep.subr.mxu0 0.0
      %667 = vmatpush1.msra.mxu0 0.0
      %668 = vmatprep.subr.mxu0 0.0
      %669 = vmatpush1.msra.mxu0 0.0
      %670 = vmatprep.subr.mxu0 0.0
      %671 = vmatpush1.msra.mxu0 0.0
      %672 = vmatprep.subr.mxu0 0.0
      %673 = vmatpush1.msra.mxu0 0.0
      %674 = vmatprep.subr.mxu0 0.0
      %675 = vmatpush1.msra.mxu0 0.0
      %676 = vmatprep.subr.mxu0 0.0
      %677 = vmatpush1.msra.mxu0 0.0
      %678 = vmatprep.subr.mxu0 0.0
      %679 = vmatpush1.msra.mxu0 0.0
      %680 = vmatprep.subr.mxu0 0.0
      %681 = vmatpush1.msra.mxu0 0.0
      %682 = vmatprep.subr.mxu0 0.0
      %683 = vmatpush1.msra.mxu0 0.0
      %684 = vmatprep.subr.mxu0 0.0
      %685 = vmatpush1.msra.mxu0 0.0
      %686 = vmatprep.subr.mxu0 0.0
      %687 = vmatpush1.msra.mxu0 0.0
      %688 = vmatprep.subr.mxu0 0.0
      %689 = vmatpush1.msra.mxu0 0.0
      %690 = vmatprep.subr.mxu0 0.0
      %691 = vmatpush1.msra.mxu0 0.0
      %692 = vmatprep.subr.mxu0 0.0
      %693 = vmatpush1.msra.mxu0 0.0
      %694 = vmatprep.subr.mxu0 0.0
      %695 = vmatpush1.msra.mxu0 0.0
      %696 = vmatprep.subr.mxu0 0.0
      %697 = vmatpush1.msra.mxu0 0.0
      %698 = vmatprep.subr.mxu0 0.0
      %699 = vmatpush1.msra.mxu0 0.0
      %700 = vmatprep.subr.mxu0 0.0
      %701 = vmatpush1.msra.mxu0 0.0
      %702 = vmatprep.subr.mxu0 0.0
      %703 = vmatpush1.msra.mxu0 0.0
      %704 = vmatprep.subr.mxu0 0.0
      %705 = vmatpush1.msra.mxu0 0.0
      %706 = vmatprep.subr.mxu0 0.0
      %707 = vmatpush1.msra.mxu0 0.0
      %708 = vmatprep.subr.mxu0 0.0
      %709 = vmatpush1.msra.mxu0 0.0
      %710 = vmatprep.subr.mxu0 0.0
      %711 = vmatpush1.msra.mxu0 0.0
      %712 = vmatprep.subr.mxu0 0.0
      %713 = vmatpush1.msra.mxu0 0.0
      %714 = vmatprep.mubr.f32.mxu0 0.0
      %715 = vmatmul.mubr.f32.gmra.mrb[0].mxu0 %v577
      %v716 = vpop.f32.mrb[0].mxu0
      %v717 = vadd.f32 0.0, %v716
      %v718 = vpop.f32.mrb[0].mxu0
      %719 = vdwg.mxu0
      %v720 = vadd.f32 %v488, %v646
      %v721 = vadd.f32 %v490, %v648
      %v722 = vadd.f32 %v559, %v717
      %s723 = scalar_lea.vmem %s1, 24
      %v724 = vld [vmem:[%s723] sm:$0xff]
      %725 = vrot.lane.b32.xlu0 %v253, 107
      %v726 = vpop.permute.xlu0 %725
      %727 = vrot.lane.b32.xlu0 %v254, 107
      %v728 = vpop.permute.xlu0 %727
      %729 = vrot.lane.b32.xlu0 %v255, 107
      %v730 = vpop.permute.xlu0 %729
      %vm731 = vcmask 875520
      %v732 = vsel %vm731, %v726, %v728
      %v733 = vsel %vm731, %v728, %v730
      %v738 = vsel %vm273, %v724, 0
      %740 = vmatprep.subr.mxu0 %v733
      %741 = vmatpush1.msra.mxu0 %v732
      %742 = vmatprep.subr.mxu0 0.0
      %743 = vmatpush1.msra.mxu0 0.0
      %744 = vmatprep.subr.mxu0 0.0
      %745 = vmatpush1.msra.mxu0 0.0
      %746 = vmatprep.subr.mxu0 0.0
      %747 = vmatpush1.msra.mxu0 0.0
      %748 = vmatprep.subr.mxu0 0.0
      %749 = vmatpush1.msra.mxu0 0.0
      %750 = vmatprep.subr.mxu0 0.0
      %751 = vmatpush1.msra.mxu0 0.0
      %752 = vmatprep.subr.mxu0 0.0
      %753 = vmatpush1.msra.mxu0 0.0
      %754 = vmatprep.subr.mxu0 0.0
      %755 = vmatpush1.msra.mxu0 0.0
      %756 = vmatprep.subr.mxu0 0.0
      %757 = vmatpush1.msra.mxu0 0.0
      %758 = vmatprep.subr.mxu0 0.0
      %759 = vmatpush1.msra.mxu0 0.0
      %760 = vmatprep.subr.mxu0 0.0
      %761 = vmatpush1.msra.mxu0 0.0
      %762 = vmatprep.subr.mxu0 0.0
      %763 = vmatpush1.msra.mxu0 0.0
      %764 = vmatprep.subr.mxu0 0.0
      %765 = vmatpush1.msra.mxu0 0.0
      %766 = vmatprep.subr.mxu0 0.0
      %767 = vmatpush1.msra.mxu0 0.0
      %768 = vmatprep.subr.mxu0 0.0
      %769 = vmatpush1.msra.mxu0 0.0
      %770 = vmatprep.subr.mxu0 0.0
      %771 = vmatpush1.msra.mxu0 0.0
      %772 = vmatprep.subr.mxu0 0.0
      %773 = vmatpush1.msra.mxu0 0.0
      %774 = vmatprep.subr.mxu0 0.0
      %775 = vmatpush1.msra.mxu0 0.0
      %776 = vmatprep.subr.mxu0 0.0
      %777 = vmatpush1.msra.mxu0 0.0
      %778 = vmatprep.subr.mxu0 0.0
      %779 = vmatpush1.msra.mxu0 0.0
      %780 = vmatprep.subr.mxu0 0.0
      %781 = vmatpush1.msra.mxu0 0.0
      %782 = vmatprep.subr.mxu0 0.0
      %783 = vmatpush1.msra.mxu0 0.0
      %784 = vmatprep.subr.mxu0 0.0
      %785 = vmatpush1.msra.mxu0 0.0
      %786 = vmatprep.subr.mxu0 0.0
      %787 = vmatpush1.msra.mxu0 0.0
      %788 = vmatprep.subr.mxu0 0.0
      %789 = vmatpush1.msra.mxu0 0.0
      %790 = vmatprep.subr.mxu0 0.0
      %791 = vmatpush1.msra.mxu0 0.0
      %792 = vmatprep.subr.mxu0 0.0
      %793 = vmatpush1.msra.mxu0 0.0
      %794 = vmatprep.subr.mxu0 0.0
      %795 = vmatpush1.msra.mxu0 0.0
      %796 = vmatprep.subr.mxu0 0.0
      %797 = vmatpush1.msra.mxu0 0.0
      %798 = vmatprep.subr.mxu0 0.0
      %799 = vmatpush1.msra.mxu0 0.0
      %800 = vmatprep.subr.mxu0 0.0
      %801 = vmatpush1.msra.mxu0 0.0
      %802 = vmatprep.subr.mxu0 0.0
      %803 = vmatpush1.msra.mxu0 0.0
      %804 = vmatprep.mubr.f32.mxu0 0.0
      %805 = vmatmul.mubr.f32.gmra.mrb[0].mxu0 %v738
      %v806 = vpop.f32.mrb[0].mxu0
      %v807 = vadd.f32 0.0, %v806
      %v808 = vpop.f32.mrb[0].mxu0
      %v809 = vadd.f32 0.0, %v808
      %810 = vdwg.mxu0
      %811 = vmatprep.subr.mxu0 0.0
      %812 = vmatpush1.msra.mxu0 %v730
      %813 = vmatprep.subr.mxu0 0.0
      %814 = vmatpush1.msra.mxu0 0.0
      %815 = vmatprep.subr.mxu0 0.0
      %816 = vmatpush1.msra.mxu0 0.0
      %817 = vmatprep.subr.mxu0 0.0
      %818 = vmatpush1.msra.mxu0 0.0
      %819 = vmatprep.subr.mxu0 0.0
      %820 = vmatpush1.msra.mxu0 0.0
      %821 = vmatprep.subr.mxu0 0.0
      %822 = vmatpush1.msra.mxu0 0.0
      %823 = vmatprep.subr.mxu0 0.0
      %824 = vmatpush1.msra.mxu0 0.0
      %825 = vmatprep.subr.mxu0 0.0
      %826 = vmatpush1.msra.mxu0 0.0
      %827 = vmatprep.subr.mxu0 0.0
      %828 = vmatpush1.msra.mxu0 0.0
      %829 = vmatprep.subr.mxu0 0.0
      %830 = vmatpush1.msra.mxu0 0.0
      %831 = vmatprep.subr.mxu0 0.0
      %832 = vmatpush1.msra.mxu0 0.0
      %833 = vmatprep.subr.mxu0 0.0
      %834 = vmatpush1.msra.mxu0 0.0
      %835 = vmatprep.subr.mxu0 0.0
      %836 = vmatpush1.msra.mxu0 0.0
      %837 = vmatprep.subr.mxu0 0.0
      %838 = vmatpush1.msra.mxu0 0.0
      %839 = vmatprep.subr.mxu0 0.0
      %840 = vmatpush1.msra.mxu0 0.0
      %841 = vmatprep.subr.mxu0 0.0
      %842 = vmatpush1.msra.mxu0 0.0
      %843 = vmatprep.subr.mxu0 0.0
      %844 = vmatpush1.msra.mxu0 0.0
      %845 = vmatprep.subr.mxu0 0.0
      %846 = vmatpush1.msra.mxu0 0.0
      %847 = vmatprep.subr.mxu0 0.0
      %848 = vmatpush1.msra.mxu0 0.0
      %849 = vmatprep.subr.mxu0 0.0
      %850 = vmatpush1.msra.mxu0 0.0
      %851 = vmatprep.subr.mxu0 0.0
      %852 = vmatpush1.msra.mxu0 0.0
      %853 = vmatprep.subr.mxu0 0.0
      %854 = vmatpush1.msra.mxu0 0.0
      %855 = vmatprep.subr.mxu0 0.0
      %856 = vmatpush1.msra.mxu0 0.0
      %857 = vmatprep.subr.mxu0 0.0
      %858 = vmatpush1.msra.mxu0 0.0
      %859 = vmatprep.subr.mxu0 0.0
      %860 = vmatpush1.msra.mxu0 0.0
      %861 = vmatprep.subr.mxu0 0.0
      %862 = vmatpush1.msra.mxu0 0.0
      %863 = vmatprep.subr.mxu0 0.0
      %864 = vmatpush1.msra.mxu0 0.0
      %865 = vmatprep.subr.mxu0 0.0
      %866 = vmatpush1.msra.mxu0 0.0
      %867 = vmatprep.subr.mxu0 0.0
      %868 = vmatpush1.msra.mxu0 0.0
      %869 = vmatprep.subr.mxu0 0.0
      %870 = vmatpush1.msra.mxu0 0.0
      %871 = vmatprep.subr.mxu0 0.0
      %872 = vmatpush1.msra.mxu0 0.0
      %873 = vmatprep.subr.mxu0 0.0
      %874 = vmatpush1.msra.mxu0 0.0
      %875 = vmatprep.mubr.f32.mxu0 0.0
      %876 = vmatmul.mubr.f32.gmra.mrb[0].mxu0 %v738
      %v877 = vpop.f32.mrb[0].mxu0
      %v878 = vadd.f32 0.0, %v877
      %v879 = vpop.f32.mrb[0].mxu0
      %880 = vdwg.mxu0
      %v881 = vadd.f32 %v720, %v807
      %v882 = vadd.f32 %v721, %v809
      %v883 = vadd.f32 %v722, %v878
      %s884 = scalar_lea.vmem %s1, 32
      %v885 = vld [vmem:[%s884] sm:$0xff]
      %886 = vrot.lane.b32.xlu0 %v253, 106
      %v887 = vpop.permute.xlu0 %886
      %888 = vrot.lane.b32.xlu0 %v254, 106
      %v889 = vpop.permute.xlu0 %888
      %890 = vrot.lane.b32.xlu0 %v255, 106
      %v891 = vpop.permute.xlu0 %890
      %vm892 = vcmask 867328
      %v893 = vsel %vm892, %v887, %v889
      %v894 = vsel %vm892, %v889, %v891
      %v899 = vsel %vm273, %v885, 0
      %901 = vmatprep.subr.mxu0 %v894
      %902 = vmatpush1.msra.mxu0 %v893
      %903 = vmatprep.subr.mxu0 0.0
      %904 = vmatpush1.msra.mxu0 0.0
      %905 = vmatprep.subr.mxu0 0.0
      %906 = vmatpush1.msra.mxu0 0.0
      %907 = vmatprep.subr.mxu0 0.0
      %908 = vmatpush1.msra.mxu0 0.0
      %909 = vmatprep.subr.mxu0 0.0
      %910 = vmatpush1.msra.mxu0 0.0
      %911 = vmatprep.subr.mxu0 0.0
      %912 = vmatpush1.msra.mxu0 0.0
      %913 = vmatprep.subr.mxu0 0.0
      %914 = vmatpush1.msra.mxu0 0.0
      %915 = vmatprep.subr.mxu0 0.0
      %916 = vmatpush1.msra.mxu0 0.0
      %917 = vmatprep.subr.mxu0 0.0
      %918 = vmatpush1.msra.mxu0 0.0
      %919 = vmatprep.subr.mxu0 0.0
      %920 = vmatpush1.msra.mxu0 0.0
      %921 = vmatprep.subr.mxu0 0.0
      %922 = vmatpush1.msra.mxu0 0.0
      %923 = vmatprep.subr.mxu0 0.0
      %924 = vmatpush1.msra.mxu0 0.0
      %925 = vmatprep.subr.mxu0 0.0
      %926 = vmatpush1.msra.mxu0 0.0
      %927 = vmatprep.subr.mxu0 0.0
      %928 = vmatpush1.msra.mxu0 0.0
      %929 = vmatprep.subr.mxu0 0.0
      %930 = vmatpush1.msra.mxu0 0.0
      %931 = vmatprep.subr.mxu0 0.0
      %932 = vmatpush1.msra.mxu0 0.0
      %933 = vmatprep.subr.mxu0 0.0
      %934 = vmatpush1.msra.mxu0 0.0
      %935 = vmatprep.subr.mxu0 0.0
      %936 = vmatpush1.msra.mxu0 0.0
      %937 = vmatprep.subr.mxu0 0.0
      %938 = vmatpush1.msra.mxu0 0.0
      %939 = vmatprep.subr.mxu0 0.0
      %940 = vmatpush1.msra.mxu0 0.0
      %941 = vmatprep.subr.mxu0 0.0
      %942 = vmatpush1.msra.mxu0 0.0
      %943 = vmatprep.subr.mxu0 0.0
      %944 = vmatpush1.msra.mxu0 0.0
      %945 = vmatprep.subr.mxu0 0.0
      %946 = vmatpush1.msra.mxu0 0.0
      %947 = vmatprep.subr.mxu0 0.0
      %948 = vmatpush1.msra.mxu0 0.0
      %949 = vmatprep.subr.mxu0 0.0
      %950 = vmatpush1.msra.mxu0 0.0
      %951 = vmatprep.subr.mxu0 0.0
      %952 = vmatpush1.msra.mxu0 0.0
      %953 = vmatprep.subr.mxu0 0.0
      %954 = vmatpush1.msra.mxu0 0.0
      %955 = vmatprep.subr.mxu0 0.0
      %956 = vmatpush1.msra.mxu0 0.0
      %957 = vmatprep.subr.mxu0 0.0
      %958 = vmatpush1.msra.mxu0 0.0
      %959 = vmatprep.subr.mxu0 0.0
      %960 = vmatpush1.msra.mxu0 0.0
      %961 = vmatprep.subr.mxu0 0.0
      %962 = vmatpush1.msra.mxu0 0.0
      %963 = vmatprep.subr.mxu0 0.0
      %964 = vmatpush1.msra.mxu0 0.0
      %965 = vmatprep.mubr.f32.mxu0 0.0
      %966 = vmatmul.mubr.f32.gmra.mrb[0].mxu0 %v899
      %v967 = vpop.f32.mrb[0].mxu0
      %v968 = vadd.f32 0.0, %v967
      %v969 = vpop.f32.mrb[0].mxu0
      %v970 = vadd.f32 0.0, %v969
      %971 = vdwg.mxu0
      %972 = vmatprep.subr.mxu0 0.0
      %973 = vmatpush1.msra.mxu0 %v891
      %974 = vmatprep.subr.mxu0 0.0
      %975 = vmatpush1.msra.mxu0 0.0
      %976 = vmatprep.subr.mxu0 0.0
      %977 = vmatpush1.msra.mxu0 0.0
      %978 = vmatprep.subr.mxu0 0.0
      %979 = vmatpush1.msra.mxu0 0.0
      %980 = vmatprep.subr.mxu0 0.0
      %981 = vmatpush1.msra.mxu0 0.0
      %982 = vmatprep.subr.mxu0 0.0
      %983 = vmatpush1.msra.mxu0 0.0
      %984 = vmatprep.subr.mxu0 0.0
      %985 = vmatpush1.msra.mxu0 0.0
      %986 = vmatprep.subr.mxu0 0.0
      %987 = vmatpush1.msra.mxu0 0.0
      %988 = vmatprep.subr.mxu0 0.0
      %989 = vmatpush1.msra.mxu0 0.0
      %990 = vmatprep.subr.mxu0 0.0
      %991 = vmatpush1.msra.mxu0 0.0
      %992 = vmatprep.subr.mxu0 0.0
      %993 = vmatpush1.msra.mxu0 0.0
      %994 = vmatprep.subr.mxu0 0.0
      %995 = vmatpush1.msra.mxu0 0.0
      %996 = vmatprep.subr.mxu0 0.0
      %997 = vmatpush1.msra.mxu0 0.0
      %998 = vmatprep.subr.mxu0 0.0
      %999 = vmatpush1.msra.mxu0 0.0
      %1000 = vmatprep.subr.mxu0 0.0
      %1001 = vmatpush1.msra.mxu0 0.0
      %1002 = vmatprep.subr.mxu0 0.0
      %1003 = vmatpush1.msra.mxu0 0.0
      %1004 = vmatprep.subr.mxu0 0.0
      %1005 = vmatpush1.msra.mxu0 0.0
      %1006 = vmatprep.subr.mxu0 0.0
      %1007 = vmatpush1.msra.mxu0 0.0
      %1008 = vmatprep.subr.mxu0 0.0
      %1009 = vmatpush1.msra.mxu0 0.0
      %1010 = vmatprep.subr.mxu0 0.0
      %1011 = vmatpush1.msra.mxu0 0.0
      %1012 = vmatprep.subr.mxu0 0.0
      %1013 = vmatpush1.msra.mxu0 0.0
      %1014 = vmatprep.subr.mxu0 0.0
      %1015 = vmatpush1.msra.mxu0 0.0
      %1016 = vmatprep.subr.mxu0 0.0
      %1017 = vmatpush1.msra.mxu0 0.0
      %1018 = vmatprep.subr.mxu0 0.0
      %1019 = vmatpush1.msra.mxu0 0.0
      %1020 = vmatprep.subr.mxu0 0.0
      %1021 = vmatpush1.msra.mxu0 0.0
      %1022 = vmatprep.subr.mxu0 0.0
      %1023 = vmatpush1.msra.mxu0 0.0
      %1024 = vmatprep.subr.mxu0 0.0
      %1025 = vmatpush1.msra.mxu0 0.0
      %1026 = vmatprep.subr.mxu0 0.0
      %1027 = vmatpush1.msra.mxu0 0.0
      %1028 = vmatprep.subr.mxu0 0.0
      %1029 = vmatpush1.msra.mxu0 0.0
      %1030 = vmatprep.subr.mxu0 0.0
      %1031 = vmatpush1.msra.mxu0 0.0
      %1032 = vmatprep.subr.mxu0 0.0
      %1033 = vmatpush1.msra.mxu0 0.0
      %1034 = vmatprep.subr.mxu0 0.0
      %1035 = vmatpush1.msra.mxu0 0.0
      %1036 = vmatprep.mubr.f32.mxu0 0.0
      %1037 = vmatmul.mubr.f32.gmra.mrb[0].mxu0 %v899
      %v1038 = vpop.f32.mrb[0].mxu0
      %v1039 = vadd.f32 0.0, %v1038
      %v1040 = vpop.f32.mrb[0].mxu0
      %1041 = vdwg.mxu0
      %v1042 = vadd.f32 %v881, %v968
      %v1043 = vadd.f32 %v882, %v970
      %v1044 = vadd.f32 %v883, %v1039
      %s1045 = scalar_lea.vmem %s1, 40
      %v1046 = vld [vmem:[%s1045] sm:$0xff]
      %1047 = vrot.lane.b32.xlu0 %v253, 105
      %v1048 = vpop.permute.xlu0 %1047
      %1049 = vrot.lane.b32.xlu0 %v254, 105
      %v1050 = vpop.permute.xlu0 %1049
      %1051 = vrot.lane.b32.xlu0 %v255, 105
      %v1052 = vpop.permute.xlu0 %1051
      %vm1053 = vcmask 859136
      %v1054 = vsel %vm1053, %v1048, %v1050
      %v1055 = vsel %vm1053, %v1050, %v1052
      %v1060 = vsel %vm273, %v1046, 0
      %1062 = vmatprep.subr.mxu0 %v1055
      %1063 = vmatpush1.msra.mxu0 %v1054
      %1064 = vmatprep.subr.mxu0 0.0
      %1065 = vmatpush1.msra.mxu0 0.0
      %1066 = vmatprep.subr.mxu0 0.0
      %1067 = vmatpush1.msra.mxu0 0.0
      %1068 = vmatprep.subr.mxu0 0.0
      %1069 = vmatpush1.msra.mxu0 0.0
      %1070 = vmatprep.subr.mxu0 0.0
      %1071 = vmatpush1.msra.mxu0 0.0
      %1072 = vmatprep.subr.mxu0 0.0
      %1073 = vmatpush1.msra.mxu0 0.0
      %1074 = vmatprep.subr.mxu0 0.0
      %1075 = vmatpush1.msra.mxu0 0.0
      %1076 = vmatprep.subr.mxu0 0.0
      %1077 = vmatpush1.msra.mxu0 0.0
      %1078 = vmatprep.subr.mxu0 0.0
      %1079 = vmatpush1.msra.mxu0 0.0
      %1080 = vmatprep.subr.mxu0 0.0
      %1081 = vmatpush1.msra.mxu0 0.0
      %1082 = vmatprep.subr.mxu0 0.0
      %1083 = vmatpush1.msra.mxu0 0.0
      %1084 = vmatprep.subr.mxu0 0.0
      %1085 = vmatpush1.msra.mxu0 0.0
      %1086 = vmatprep.subr.mxu0 0.0
      %1087 = vmatpush1.msra.mxu0 0.0
      %1088 = vmatprep.subr.mxu0 0.0
      %1089 = vmatpush1.msra.mxu0 0.0
      %1090 = vmatprep.subr.mxu0 0.0
      %1091 = vmatpush1.msra.mxu0 0.0
      %1092 = vmatprep.subr.mxu0 0.0
      %1093 = vmatpush1.msra.mxu0 0.0
      %1094 = vmatprep.subr.mxu0 0.0
      %1095 = vmatpush1.msra.mxu0 0.0
      %1096 = vmatprep.subr.mxu0 0.0
      %1097 = vmatpush1.msra.mxu0 0.0
      %1098 = vmatprep.subr.mxu0 0.0
      %1099 = vmatpush1.msra.mxu0 0.0
      %1100 = vmatprep.subr.mxu0 0.0
      %1101 = vmatpush1.msra.mxu0 0.0
      %1102 = vmatprep.subr.mxu0 0.0
      %1103 = vmatpush1.msra.mxu0 0.0
      %1104 = vmatprep.subr.mxu0 0.0
      %1105 = vmatpush1.msra.mxu0 0.0
      %1106 = vmatprep.subr.mxu0 0.0
      %1107 = vmatpush1.msra.mxu0 0.0
      %1108 = vmatprep.subr.mxu0 0.0
      %1109 = vmatpush1.msra.mxu0 0.0
      %1110 = vmatprep.subr.mxu0 0.0
      %1111 = vmatpush1.msra.mxu0 0.0
      %1112 = vmatprep.subr.mxu0 0.0
      %1113 = vmatpush1.msra.mxu0 0.0
      %1114 = vmatprep.subr.mxu0 0.0
      %1115 = vmatpush1.msra.mxu0 0.0
      %1116 = vmatprep.subr.mxu0 0.0
      %1117 = vmatpush1.msra.mxu0 0.0
      %1118 = vmatprep.subr.mxu0 0.0
      %1119 = vmatpush1.msra.mxu0 0.0
      %1120 = vmatprep.subr.mxu0 0.0
      %1121 = vmatpush1.msra.mxu0 0.0
      %1122 = vmatprep.subr.mxu0 0.0
      %1123 = vmatpush1.msra.mxu0 0.0
      %1124 = vmatprep.subr.mxu0 0.0
      %1125 = vmatpush1.msra.mxu0 0.0
      %1126 = vmatprep.mubr.f32.mxu0 0.0
      %1127 = vmatmul.mubr.f32.gmra.mrb[0].mxu0 %v1060
      %v1128 = vpop.f32.mrb[0].mxu0
      %v1129 = vadd.f32 0.0, %v1128
      %v1130 = vpop.f32.mrb[0].mxu0
      %v1131 = vadd.f32 0.0, %v1130
      %1132 = vdwg.mxu0
      %1133 = vmatprep.subr.mxu0 0.0
      %1134 = vmatpush1.msra.mxu0 %v1052
      %1135 = vmatprep.subr.mxu0 0.0
      %1136 = vmatpush1.msra.mxu0 0.0
      %1137 = vmatprep.subr.mxu0 0.0
      %1138 = vmatpush1.msra.mxu0 0.0
      %1139 = vmatprep.subr.mxu0 0.0
      %1140 = vmatpush1.msra.mxu0 0.0
      %1141 = vmatprep.subr.mxu0 0.0
      %1142 = vmatpush1.msra.mxu0 0.0
      %1143 = vmatprep.subr.mxu0 0.0
      %1144 = vmatpush1.msra.mxu0 0.0
      %1145 = vmatprep.subr.mxu0 0.0
      %1146 = vmatpush1.msra.mxu0 0.0
      %1147 = vmatprep.subr.mxu0 0.0
      %1148 = vmatpush1.msra.mxu0 0.0
      %1149 = vmatprep.subr.mxu0 0.0
      %1150 = vmatpush1.msra.mxu0 0.0
      %1151 = vmatprep.subr.mxu0 0.0
      %1152 = vmatpush1.msra.mxu0 0.0
      %1153 = vmatprep.subr.mxu0 0.0
      %1154 = vmatpush1.msra.mxu0 0.0
      %1155 = vmatprep.subr.mxu0 0.0
      %1156 = vmatpush1.msra.mxu0 0.0
      %1157 = vmatprep.subr.mxu0 0.0
      %1158 = vmatpush1.msra.mxu0 0.0
      %1159 = vmatprep.subr.mxu0 0.0
      %1160 = vmatpush1.msra.mxu0 0.0
      %1161 = vmatprep.subr.mxu0 0.0
      %1162 = vmatpush1.msra.mxu0 0.0
      %1163 = vmatprep.subr.mxu0 0.0
      %1164 = vmatpush1.msra.mxu0 0.0
      %1165 = vmatprep.subr.mxu0 0.0
      %1166 = vmatpush1.msra.mxu0 0.0
      %1167 = vmatprep.subr.mxu0 0.0
      %1168 = vmatpush1.msra.mxu0 0.0
      %1169 = vmatprep.subr.mxu0 0.0
      %1170 = vmatpush1.msra.mxu0 0.0
      %1171 = vmatprep.subr.mxu0 0.0
      %1172 = vmatpush1.msra.mxu0 0.0
      %1173 = vmatprep.subr.mxu0 0.0
      %1174 = vmatpush1.msra.mxu0 0.0
      %1175 = vmatprep.subr.mxu0 0.0
      %1176 = vmatpush1.msra.mxu0 0.0
      %1177 = vmatprep.subr.mxu0 0.0
      %1178 = vmatpush1.msra.mxu0 0.0
      %1179 = vmatprep.subr.mxu0 0.0
      %1180 = vmatpush1.msra.mxu0 0.0
      %1181 = vmatprep.subr.mxu0 0.0
      %1182 = vmatpush1.msra.mxu0 0.0
      %1183 = vmatprep.subr.mxu0 0.0
      %1184 = vmatpush1.msra.mxu0 0.0
      %1185 = vmatprep.subr.mxu0 0.0
      %1186 = vmatpush1.msra.mxu0 0.0
      %1187 = vmatprep.subr.mxu0 0.0
      %1188 = vmatpush1.msra.mxu0 0.0
      %1189 = vmatprep.subr.mxu0 0.0
      %1190 = vmatpush1.msra.mxu0 0.0
      %1191 = vmatprep.subr.mxu0 0.0
      %1192 = vmatpush1.msra.mxu0 0.0
      %1193 = vmatprep.subr.mxu0 0.0
      %1194 = vmatpush1.msra.mxu0 0.0
      %1195 = vmatprep.subr.mxu0 0.0
      %1196 = vmatpush1.msra.mxu0 0.0
      %1197 = vmatprep.mubr.f32.mxu0 0.0
      %1198 = vmatmul.mubr.f32.gmra.mrb[0].mxu0 %v1060
      %v1199 = vpop.f32.mrb[0].mxu0
      %v1200 = vadd.f32 0.0, %v1199
      %v1201 = vpop.f32.mrb[0].mxu0
      %1202 = vdwg.mxu0
      %v1203 = vadd.f32 %v1042, %v1129
      %v1204 = vadd.f32 %v1043, %v1131
      %v1205 = vadd.f32 %v1044, %v1200
      %s1206 = scalar_lea.vmem %s1, 48
      %v1207 = vld [vmem:[%s1206] sm:$0xff]
      %v1208 = vld [vmem:[%s246] sm:$0xff]
      %v1209 = vld [vmem:[%s246 + $0x8] sm:$0xff]
      %v1210 = vld [vmem:[%s246 + $0x10] sm:$0xff]
      %v1211 = vld [vmem:[%s246 + $0x18] sm:$0xff]
      %1216 = vrot.lane.b32.xlu0 %v1208, 86
      %v1217 = vpop.permute.xlu0 %1216
      %1218 = vrot.lane.b32.xlu0 %v1209, 86
      %v1219 = vpop.permute.xlu0 %1218
      %1220 = vrot.lane.b32.xlu0 %v1210, 86
      %v1221 = vpop.permute.xlu0 %1220
      %1222 = vrot.lane.b32.xlu0 %v1211, 86
      %v1223 = vpop.permute.xlu0 %1222
      %vm1224 = vcmask 703488
      %v1225 = vsel %vm1224, %v1217, %v1219
      %v1226 = vsel %vm1224, %v1219, %v1221
      %v1227 = vsel %vm1224, %v1221, %v1223
      %v1232 = vsel %vm273, %v1207, 0
      %1234 = vmatprep.subr.mxu0 %v1226
      %1235 = vmatpush1.msra.mxu0 %v1225
      %1236 = vmatprep.subr.mxu0 0.0
      %1237 = vmatpush1.msra.mxu0 0.0
      %1238 = vmatprep.subr.mxu0 0.0
      %1239 = vmatpush1.msra.mxu0 0.0
      %1240 = vmatprep.subr.mxu0 0.0
      %1241 = vmatpush1.msra.mxu0 0.0
      %1242 = vmatprep.subr.mxu0 0.0
      %1243 = vmatpush1.msra.mxu0 0.0
      %1244 = vmatprep.subr.mxu0 0.0
      %1245 = vmatpush1.msra.mxu0 0.0
      %1246 = vmatprep.subr.mxu0 0.0
      %1247 = vmatpush1.msra.mxu0 0.0
      %1248 = vmatprep.subr.mxu0 0.0
      %1249 = vmatpush1.msra.mxu0 0.0
      %1250 = vmatprep.subr.mxu0 0.0
      %1251 = vmatpush1.msra.mxu0 0.0
      %1252 = vmatprep.subr.mxu0 0.0
      %1253 = vmatpush1.msra.mxu0 0.0
      %1254 = vmatprep.subr.mxu0 0.0
      %1255 = vmatpush1.msra.mxu0 0.0
      %1256 = vmatprep.subr.mxu0 0.0
      %1257 = vmatpush1.msra.mxu0 0.0
      %1258 = vmatprep.subr.mxu0 0.0
      %1259 = vmatpush1.msra.mxu0 0.0
      %1260 = vmatprep.subr.mxu0 0.0
      %1261 = vmatpush1.msra.mxu0 0.0
      %1262 = vmatprep.subr.mxu0 0.0
      %1263 = vmatpush1.msra.mxu0 0.0
      %1264 = vmatprep.subr.mxu0 0.0
      %1265 = vmatpush1.msra.mxu0 0.0
      %1266 = vmatprep.subr.mxu0 0.0
      %1267 = vmatpush1.msra.mxu0 0.0
      %1268 = vmatprep.subr.mxu0 0.0
      %1269 = vmatpush1.msra.mxu0 0.0
      %1270 = vmatprep.subr.mxu0 0.0
      %1271 = vmatpush1.msra.mxu0 0.0
      %1272 = vmatprep.subr.mxu0 0.0
      %1273 = vmatpush1.msra.mxu0 0.0
      %1274 = vmatprep.subr.mxu0 0.0
      %1275 = vmatpush1.msra.mxu0 0.0
      %1276 = vmatprep.subr.mxu0 0.0
      %1277 = vmatpush1.msra.mxu0 0.0
      %1278 = vmatprep.subr.mxu0 0.0
      %1279 = vmatpush1.msra.mxu0 0.0
      %1280 = vmatprep.subr.mxu0 0.0
      %1281 = vmatpush1.msra.mxu0 0.0
      %1282 = vmatprep.subr.mxu0 0.0
      %1283 = vmatpush1.msra.mxu0 0.0
      %1284 = vmatprep.subr.mxu0 0.0
      %1285 = vmatpush1.msra.mxu0 0.0
      %1286 = vmatprep.subr.mxu0 0.0
      %1287 = vmatpush1.msra.mxu0 0.0
      %1288 = vmatprep.subr.mxu0 0.0
      %1289 = vmatpush1.msra.mxu0 0.0
      %1290 = vmatprep.subr.mxu0 0.0
      %1291 = vmatpush1.msra.mxu0 0.0
      %1292 = vmatprep.subr.mxu0 0.0
      %1293 = vmatpush1.msra.mxu0 0.0
      %1294 = vmatprep.subr.mxu0 0.0
      %1295 = vmatpush1.msra.mxu0 0.0
      %1296 = vmatprep.subr.mxu0 0.0
      %1297 = vmatpush1.msra.mxu0 0.0
      %1298 = vmatprep.mubr.f32.mxu0 0.0
      %1299 = vmatmul.mubr.f32.gmra.mrb[0].mxu0 %v1232
      %v1300 = vpop.f32.mrb[0].mxu0
      %v1301 = vadd.f32 0.0, %v1300
      %v1302 = vpop.f32.mrb[0].mxu0
      %v1303 = vadd.f32 0.0, %v1302
      %1304 = vdwg.mxu0
      %1305 = vmatprep.subr.mxu0 0.0
      %1306 = vmatpush1.msra.mxu0 %v1227
      %1307 = vmatprep.subr.mxu0 0.0
      %1308 = vmatpush1.msra.mxu0 0.0
      %1309 = vmatprep.subr.mxu0 0.0
      %1310 = vmatpush1.msra.mxu0 0.0
      %1311 = vmatprep.subr.mxu0 0.0
      %1312 = vmatpush1.msra.mxu0 0.0
      %1313 = vmatprep.subr.mxu0 0.0
      %1314 = vmatpush1.msra.mxu0 0.0
      %1315 = vmatprep.subr.mxu0 0.0
      %1316 = vmatpush1.msra.mxu0 0.0
      %1317 = vmatprep.subr.mxu0 0.0
      %1318 = vmatpush1.msra.mxu0 0.0
      %1319 = vmatprep.subr.mxu0 0.0
      %1320 = vmatpush1.msra.mxu0 0.0
      %1321 = vmatprep.subr.mxu0 0.0
      %1322 = vmatpush1.msra.mxu0 0.0
      %1323 = vmatprep.subr.mxu0 0.0
      %1324 = vmatpush1.msra.mxu0 0.0
      %1325 = vmatprep.subr.mxu0 0.0
      %1326 = vmatpush1.msra.mxu0 0.0
      %1327 = vmatprep.subr.mxu0 0.0
      %1328 = vmatpush1.msra.mxu0 0.0
      %1329 = vmatprep.subr.mxu0 0.0
      %1330 = vmatpush1.msra.mxu0 0.0
      %1331 = vmatprep.subr.mxu0 0.0
      %1332 = vmatpush1.msra.mxu0 0.0
      %1333 = vmatprep.subr.mxu0 0.0
      %1334 = vmatpush1.msra.mxu0 0.0
      %1335 = vmatprep.subr.mxu0 0.0
      %1336 = vmatpush1.msra.mxu0 0.0
      %1337 = vmatprep.subr.mxu0 0.0
      %1338 = vmatpush1.msra.mxu0 0.0
      %1339 = vmatprep.subr.mxu0 0.0
      %1340 = vmatpush1.msra.mxu0 0.0
      %1341 = vmatprep.subr.mxu0 0.0
      %1342 = vmatpush1.msra.mxu0 0.0
      %1343 = vmatprep.subr.mxu0 0.0
      %1344 = vmatpush1.msra.mxu0 0.0
      %1345 = vmatprep.subr.mxu0 0.0
      %1346 = vmatpush1.msra.mxu0 0.0
      %1347 = vmatprep.subr.mxu0 0.0
      %1348 = vmatpush1.msra.mxu0 0.0
      %1349 = vmatprep.subr.mxu0 0.0
      %1350 = vmatpush1.msra.mxu0 0.0
      %1351 = vmatprep.subr.mxu0 0.0
      %1352 = vmatpush1.msra.mxu0 0.0
      %1353 = vmatprep.subr.mxu0 0.0
      %1354 = vmatpush1.msra.mxu0 0.0
      %1355 = vmatprep.subr.mxu0 0.0
      %1356 = vmatpush1.msra.mxu0 0.0
      %1357 = vmatprep.subr.mxu0 0.0
      %1358 = vmatpush1.msra.mxu0 0.0
      %1359 = vmatprep.subr.mxu0 0.0
      %1360 = vmatpush1.msra.mxu0 0.0
      %1361 = vmatprep.subr.mxu0 0.0
      %1362 = vmatpush1.msra.mxu0 0.0
      %1363 = vmatprep.subr.mxu0 0.0
      %1364 = vmatpush1.msra.mxu0 0.0
      %1365 = vmatprep.subr.mxu0 0.0
      %1366 = vmatpush1.msra.mxu0 0.0
      %1367 = vmatprep.subr.mxu0 0.0
      %1368 = vmatpush1.msra.mxu0 0.0
      %1369 = vmatprep.mubr.f32.mxu0 0.0
      %1370 = vmatmul.mubr.f32.gmra.mrb[0].mxu0 %v1232
      %v1371 = vpop.f32.mrb[0].mxu0
      %v1372 = vadd.f32 0.0, %v1371
      %v1373 = vpop.f32.mrb[0].mxu0
      %1374 = vdwg.mxu0
      %v1375 = vadd.f32 %v1203, %v1301
      %v1376 = vadd.f32 %v1204, %v1303
      %v1377 = vadd.f32 %v1205, %v1372
      %s1378 = scalar_lea.vmem %s1, 56
      %v1379 = vld [vmem:[%s1378] sm:$0xff]
      %1380 = vrot.lane.b32.xlu0 %v1208, 85
      %v1381 = vpop.permute.xlu0 %1380
      %1382 = vrot.lane.b32.xlu0 %v1209, 85
      %v1383 = vpop.permute.xlu0 %1382
      %1384 = vrot.lane.b32.xlu0 %v1210, 85
      %v1385 = vpop.permute.xlu0 %1384
      %1386 = vrot.lane.b32.xlu0 %v1211, 85
      %v1387 = vpop.permute.xlu0 %1386
      %vm1388 = vcmask 695296
      %v1389 = vsel %vm1388, %v1381, %v1383
      %v1390 = vsel %vm1388, %v1383, %v1385
      %v1391 = vsel %vm1388, %v1385, %v1387
      %v1396 = vsel %vm273, %v1379, 0
      %1398 = vmatprep.subr.mxu0 %v1390
      %1399 = vmatpush1.msra.mxu0 %v1389
      %1400 = vmatprep.subr.mxu0 0.0
      %1401 = vmatpush1.msra.mxu0 0.0
      %1402 = vmatprep.subr.mxu0 0.0
      %1403 = vmatpush1.msra.mxu0 0.0
      %1404 = vmatprep.subr.mxu0 0.0
      %1405 = vmatpush1.msra.mxu0 0.0
      %1406 = vmatprep.subr.mxu0 0.0
      %1407 = vmatpush1.msra.mxu0 0.0
      %1408 = vmatprep.subr.mxu0 0.0
      %1409 = vmatpush1.msra.mxu0 0.0
      %1410 = vmatprep.subr.mxu0 0.0
      %1411 = vmatpush1.msra.mxu0 0.0
      %1412 = vmatprep.subr.mxu0 0.0
      %1413 = vmatpush1.msra.mxu0 0.0
      %1414 = vmatprep.subr.mxu0 0.0
      %1415 = vmatpush1.msra.mxu0 0.0
      %1416 = vmatprep.subr.mxu0 0.0
      %1417 = vmatpush1.msra.mxu0 0.0
      %1418 = vmatprep.subr.mxu0 0.0
      %1419 = vmatpush1.msra.mxu0 0.0
      %1420 = vmatprep.subr.mxu0 0.0
      %1421 = vmatpush1.msra.mxu0 0.0
      %1422 = vmatprep.subr.mxu0 0.0
      %1423 = vmatpush1.msra.mxu0 0.0
      %1424 = vmatprep.subr.mxu0 0.0
      %1425 = vmatpush1.msra.mxu0 0.0
      %1426 = vmatprep.subr.mxu0 0.0
      %1427 = vmatpush1.msra.mxu0 0.0
      %1428 = vmatprep.subr.mxu0 0.0
      %1429 = vmatpush1.msra.mxu0 0.0
      %1430 = vmatprep.subr.mxu0 0.0
      %1431 = vmatpush1.msra.mxu0 0.0
      %1432 = vmatprep.subr.mxu0 0.0
      %1433 = vmatpush1.msra.mxu0 0.0
      %1434 = vmatprep.subr.mxu0 0.0
      %1435 = vmatpush1.msra.mxu0 0.0
      %1436 = vmatprep.subr.mxu0 0.0
      %1437 = vmatpush1.msra.mxu0 0.0
      %1438 = vmatprep.subr.mxu0 0.0
      %1439 = vmatpush1.msra.mxu0 0.0
      %1440 = vmatprep.subr.mxu0 0.0
      %1441 = vmatpush1.msra.mxu0 0.0
      %1442 = vmatprep.subr.mxu0 0.0
      %1443 = vmatpush1.msra.mxu0 0.0
      %1444 = vmatprep.subr.mxu0 0.0
      %1445 = vmatpush1.msra.mxu0 0.0
      %1446 = vmatprep.subr.mxu0 0.0
      %1447 = vmatpush1.msra.mxu0 0.0
      %1448 = vmatprep.subr.mxu0 0.0
      %1449 = vmatpush1.msra.mxu0 0.0
      %1450 = vmatprep.subr.mxu0 0.0
      %1451 = vmatpush1.msra.mxu0 0.0
      %1452 = vmatprep.subr.mxu0 0.0
      %1453 = vmatpush1.msra.mxu0 0.0
      %1454 = vmatprep.subr.mxu0 0.0
      %1455 = vmatpush1.msra.mxu0 0.0
      %1456 = vmatprep.subr.mxu0 0.0
      %1457 = vmatpush1.msra.mxu0 0.0
      %1458 = vmatprep.subr.mxu0 0.0
      %1459 = vmatpush1.msra.mxu0 0.0
      %1460 = vmatprep.subr.mxu0 0.0
      %1461 = vmatpush1.msra.mxu0 0.0
      %1462 = vmatprep.mubr.f32.mxu0 0.0
      %1463 = vmatmul.mubr.f32.gmra.mrb[0].mxu0 %v1396
      %v1464 = vpop.f32.mrb[0].mxu0
      %v1465 = vadd.f32 0.0, %v1464
      %v1466 = vpop.f32.mrb[0].mxu0
      %v1467 = vadd.f32 0.0, %v1466
      %1468 = vdwg.mxu0
      %1469 = vmatprep.subr.mxu0 0.0
      %1470 = vmatpush1.msra.mxu0 %v1391
      %1471 = vmatprep.subr.mxu0 0.0
      %1472 = vmatpush1.msra.mxu0 0.0
      %1473 = vmatprep.subr.mxu0 0.0
      %1474 = vmatpush1.msra.mxu0 0.0
      %1475 = vmatprep.subr.mxu0 0.0
      %1476 = vmatpush1.msra.mxu0 0.0
      %1477 = vmatprep.subr.mxu0 0.0
      %1478 = vmatpush1.msra.mxu0 0.0
      %1479 = vmatprep.subr.mxu0 0.0
      %1480 = vmatpush1.msra.mxu0 0.0
      %1481 = vmatprep.subr.mxu0 0.0
      %1482 = vmatpush1.msra.mxu0 0.0
      %1483 = vmatprep.subr.mxu0 0.0
      %1484 = vmatpush1.msra.mxu0 0.0
      %1485 = vmatprep.subr.mxu0 0.0
      %1486 = vmatpush1.msra.mxu0 0.0
      %1487 = vmatprep.subr.mxu0 0.0
      %1488 = vmatpush1.msra.mxu0 0.0
      %1489 = vmatprep.subr.mxu0 0.0
      %1490 = vmatpush1.msra.mxu0 0.0
      %1491 = vmatprep.subr.mxu0 0.0
      %1492 = vmatpush1.msra.mxu0 0.0
      %1493 = vmatprep.subr.mxu0 0.0
      %1494 = vmatpush1.msra.mxu0 0.0
      %1495 = vmatprep.subr.mxu0 0.0
      %1496 = vmatpush1.msra.mxu0 0.0
      %1497 = vmatprep.subr.mxu0 0.0
      %1498 = vmatpush1.msra.mxu0 0.0
      %1499 = vmatprep.subr.mxu0 0.0
      %1500 = vmatpush1.msra.mxu0 0.0
      %1501 = vmatprep.subr.mxu0 0.0
      %1502 = vmatpush1.msra.mxu0 0.0
      %1503 = vmatprep.subr.mxu0 0.0
      %1504 = vmatpush1.msra.mxu0 0.0
      %1505 = vmatprep.subr.mxu0 0.0
      %1506 = vmatpush1.msra.mxu0 0.0
      %1507 = vmatprep.subr.mxu0 0.0
      %1508 = vmatpush1.msra.mxu0 0.0
      %1509 = vmatprep.subr.mxu0 0.0
      %1510 = vmatpush1.msra.mxu0 0.0
      %1511 = vmatprep.subr.mxu0 0.0
      %1512 = vmatpush1.msra.mxu0 0.0
      %1513 = vmatprep.subr.mxu0 0.0
      %1514 = vmatpush1.msra.mxu0 0.0
      %1515 = vmatprep.subr.mxu0 0.0
      %1516 = vmatpush1.msra.mxu0 0.0
      %1517 = vmatprep.subr.mxu0 0.0
      %1518 = vmatpush1.msra.mxu0 0.0
      %1519 = vmatprep.subr.mxu0 0.0
      %1520 = vmatpush1.msra.mxu0 0.0
      %1521 = vmatprep.subr.mxu0 0.0
      %1522 = vmatpush1.msra.mxu0 0.0
      %1523 = vmatprep.subr.mxu0 0.0
      %1524 = vmatpush1.msra.mxu0 0.0
      %1525 = vmatprep.subr.mxu0 0.0
      %1526 = vmatpush1.msra.mxu0 0.0
      %1527 = vmatprep.subr.mxu0 0.0
      %1528 = vmatpush1.msra.mxu0 0.0
      %1529 = vmatprep.subr.mxu0 0.0
      %1530 = vmatpush1.msra.mxu0 0.0
      %1531 = vmatprep.subr.mxu0 0.0
      %1532 = vmatpush1.msra.mxu0 0.0
      %1533 = vmatprep.mubr.f32.mxu0 0.0
      %1534 = vmatmul.mubr.f32.gmra.mrb[0].mxu0 %v1396
      %v1535 = vpop.f32.mrb[0].mxu0
      %v1536 = vadd.f32 0.0, %v1535
      %v1537 = vpop.f32.mrb[0].mxu0
      %1538 = vdwg.mxu0
      %v1539 = vadd.f32 %v1375, %v1465
      %v1540 = vadd.f32 %v1376, %v1467
      %v1541 = vadd.f32 %v1377, %v1536
      %s1542 = scalar_lea.vmem %s1, 64
      %v1543 = vld [vmem:[%s1542] sm:$0xff]
      %1544 = vrot.lane.b32.xlu0 %v1208, 84
      %v1545 = vpop.permute.xlu0 %1544
      %1546 = vrot.lane.b32.xlu0 %v1209, 84
      %v1547 = vpop.permute.xlu0 %1546
      %1548 = vrot.lane.b32.xlu0 %v1210, 84
      %v1549 = vpop.permute.xlu0 %1548
      %1550 = vrot.lane.b32.xlu0 %v1211, 84
      %v1551 = vpop.permute.xlu0 %1550
      %vm1552 = vcmask 687104
      %v1553 = vsel %vm1552, %v1545, %v1547
      %v1554 = vsel %vm1552, %v1547, %v1549
      %v1555 = vsel %vm1552, %v1549, %v1551
      %v1560 = vsel %vm273, %v1543, 0
      %1562 = vmatprep.subr.mxu0 %v1554
      %1563 = vmatpush1.msra.mxu0 %v1553
      %1564 = vmatprep.subr.mxu0 0.0
      %1565 = vmatpush1.msra.mxu0 0.0
      %1566 = vmatprep.subr.mxu0 0.0
      %1567 = vmatpush1.msra.mxu0 0.0
      %1568 = vmatprep.subr.mxu0 0.0
      %1569 = vmatpush1.msra.mxu0 0.0
      %1570 = vmatprep.subr.mxu0 0.0
      %1571 = vmatpush1.msra.mxu0 0.0
      %1572 = vmatprep.subr.mxu0 0.0
      %1573 = vmatpush1.msra.mxu0 0.0
      %1574 = vmatprep.subr.mxu0 0.0
      %1575 = vmatpush1.msra.mxu0 0.0
      %1576 = vmatprep.subr.mxu0 0.0
      %1577 = vmatpush1.msra.mxu0 0.0
      %1578 = vmatprep.subr.mxu0 0.0
      %1579 = vmatpush1.msra.mxu0 0.0
      %1580 = vmatprep.subr.mxu0 0.0
      %1581 = vmatpush1.msra.mxu0 0.0
      %1582 = vmatprep.subr.mxu0 0.0
      %1583 = vmatpush1.msra.mxu0 0.0
      %1584 = vmatprep.subr.mxu0 0.0
      %1585 = vmatpush1.msra.mxu0 0.0
      %1586 = vmatprep.subr.mxu0 0.0
      %1587 = vmatpush1.msra.mxu0 0.0
      %1588 = vmatprep.subr.mxu0 0.0
      %1589 = vmatpush1.msra.mxu0 0.0
      %1590 = vmatprep.subr.mxu0 0.0
      %1591 = vmatpush1.msra.mxu0 0.0
      %1592 = vmatprep.subr.mxu0 0.0
      %1593 = vmatpush1.msra.mxu0 0.0
      %1594 = vmatprep.subr.mxu0 0.0
      %1595 = vmatpush1.msra.mxu0 0.0
      %1596 = vmatprep.subr.mxu0 0.0
      %1597 = vmatpush1.msra.mxu0 0.0
      %1598 = vmatprep.subr.mxu0 0.0
      %1599 = vmatpush1.msra.mxu0 0.0
      %1600 = vmatprep.subr.mxu0 0.0
      %1601 = vmatpush1.msra.mxu0 0.0
      %1602 = vmatprep.subr.mxu0 0.0
      %1603 = vmatpush1.msra.mxu0 0.0
      %1604 = vmatprep.subr.mxu0 0.0
      %1605 = vmatpush1.msra.mxu0 0.0
      %1606 = vmatprep.subr.mxu0 0.0
      %1607 = vmatpush1.msra.mxu0 0.0
      %1608 = vmatprep.subr.mxu0 0.0
      %1609 = vmatpush1.msra.mxu0 0.0
      %1610 = vmatprep.subr.mxu0 0.0
      %1611 = vmatpush1.msra.mxu0 0.0
      %1612 = vmatprep.subr.mxu0 0.0
      %1613 = vmatpush1.msra.mxu0 0.0
      %1614 = vmatprep.subr.mxu0 0.0
      %1615 = vmatpush1.msra.mxu0 0.0
      %1616 = vmatprep.subr.mxu0 0.0
      %1617 = vmatpush1.msra.mxu0 0.0
      %1618 = vmatprep.subr.mxu0 0.0
      %1619 = vmatpush1.msra.mxu0 0.0
      %1620 = vmatprep.subr.mxu0 0.0
      %1621 = vmatpush1.msra.mxu0 0.0
      %1622 = vmatprep.subr.mxu0 0.0
      %1623 = vmatpush1.msra.mxu0 0.0
      %1624 = vmatprep.subr.mxu0 0.0
      %1625 = vmatpush1.msra.mxu0 0.0
      %1626 = vmatprep.mubr.f32.mxu0 0.0
      %1627 = vmatmul.mubr.f32.gmra.mrb[0].mxu0 %v1560
      %v1628 = vpop.f32.mrb[0].mxu0
      %v1629 = vadd.f32 0.0, %v1628
      %v1630 = vpop.f32.mrb[0].mxu0
      %v1631 = vadd.f32 0.0, %v1630
      %1632 = vdwg.mxu0
      %1633 = vmatprep.subr.mxu0 0.0
      %1634 = vmatpush1.msra.mxu0 %v1555
      %1635 = vmatprep.subr.mxu0 0.0
      %1636 = vmatpush1.msra.mxu0 0.0
      %1637 = vmatprep.subr.mxu0 0.0
      %1638 = vmatpush1.msra.mxu0 0.0
      %1639 = vmatprep.subr.mxu0 0.0
      %1640 = vmatpush1.msra.mxu0 0.0
      %1641 = vmatprep.subr.mxu0 0.0
      %1642 = vmatpush1.msra.mxu0 0.0
      %1643 = vmatprep.subr.mxu0 0.0
      %1644 = vmatpush1.msra.mxu0 0.0
      %1645 = vmatprep.subr.mxu0 0.0
      %1646 = vmatpush1.msra.mxu0 0.0
      %1647 = vmatprep.subr.mxu0 0.0
      %1648 = vmatpush1.msra.mxu0 0.0
      %1649 = vmatprep.subr.mxu0 0.0
      %1650 = vmatpush1.msra.mxu0 0.0
      %1651 = vmatprep.subr.mxu0 0.0
      %1652 = vmatpush1.msra.mxu0 0.0
      %1653 = vmatprep.subr.mxu0 0.0
      %1654 = vmatpush1.msra.mxu0 0.0
      %1655 = vmatprep.subr.mxu0 0.0
      %1656 = vmatpush1.msra.mxu0 0.0
      %1657 = vmatprep.subr.mxu0 0.0
      %1658 = vmatpush1.msra.mxu0 0.0
      %1659 = vmatprep.subr.mxu0 0.0
      %1660 = vmatpush1.msra.mxu0 0.0
      %1661 = vmatprep.subr.mxu0 0.0
      %1662 = vmatpush1.msra.mxu0 0.0
      %1663 = vmatprep.subr.mxu0 0.0
      %1664 = vmatpush1.msra.mxu0 0.0
      %1665 = vmatprep.subr.mxu0 0.0
      %1666 = vmatpush1.msra.mxu0 0.0
      %1667 = vmatprep.subr.mxu0 0.0
      %1668 = vmatpush1.msra.mxu0 0.0
      %1669 = vmatprep.subr.mxu0 0.0
      %1670 = vmatpush1.msra.mxu0 0.0
      %1671 = vmatprep.subr.mxu0 0.0
      %1672 = vmatpush1.msra.mxu0 0.0
      %1673 = vmatprep.subr.mxu0 0.0
      %1674 = vmatpush1.msra.mxu0 0.0
      %1675 = vmatprep.subr.mxu0 0.0
      %1676 = vmatpush1.msra.mxu0 0.0
      %1677 = vmatprep.subr.mxu0 0.0
      %1678 = vmatpush1.msra.mxu0 0.0
      %1679 = vmatprep.subr.mxu0 0.0
      %1680 = vmatpush1.msra.mxu0 0.0
      %1681 = vmatprep.subr.mxu0 0.0
      %1682 = vmatpush1.msra.mxu0 0.0
      %1683 = vmatprep.subr.mxu0 0.0
      %1684 = vmatpush1.msra.mxu0 0.0
      %1685 = vmatprep.subr.mxu0 0.0
      %1686 = vmatpush1.msra.mxu0 0.0
      %1687 = vmatprep.subr.mxu0 0.0
      %1688 = vmatpush1.msra.mxu0 0.0
      %1689 = vmatprep.subr.mxu0 0.0
      %1690 = vmatpush1.msra.mxu0 0.0
      %1691 = vmatprep.subr.mxu0 0.0
      %1692 = vmatpush1.msra.mxu0 0.0
      %1693 = vmatprep.subr.mxu0 0.0
      %1694 = vmatpush1.msra.mxu0 0.0
      %1695 = vmatprep.subr.mxu0 0.0
      %1696 = vmatpush1.msra.mxu0 0.0
      %1697 = vmatprep.mubr.f32.mxu0 0.0
      %1698 = vmatmul.mubr.f32.gmra.mrb[0].mxu0 %v1560
      %v1699 = vpop.f32.mrb[0].mxu0
      %v1700 = vadd.f32 0.0, %v1699
      %v1701 = vpop.f32.mrb[0].mxu0
      %1702 = vdwg.mxu0
      %v1703 = vadd.f32 %v1539, %v1629
      %v1704 = vadd.f32 %v1540, %v1631
      %v1705 = vadd.f32 %v1541, %v1700
      %v1706 = vld [vmem:[%s2] sm:$0xff]
      %1708 = vset.pattern.permute.xlu0 0
      %1709 = vperm.xlu0 %1708, %v1706
      %v1710 = vpop.permute.xlu0 %1709
      %v1712 = vadd.f32 %v1703, %v1710
      %v1713 = vadd.f32 %v1704, %v1710
      %v1714 = vadd.f32 %v1705, %v1710
      %v1715 = vmax.f32 %v1712, 0.0
      %v1716 = vmax.f32 %v1713, 0.0
      %v1717 = vmax.f32 %v1714, 0.0
      %v1718 = vld [vmem:[%s5] sm:$0x7]
      %v1720 = vlaneseq
      %v1721 = vshrl.u32 %v1720, 7
      %v1722 = vsub.s32 0, %v1721
      %v1723 = vrot.slane %v1718, %v1722
      %v1724 = vlaneseq
      %v1725 = vshrl.u32 %v1724, 7
      %v1726 = vsub.s32 1, %v1725
      %v1727 = vrot.slane %v1718, %v1726
      %v1728 = vlaneseq
      %v1729 = vshrl.u32 %v1728, 7
      %v1730 = vsub.s32 2, %v1729
      %v1731 = vrot.slane %v1718, %v1730
      %v1735 = vmul.f32 %v1715, %v1723
      %v1736 = vmul.f32 %v1716, %v1727
      %v1737 = vmul.f32 %v1717, %v1731
      %vm1738 = vcmask 359424
      %1739 = vst.msk [vmem:[#allocation2] sm:$0xff] %vm1738, 0.0
      %vm1740 = vcmask 638088
      %1741 = vst.msk [vmem:[#allocation2 + $0x18] sm:$0xff] %vm1740, 0.0
      %1745 = vrot.lane.b32.xlu0 %v1735, 44
      %v1746 = vpop.permute.xlu0 %1745
      %1747 = vrot.lane.b32.xlu0 %v1736, 44
      %v1748 = vpop.permute.xlu0 %1747
      %1749 = vrot.lane.b32.xlu0 %v1737, 44
      %v1750 = vpop.permute.xlu0 %1749
      %v1751 = vsel %vm1738, %v1746, %v1748
      %v1752 = vsel %vm1738, %v1748, %v1750
      %vm1757 = vcmask 1047904
      %1758 = vst.msk [vmem:[#allocation2] sm:$0xff] %vm1757, %v1746
      %1759 = vst [vmem:[#allocation2 + $0x8] sm:$0xff] %v1751
      %1760 = vst [vmem:[#allocation2 + $0x10] sm:$0xff] %v1752
      %vm1761 = vcmask 138240
      %1762 = vst.msk [vmem:[#allocation2 + $0x18] sm:$0xff] %vm1761, %v1750
      %v1763 = vld [vmem:[%s3] sm:$0xf]
      %v1764 = vld [vmem:[#allocation2] sm:$0xff]
      %v1765 = vld [vmem:[#allocation2 + $0x8] sm:$0xff]
      %v1766 = vld [vmem:[#allocation2 + $0x10] sm:$0xff]
      %v1767 = vld [vmem:[#allocation2 + $0x18] sm:$0xff]
      %s1768 = scalar_lea.vmem %s3, 4
      %v1769 = vld [vmem:[%s1768] sm:$0xf]
      %1774 = vrot.lane.b32.xlu0 %v1764, 127
      %v1775 = vpop.permute.xlu0 %1774
      %1776 = vrot.lane.b32.xlu0 %v1765, 127
      %v1777 = vpop.permute.xlu0 %1776
      %1778 = vrot.lane.b32.xlu0 %v1766, 127
      %v1779 = vpop.permute.xlu0 %1778
      %1780 = vrot.lane.b32.xlu0 %v1767, 127
      %v1781 = vpop.permute.xlu0 %1780
      %v1782 = vsel %vm267, %v1775, %v1777
      %v1783 = vsel %vm267, %v1777, %v1779
      %v1784 = vsel %vm267, %v1779, %v1781
      %v1790 = vsel %vm273, %v1769, 0
      %1792 = vmatprep.subr.mxu0 %v1783
      %1793 = vmatpush1.msra.mxu0 %v1782
      %1794 = vmatprep.subr.mxu0 0.0
      %1795 = vmatpush1.msra.mxu0 0.0
      %1796 = vmatprep.subr.mxu0 0.0
      %1797 = vmatpush1.msra.mxu0 0.0
      %1798 = vmatprep.subr.mxu0 0.0
      %1799 = vmatpush1.msra.mxu0 0.0
      %1800 = vmatprep.subr.mxu0 0.0
      %1801 = vmatpush1.msra.mxu0 0.0
      %1802 = vmatprep.subr.mxu0 0.0
      %1803 = vmatpush1.msra.mxu0 0.0
      %1804 = vmatprep.subr.mxu0 0.0
      %1805 = vmatpush1.msra.mxu0 0.0
      %1806 = vmatprep.subr.mxu0 0.0
      %1807 = vmatpush1.msra.mxu0 0.0
      %1808 = vmatprep.subr.mxu0 0.0
      %1809 = vmatpush1.msra.mxu0 0.0
      %1810 = vmatprep.subr.mxu0 0.0
      %1811 = vmatpush1.msra.mxu0 0.0
      %1812 = vmatprep.subr.mxu0 0.0
      %1813 = vmatpush1.msra.mxu0 0.0
      %1814 = vmatprep.subr.mxu0 0.0
      %1815 = vmatpush1.msra.mxu0 0.0
      %1816 = vmatprep.subr.mxu0 0.0
      %1817 = vmatpush1.msra.mxu0 0.0
      %1818 = vmatprep.subr.mxu0 0.0
      %1819 = vmatpush1.msra.mxu0 0.0
      %1820 = vmatprep.subr.mxu0 0.0
      %1821 = vmatpush1.msra.mxu0 0.0
      %1822 = vmatprep.subr.mxu0 0.0
      %1823 = vmatpush1.msra.mxu0 0.0
      %1824 = vmatprep.subr.mxu0 0.0
      %1825 = vmatpush1.msra.mxu0 0.0
      %1826 = vmatprep.subr.mxu0 0.0
      %1827 = vmatpush1.msra.mxu0 0.0
      %1828 = vmatprep.subr.mxu0 0.0
      %1829 = vmatpush1.msra.mxu0 0.0
      %1830 = vmatprep.subr.mxu0 0.0
      %1831 = vmatpush1.msra.mxu0 0.0
      %1832 = vmatprep.subr.mxu0 0.0
      %1833 = vmatpush1.msra.mxu0 0.0
      %1834 = vmatprep.subr.mxu0 0.0
      %1835 = vmatpush1.msra.mxu0 0.0
      %1836 = vmatprep.subr.mxu0 0.0
      %1837 = vmatpush1.msra.mxu0 0.0
      %1838 = vmatprep.subr.mxu0 0.0
      %1839 = vmatpush1.msra.mxu0 0.0
      %1840 = vmatprep.subr.mxu0 0.0
      %1841 = vmatpush1.msra.mxu0 0.0
      %1842 = vmatprep.subr.mxu0 0.0
      %1843 = vmatpush1.msra.mxu0 0.0
      %1844 = vmatprep.subr.mxu0 0.0
      %1845 = vmatpush1.msra.mxu0 0.0
      %1846 = vmatprep.subr.mxu0 0.0
      %1847 = vmatpush1.msra.mxu0 0.0
      %1848 = vmatprep.subr.mxu0 0.0
      %1849 = vmatpush1.msra.mxu0 0.0
      %1850 = vmatprep.subr.mxu0 0.0
      %1851 = vmatpush1.msra.mxu0 0.0
      %1852 = vmatprep.subr.mxu0 0.0
      %1853 = vmatpush1.msra.mxu0 0.0
      %1854 = vmatprep.subr.mxu0 0.0
      %1855 = vmatpush1.msra.mxu0 0.0
      %1856 = vmatprep.mubr.f32.mxu0 0.0
      %1857 = vmatmul.mubr.f32.gmra.mrb[0].mxu0 %v1790
      %v1858 = vpop.f32.mrb[0].mxu0
      %v1859 = vadd.f32 0.0, %v1858
      %v1860 = vpop.f32.mrb[0].mxu0
      %v1861 = vadd.f32 0.0, %v1860
      %1862 = vdwg.mxu0
      %1863 = vmatprep.subr.mxu0 %v1781
      %1864 = vmatpush1.msra.mxu0 %v1784
      %1865 = vmatprep.subr.mxu0 0.0
      %1866 = vmatpush1.msra.mxu0 0.0
      %1867 = vmatprep.subr.mxu0 0.0
      %1868 = vmatpush1.msra.mxu0 0.0
      %1869 = vmatprep.subr.mxu0 0.0
      %1870 = vmatpush1.msra.mxu0 0.0
      %1871 = vmatprep.subr.mxu0 0.0
      %1872 = vmatpush1.msra.mxu0 0.0
      %1873 = vmatprep.subr.mxu0 0.0
      %1874 = vmatpush1.msra.mxu0 0.0
      %1875 = vmatprep.subr.mxu0 0.0
      %1876 = vmatpush1.msra.mxu0 0.0
      %1877 = vmatprep.subr.mxu0 0.0
      %1878 = vmatpush1.msra.mxu0 0.0
      %1879 = vmatprep.subr.mxu0 0.0
      %1880 = vmatpush1.msra.mxu0 0.0
      %1881 = vmatprep.subr.mxu0 0.0
      %1882 = vmatpush1.msra.mxu0 0.0
      %1883 = vmatprep.subr.mxu0 0.0
      %1884 = vmatpush1.msra.mxu0 0.0
      %1885 = vmatprep.subr.mxu0 0.0
      %1886 = vmatpush1.msra.mxu0 0.0
      %1887 = vmatprep.subr.mxu0 0.0
      %1888 = vmatpush1.msra.mxu0 0.0
      %1889 = vmatprep.subr.mxu0 0.0
      %1890 = vmatpush1.msra.mxu0 0.0
      %1891 = vmatprep.subr.mxu0 0.0
      %1892 = vmatpush1.msra.mxu0 0.0
      %1893 = vmatprep.subr.mxu0 0.0
      %1894 = vmatpush1.msra.mxu0 0.0
      %1895 = vmatprep.subr.mxu0 0.0
      %1896 = vmatpush1.msra.mxu0 0.0
      %1897 = vmatprep.subr.mxu0 0.0
      %1898 = vmatpush1.msra.mxu0 0.0
      %1899 = vmatprep.subr.mxu0 0.0
      %1900 = vmatpush1.msra.mxu0 0.0
      %1901 = vmatprep.subr.mxu0 0.0
      %1902 = vmatpush1.msra.mxu0 0.0
      %1903 = vmatprep.subr.mxu0 0.0
      %1904 = vmatpush1.msra.mxu0 0.0
      %1905 = vmatprep.subr.mxu0 0.0
      %1906 = vmatpush1.msra.mxu0 0.0
      %1907 = vmatprep.subr.mxu0 0.0
      %1908 = vmatpush1.msra.mxu0 0.0
      %1909 = vmatprep.subr.mxu0 0.0
      %1910 = vmatpush1.msra.mxu0 0.0
      %1911 = vmatprep.subr.mxu0 0.0
      %1912 = vmatpush1.msra.mxu0 0.0
      %1913 = vmatprep.subr.mxu0 0.0
      %1914 = vmatpush1.msra.mxu0 0.0
      %1915 = vmatprep.subr.mxu0 0.0
      %1916 = vmatpush1.msra.mxu0 0.0
      %1917 = vmatprep.subr.mxu0 0.0
      %1918 = vmatpush1.msra.mxu0 0.0
      %1919 = vmatprep.subr.mxu0 0.0
      %1920 = vmatpush1.msra.mxu0 0.0
      %1921 = vmatprep.subr.mxu0 0.0
      %1922 = vmatpush1.msra.mxu0 0.0
      %1923 = vmatprep.subr.mxu0 0.0
      %1924 = vmatpush1.msra.mxu0 0.0
      %1925 = vmatprep.subr.mxu0 0.0
      %1926 = vmatpush1.msra.mxu0 0.0
      %1927 = vmatprep.mubr.f32.mxu0 0.0
      %1928 = vmatmul.mubr.f32.gmra.mrb[0].mxu0 %v1790
      %v1929 = vpop.f32.mrb[0].mxu0
      %v1930 = vadd.f32 0.0, %v1929
      %v1931 = vpop.f32.mrb[0].mxu0
      %v1932 = vadd.f32 0.0, %v1931
      %1933 = vdwg.mxu0
      %v1935 = vsel %vm273, %v1763, 0
      %1937 = vmatprep.subr.mxu0 %v1765
      %1938 = vmatpush1.msra.mxu0 %v1764
      %1939 = vmatprep.subr.mxu0 0.0
      %1940 = vmatpush1.msra.mxu0 0.0
      %1941 = vmatprep.subr.mxu0 0.0
      %1942 = vmatpush1.msra.mxu0 0.0
      %1943 = vmatprep.subr.mxu0 0.0
      %1944 = vmatpush1.msra.mxu0 0.0
      %1945 = vmatprep.subr.mxu0 0.0
      %1946 = vmatpush1.msra.mxu0 0.0
      %1947 = vmatprep.subr.mxu0 0.0
      %1948 = vmatpush1.msra.mxu0 0.0
      %1949 = vmatprep.subr.mxu0 0.0
      %1950 = vmatpush1.msra.mxu0 0.0
      %1951 = vmatprep.subr.mxu0 0.0
      %1952 = vmatpush1.msra.mxu0 0.0
      %1953 = vmatprep.subr.mxu0 0.0
      %1954 = vmatpush1.msra.mxu0 0.0
      %1955 = vmatprep.subr.mxu0 0.0
      %1956 = vmatpush1.msra.mxu0 0.0
      %1957 = vmatprep.subr.mxu0 0.0
      %1958 = vmatpush1.msra.mxu0 0.0
      %1959 = vmatprep.subr.mxu0 0.0
      %1960 = vmatpush1.msra.mxu0 0.0
      %1961 = vmatprep.subr.mxu0 0.0
      %1962 = vmatpush1.msra.mxu0 0.0
      %1963 = vmatprep.subr.mxu0 0.0
      %1964 = vmatpush1.msra.mxu0 0.0
      %1965 = vmatprep.subr.mxu0 0.0
      %1966 = vmatpush1.msra.mxu0 0.0
      %1967 = vmatprep.subr.mxu0 0.0
      %1968 = vmatpush1.msra.mxu0 0.0
      %1969 = vmatprep.subr.mxu0 0.0
      %1970 = vmatpush1.msra.mxu0 0.0
      %1971 = vmatprep.subr.mxu0 0.0
      %1972 = vmatpush1.msra.mxu0 0.0
      %1973 = vmatprep.subr.mxu0 0.0
      %1974 = vmatpush1.msra.mxu0 0.0
      %1975 = vmatprep.subr.mxu0 0.0
      %1976 = vmatpush1.msra.mxu0 0.0
      %1977 = vmatprep.subr.mxu0 0.0
      %1978 = vmatpush1.msra.mxu0 0.0
      %1979 = vmatprep.subr.mxu0 0.0
      %1980 = vmatpush1.msra.mxu0 0.0
      %1981 = vmatprep.subr.mxu0 0.0
      %1982 = vmatpush1.msra.mxu0 0.0
      %1983 = vmatprep.subr.mxu0 0.0
      %1984 = vmatpush1.msra.mxu0 0.0
      %1985 = vmatprep.subr.mxu0 0.0
      %1986 = vmatpush1.msra.mxu0 0.0
      %1987 = vmatprep.subr.mxu0 0.0
      %1988 = vmatpush1.msra.mxu0 0.0
      %1989 = vmatprep.subr.mxu0 0.0
      %1990 = vmatpush1.msra.mxu0 0.0
      %1991 = vmatprep.subr.mxu0 0.0
      %1992 = vmatpush1.msra.mxu0 0.0
      %1993 = vmatprep.subr.mxu0 0.0
      %1994 = vmatpush1.msra.mxu0 0.0
      %1995 = vmatprep.subr.mxu0 0.0
      %1996 = vmatpush1.msra.mxu0 0.0
      %1997 = vmatprep.subr.mxu0 0.0
      %1998 = vmatpush1.msra.mxu0 0.0
      %1999 = vmatprep.subr.mxu0 0.0
      %2000 = vmatpush1.msra.mxu0 0.0
      %2001 = vmatprep.mubr.f32.mxu0 0.0
      %2002 = vmatmul.mubr.f32.gmra.mrb[0].mxu0 %v1935
      %v2003 = vpop.f32.mrb[0].mxu0
      %v2004 = vadd.f32 %v1859, %v2003
      %v2005 = vpop.f32.mrb[0].mxu0
      %v2006 = vadd.f32 %v1861, %v2005
      %2007 = vdwg.mxu0
      %2008 = vmatprep.subr.mxu0 %v1767
      %2009 = vmatpush1.msra.mxu0 %v1766
      %2010 = vmatprep.subr.mxu0 0.0
      %2011 = vmatpush1.msra.mxu0 0.0
      %2012 = vmatprep.subr.mxu0 0.0
      %2013 = vmatpush1.msra.mxu0 0.0
      %2014 = vmatprep.subr.mxu0 0.0
      %2015 = vmatpush1.msra.mxu0 0.0
      %2016 = vmatprep.subr.mxu0 0.0
      %2017 = vmatpush1.msra.mxu0 0.0
      %2018 = vmatprep.subr.mxu0 0.0
      %2019 = vmatpush1.msra.mxu0 0.0
      %2020 = vmatprep.subr.mxu0 0.0
      %2021 = vmatpush1.msra.mxu0 0.0
      %2022 = vmatprep.subr.mxu0 0.0
      %2023 = vmatpush1.msra.mxu0 0.0
      %2024 = vmatprep.subr.mxu0 0.0
      %2025 = vmatpush1.msra.mxu0 0.0
      %2026 = vmatprep.subr.mxu0 0.0
      %2027 = vmatpush1.msra.mxu0 0.0
      %2028 = vmatprep.subr.mxu0 0.0
      %2029 = vmatpush1.msra.mxu0 0.0
      %2030 = vmatprep.subr.mxu0 0.0
      %2031 = vmatpush1.msra.mxu0 0.0
      %2032 = vmatprep.subr.mxu0 0.0
      %2033 = vmatpush1.msra.mxu0 0.0
      %2034 = vmatprep.subr.mxu0 0.0
      %2035 = vmatpush1.msra.mxu0 0.0
      %2036 = vmatprep.subr.mxu0 0.0
      %2037 = vmatpush1.msra.mxu0 0.0
      %2038 = vmatprep.subr.mxu0 0.0
      %2039 = vmatpush1.msra.mxu0 0.0
      %2040 = vmatprep.subr.mxu0 0.0
      %2041 = vmatpush1.msra.mxu0 0.0
      %2042 = vmatprep.subr.mxu0 0.0
      %2043 = vmatpush1.msra.mxu0 0.0
      %2044 = vmatprep.subr.mxu0 0.0
      %2045 = vmatpush1.msra.mxu0 0.0
      %2046 = vmatprep.subr.mxu0 0.0
      %2047 = vmatpush1.msra.mxu0 0.0
      %2048 = vmatprep.subr.mxu0 0.0
      %2049 = vmatpush1.msra.mxu0 0.0
      %2050 = vmatprep.subr.mxu0 0.0
      %2051 = vmatpush1.msra.mxu0 0.0
      %2052 = vmatprep.subr.mxu0 0.0
      %2053 = vmatpush1.msra.mxu0 0.0
      %2054 = vmatprep.subr.mxu0 0.0
      %2055 = vmatpush1.msra.mxu0 0.0
      %2056 = vmatprep.subr.mxu0 0.0
      %2057 = vmatpush1.msra.mxu0 0.0
      %2058 = vmatprep.subr.mxu0 0.0
      %2059 = vmatpush1.msra.mxu0 0.0
      %2060 = vmatprep.subr.mxu0 0.0
      %2061 = vmatpush1.msra.mxu0 0.0
      %2062 = vmatprep.subr.mxu0 0.0
      %2063 = vmatpush1.msra.mxu0 0.0
      %2064 = vmatprep.subr.mxu0 0.0
      %2065 = vmatpush1.msra.mxu0 0.0
      %2066 = vmatprep.subr.mxu0 0.0
      %2067 = vmatpush1.msra.mxu0 0.0
      %2068 = vmatprep.subr.mxu0 0.0
      %2069 = vmatpush1.msra.mxu0 0.0
      %2070 = vmatprep.subr.mxu0 0.0
      %2071 = vmatpush1.msra.mxu0 0.0
      %2072 = vmatprep.mubr.f32.mxu0 0.0
      %2073 = vmatmul.mubr.f32.gmra.mrb[0].mxu0 %v1935
      %v2074 = vpop.f32.mrb[0].mxu0
      %v2075 = vadd.f32 %v1930, %v2074
      %v2076 = vpop.f32.mrb[0].mxu0
      %v2077 = vadd.f32 %v1932, %v2076
      %2078 = vdwg.mxu0
      %s2079 = scalar_lea.vmem %s3, 8
      %v2080 = vld [vmem:[%s2079] sm:$0xf]
      %2081 = vrot.lane.b32.xlu0 %v1764, 126
      %v2082 = vpop.permute.xlu0 %2081
      %2083 = vrot.lane.b32.xlu0 %v1765, 126
      %v2084 = vpop.permute.xlu0 %2083
      %2085 = vrot.lane.b32.xlu0 %v1766, 126
      %v2086 = vpop.permute.xlu0 %2085
      %2087 = vrot.lane.b32.xlu0 %v1767, 126
      %v2088 = vpop.permute.xlu0 %2087
      %v2089 = vsel %vm570, %v2082, %v2084
      %v2090 = vsel %vm570, %v2084, %v2086
      %v2091 = vsel %vm570, %v2086, %v2088
      %v2097 = vsel %vm273, %v2080, 0
      %2099 = vmatprep.subr.mxu0 %v2090
      %2100 = vmatpush1.msra.mxu0 %v2089
      %2101 = vmatprep.subr.mxu0 0.0
      %2102 = vmatpush1.msra.mxu0 0.0
      %2103 = vmatprep.subr.mxu0 0.0
      %2104 = vmatpush1.msra.mxu0 0.0
      %2105 = vmatprep.subr.mxu0 0.0
      %2106 = vmatpush1.msra.mxu0 0.0
      %2107 = vmatprep.subr.mxu0 0.0
      %2108 = vmatpush1.msra.mxu0 0.0
      %2109 = vmatprep.subr.mxu0 0.0
      %2110 = vmatpush1.msra.mxu0 0.0
      %2111 = vmatprep.subr.mxu0 0.0
      %2112 = vmatpush1.msra.mxu0 0.0
      %2113 = vmatprep.subr.mxu0 0.0
      %2114 = vmatpush1.msra.mxu0 0.0
      %2115 = vmatprep.subr.mxu0 0.0
      %2116 = vmatpush1.msra.mxu0 0.0
      %2117 = vmatprep.subr.mxu0 0.0
      %2118 = vmatpush1.msra.mxu0 0.0
      %2119 = vmatprep.subr.mxu0 0.0
      %2120 = vmatpush1.msra.mxu0 0.0
      %2121 = vmatprep.subr.mxu0 0.0
      %2122 = vmatpush1.msra.mxu0 0.0
      %2123 = vmatprep.subr.mxu0 0.0
      %2124 = vmatpush1.msra.mxu0 0.0
      %2125 = vmatprep.subr.mxu0 0.0
      %2126 = vmatpush1.msra.mxu0 0.0
      %2127 = vmatprep.subr.mxu0 0.0
      %2128 = vmatpush1.msra.mxu0 0.0
      %2129 = vmatprep.subr.mxu0 0.0
      %2130 = vmatpush1.msra.mxu0 0.0
      %2131 = vmatprep.subr.mxu0 0.0
      %2132 = vmatpush1.msra.mxu0 0.0
      %2133 = vmatprep.subr.mxu0 0.0
      %2134 = vmatpush1.msra.mxu0 0.0
      %2135 = vmatprep.subr.mxu0 0.0
      %2136 = vmatpush1.msra.mxu0 0.0
      %2137 = vmatprep.subr.mxu0 0.0
      %2138 = vmatpush1.msra.mxu0 0.0
      %2139 = vmatprep.subr.mxu0 0.0
      %2140 = vmatpush1.msra.mxu0 0.0
      %2141 = vmatprep.subr.mxu0 0.0
      %2142 = vmatpush1.msra.mxu0 0.0
      %2143 = vmatprep.subr.mxu0 0.0
      %2144 = vmatpush1.msra.mxu0 0.0
      %2145 = vmatprep.subr.mxu0 0.0
      %2146 = vmatpush1.msra.mxu0 0.0
      %2147 = vmatprep.subr.mxu0 0.0
      %2148 = vmatpush1.msra.mxu0 0.0
      %2149 = vmatprep.subr.mxu0 0.0
      %2150 = vmatpush1.msra.mxu0 0.0
      %2151 = vmatprep.subr.mxu0 0.0
      %2152 = vmatpush1.msra.mxu0 0.0
      %2153 = vmatprep.subr.mxu0 0.0
      %2154 = vmatpush1.msra.mxu0 0.0
      %2155 = vmatprep.subr.mxu0 0.0
      %2156 = vmatpush1.msra.mxu0 0.0
      %2157 = vmatprep.subr.mxu0 0.0
      %2158 = vmatpush1.msra.mxu0 0.0
      %2159 = vmatprep.subr.mxu0 0.0
      %2160 = vmatpush1.msra.mxu0 0.0
      %2161 = vmatprep.subr.mxu0 0.0
      %2162 = vmatpush1.msra.mxu0 0.0
      %2163 = vmatprep.mubr.f32.mxu0 0.0
      %2164 = vmatmul.mubr.f32.gmra.mrb[0].mxu0 %v2097
      %v2165 = vpop.f32.mrb[0].mxu0
      %v2166 = vadd.f32 0.0, %v2165
      %v2167 = vpop.f32.mrb[0].mxu0
      %v2168 = vadd.f32 0.0, %v2167
      %2169 = vdwg.mxu0
      %2170 = vmatprep.subr.mxu0 %v2088
      %2171 = vmatpush1.msra.mxu0 %v2091
      %2172 = vmatprep.subr.mxu0 0.0
      %2173 = vmatpush1.msra.mxu0 0.0
      %2174 = vmatprep.subr.mxu0 0.0
      %2175 = vmatpush1.msra.mxu0 0.0
      %2176 = vmatprep.subr.mxu0 0.0
      %2177 = vmatpush1.msra.mxu0 0.0
      %2178 = vmatprep.subr.mxu0 0.0
      %2179 = vmatpush1.msra.mxu0 0.0
      %2180 = vmatprep.subr.mxu0 0.0
      %2181 = vmatpush1.msra.mxu0 0.0
      %2182 = vmatprep.subr.mxu0 0.0
      %2183 = vmatpush1.msra.mxu0 0.0
      %2184 = vmatprep.subr.mxu0 0.0
      %2185 = vmatpush1.msra.mxu0 0.0
      %2186 = vmatprep.subr.mxu0 0.0
      %2187 = vmatpush1.msra.mxu0 0.0
      %2188 = vmatprep.subr.mxu0 0.0
      %2189 = vmatpush1.msra.mxu0 0.0
      %2190 = vmatprep.subr.mxu0 0.0
      %2191 = vmatpush1.msra.mxu0 0.0
      %2192 = vmatprep.subr.mxu0 0.0
      %2193 = vmatpush1.msra.mxu0 0.0
      %2194 = vmatprep.subr.mxu0 0.0
      %2195 = vmatpush1.msra.mxu0 0.0
      %2196 = vmatprep.subr.mxu0 0.0
      %2197 = vmatpush1.msra.mxu0 0.0
      %2198 = vmatprep.subr.mxu0 0.0
      %2199 = vmatpush1.msra.mxu0 0.0
      %2200 = vmatprep.subr.mxu0 0.0
      %2201 = vmatpush1.msra.mxu0 0.0
      %2202 = vmatprep.subr.mxu0 0.0
      %2203 = vmatpush1.msra.mxu0 0.0
      %2204 = vmatprep.subr.mxu0 0.0
      %2205 = vmatpush1.msra.mxu0 0.0
      %2206 = vmatprep.subr.mxu0 0.0
      %2207 = vmatpush1.msra.mxu0 0.0
      %2208 = vmatprep.subr.mxu0 0.0
      %2209 = vmatpush1.msra.mxu0 0.0
      %2210 = vmatprep.subr.mxu0 0.0
      %2211 = vmatpush1.msra.mxu0 0.0
      %2212 = vmatprep.subr.mxu0 0.0
      %2213 = vmatpush1.msra.mxu0 0.0
      %2214 = vmatprep.subr.mxu0 0.0
      %2215 = vmatpush1.msra.mxu0 0.0
      %2216 = vmatprep.subr.mxu0 0.0
      %2217 = vmatpush1.msra.mxu0 0.0
      %2218 = vmatprep.subr.mxu0 0.0
      %2219 = vmatpush1.msra.mxu0 0.0
      %2220 = vmatprep.subr.mxu0 0.0
      %2221 = vmatpush1.msra.mxu0 0.0
      %2222 = vmatprep.subr.mxu0 0.0
      %2223 = vmatpush1.msra.mxu0 0.0
      %2224 = vmatprep.subr.mxu0 0.0
      %2225 = vmatpush1.msra.mxu0 0.0
      %2226 = vmatprep.subr.mxu0 0.0
      %2227 = vmatpush1.msra.mxu0 0.0
      %2228 = vmatprep.subr.mxu0 0.0
      %2229 = vmatpush1.msra.mxu0 0.0
      %2230 = vmatprep.subr.mxu0 0.0
      %2231 = vmatpush1.msra.mxu0 0.0
      %2232 = vmatprep.subr.mxu0 0.0
      %2233 = vmatpush1.msra.mxu0 0.0
      %2234 = vmatprep.mubr.f32.mxu0 0.0
      %2235 = vmatmul.mubr.f32.gmra.mrb[0].mxu0 %v2097
      %v2236 = vpop.f32.mrb[0].mxu0
      %v2237 = vadd.f32 0.0, %v2236
      %v2238 = vpop.f32.mrb[0].mxu0
      %v2239 = vadd.f32 0.0, %v2238
      %2240 = vdwg.mxu0
      %v2241 = vadd.f32 %v2004, %v2166
      %v2242 = vadd.f32 %v2006, %v2168
      %v2243 = vadd.f32 %v2075, %v2237
      %v2244 = vadd.f32 %v2077, %v2239
      %s2245 = scalar_lea.vmem %s3, 12
      %v2246 = vld [vmem:[%s2245] sm:$0xf]
      %2247 = vrot.lane.b32.xlu0 %v1764, 107
      %v2248 = vpop.permute.xlu0 %2247
      %2249 = vrot.lane.b32.xlu0 %v1765, 107
      %v2250 = vpop.permute.xlu0 %2249
      %2251 = vrot.lane.b32.xlu0 %v1766, 107
      %v2252 = vpop.permute.xlu0 %2251
      %2253 = vrot.lane.b32.xlu0 %v1767, 107
      %v2254 = vpop.permute.xlu0 %2253
      %v2255 = vsel %vm731, %v2248, %v2250
      %v2256 = vsel %vm731, %v2250, %v2252
      %v2257 = vsel %vm731, %v2252, %v2254
      %v2263 = vsel %vm273, %v2246, 0
      %2265 = vmatprep.subr.mxu0 %v2256
      %2266 = vmatpush1.msra.mxu0 %v2255
      %2267 = vmatprep.subr.mxu0 0.0
      %2268 = vmatpush1.msra.mxu0 0.0
      %2269 = vmatprep.subr.mxu0 0.0
      %2270 = vmatpush1.msra.mxu0 0.0
      %2271 = vmatprep.subr.mxu0 0.0
      %2272 = vmatpush1.msra.mxu0 0.0
      %2273 = vmatprep.subr.mxu0 0.0
      %2274 = vmatpush1.msra.mxu0 0.0
      %2275 = vmatprep.subr.mxu0 0.0
      %2276 = vmatpush1.msra.mxu0 0.0
      %2277 = vmatprep.subr.mxu0 0.0
      %2278 = vmatpush1.msra.mxu0 0.0
      %2279 = vmatprep.subr.mxu0 0.0
      %2280 = vmatpush1.msra.mxu0 0.0
      %2281 = vmatprep.subr.mxu0 0.0
      %2282 = vmatpush1.msra.mxu0 0.0
      %2283 = vmatprep.subr.mxu0 0.0
      %2284 = vmatpush1.msra.mxu0 0.0
      %2285 = vmatprep.subr.mxu0 0.0
      %2286 = vmatpush1.msra.mxu0 0.0
      %2287 = vmatprep.subr.mxu0 0.0
      %2288 = vmatpush1.msra.mxu0 0.0
      %2289 = vmatprep.subr.mxu0 0.0
      %2290 = vmatpush1.msra.mxu0 0.0
      %2291 = vmatprep.subr.mxu0 0.0
      %2292 = vmatpush1.msra.mxu0 0.0
      %2293 = vmatprep.subr.mxu0 0.0
      %2294 = vmatpush1.msra.mxu0 0.0
      %2295 = vmatprep.subr.mxu0 0.0
      %2296 = vmatpush1.msra.mxu0 0.0
      %2297 = vmatprep.subr.mxu0 0.0
      %2298 = vmatpush1.msra.mxu0 0.0
      %2299 = vmatprep.subr.mxu0 0.0
      %2300 = vmatpush1.msra.mxu0 0.0
      %2301 = vmatprep.subr.mxu0 0.0
      %2302 = vmatpush1.msra.mxu0 0.0
      %2303 = vmatprep.subr.mxu0 0.0
      %2304 = vmatpush1.msra.mxu0 0.0
      %2305 = vmatprep.subr.mxu0 0.0
      %2306 = vmatpush1.msra.mxu0 0.0
      %2307 = vmatprep.subr.mxu0 0.0
      %2308 = vmatpush1.msra.mxu0 0.0
      %2309 = vmatprep.subr.mxu0 0.0
      %2310 = vmatpush1.msra.mxu0 0.0
      %2311 = vmatprep.subr.mxu0 0.0
      %2312 = vmatpush1.msra.mxu0 0.0
      %2313 = vmatprep.subr.mxu0 0.0
      %2314 = vmatpush1.msra.mxu0 0.0
      %2315 = vmatprep.subr.mxu0 0.0
      %2316 = vmatpush1.msra.mxu0 0.0
      %2317 = vmatprep.subr.mxu0 0.0
      %2318 = vmatpush1.msra.mxu0 0.0
      %2319 = vmatprep.subr.mxu0 0.0
      %2320 = vmatpush1.msra.mxu0 0.0
      %2321 = vmatprep.subr.mxu0 0.0
      %2322 = vmatpush1.msra.mxu0 0.0
      %2323 = vmatprep.subr.mxu0 0.0
      %2324 = vmatpush1.msra.mxu0 0.0
      %2325 = vmatprep.subr.mxu0 0.0
      %2326 = vmatpush1.msra.mxu0 0.0
      %2327 = vmatprep.subr.mxu0 0.0
      %2328 = vmatpush1.msra.mxu0 0.0
      %2329 = vmatprep.mubr.f32.mxu0 0.0
      %2330 = vmatmul.mubr.f32.gmra.mrb[0].mxu0 %v2263
      %v2331 = vpop.f32.mrb[0].mxu0
      %v2332 = vadd.f32 0.0, %v2331
      %v2333 = vpop.f32.mrb[0].mxu0
      %v2334 = vadd.f32 0.0, %v2333
      %2335 = vdwg.mxu0
      %2336 = vmatprep.subr.mxu0 %v2254
      %2337 = vmatpush1.msra.mxu0 %v2257
      %2338 = vmatprep.subr.mxu0 0.0
      %2339 = vmatpush1.msra.mxu0 0.0
      %2340 = vmatprep.subr.mxu0 0.0
      %2341 = vmatpush1.msra.mxu0 0.0
      %2342 = vmatprep.subr.mxu0 0.0
      %2343 = vmatpush1.msra.mxu0 0.0
      %2344 = vmatprep.subr.mxu0 0.0
      %2345 = vmatpush1.msra.mxu0 0.0
      %2346 = vmatprep.subr.mxu0 0.0
      %2347 = vmatpush1.msra.mxu0 0.0
      %2348 = vmatprep.subr.mxu0 0.0
      %2349 = vmatpush1.msra.mxu0 0.0
      %2350 = vmatprep.subr.mxu0 0.0
      %2351 = vmatpush1.msra.mxu0 0.0
      %2352 = vmatprep.subr.mxu0 0.0
      %2353 = vmatpush1.msra.mxu0 0.0
      %2354 = vmatprep.subr.mxu0 0.0
      %2355 = vmatpush1.msra.mxu0 0.0
      %2356 = vmatprep.subr.mxu0 0.0
      %2357 = vmatpush1.msra.mxu0 0.0
      %2358 = vmatprep.subr.mxu0 0.0
      %2359 = vmatpush1.msra.mxu0 0.0
      %2360 = vmatprep.subr.mxu0 0.0
      %2361 = vmatpush1.msra.mxu0 0.0
      %2362 = vmatprep.subr.mxu0 0.0
      %2363 = vmatpush1.msra.mxu0 0.0
      %2364 = vmatprep.subr.mxu0 0.0
      %2365 = vmatpush1.msra.mxu0 0.0
      %2366 = vmatprep.subr.mxu0 0.0
      %2367 = vmatpush1.msra.mxu0 0.0
      %2368 = vmatprep.subr.mxu0 0.0
      %2369 = vmatpush1.msra.mxu0 0.0
      %2370 = vmatprep.subr.mxu0 0.0
      %2371 = vmatpush1.msra.mxu0 0.0
      %2372 = vmatprep.subr.mxu0 0.0
      %2373 = vmatpush1.msra.mxu0 0.0
      %2374 = vmatprep.subr.mxu0 0.0
      %2375 = vmatpush1.msra.mxu0 0.0
      %2376 = vmatprep.subr.mxu0 0.0
      %2377 = vmatpush1.msra.mxu0 0.0
      %2378 = vmatprep.subr.mxu0 0.0
      %2379 = vmatpush1.msra.mxu0 0.0
      %2380 = vmatprep.subr.mxu0 0.0
      %2381 = vmatpush1.msra.mxu0 0.0
      %2382 = vmatprep.subr.mxu0 0.0
      %2383 = vmatpush1.msra.mxu0 0.0
      %2384 = vmatprep.subr.mxu0 0.0
      %2385 = vmatpush1.msra.mxu0 0.0
      %2386 = vmatprep.subr.mxu0 0.0
      %2387 = vmatpush1.msra.mxu0 0.0
      %2388 = vmatprep.subr.mxu0 0.0
      %2389 = vmatpush1.msra.mxu0 0.0
      %2390 = vmatprep.subr.mxu0 0.0
      %2391 = vmatpush1.msra.mxu0 0.0
      %2392 = vmatprep.subr.mxu0 0.0
      %2393 = vmatpush1.msra.mxu0 0.0
      %2394 = vmatprep.subr.mxu0 0.0
      %2395 = vmatpush1.msra.mxu0 0.0
      %2396 = vmatprep.subr.mxu0 0.0
      %2397 = vmatpush1.msra.mxu0 0.0
      %2398 = vmatprep.subr.mxu0 0.0
      %2399 = vmatpush1.msra.mxu0 0.0
      %2400 = vmatprep.mubr.f32.mxu0 0.0
      %2401 = vmatmul.mubr.f32.gmra.mrb[0].mxu0 %v2263
      %v2402 = vpop.f32.mrb[0].mxu0
      %v2403 = vadd.f32 0.0, %v2402
      %v2404 = vpop.f32.mrb[0].mxu0
      %v2405 = vadd.f32 0.0, %v2404
      %2406 = vdwg.mxu0
      %v2407 = vadd.f32 %v2241, %v2332
      %v2408 = vadd.f32 %v2242, %v2334
      %v2409 = vadd.f32 %v2243, %v2403
      %v2410 = vadd.f32 %v2244, %v2405
      %s2411 = scalar_lea.vmem %s3, 16
      %v2412 = vld [vmem:[%s2411] sm:$0xf]
      %2413 = vrot.lane.b32.xlu0 %v1764, 106
      %v2414 = vpop.permute.xlu0 %2413
      %2415 = vrot.lane.b32.xlu0 %v1765, 106
      %v2416 = vpop.permute.xlu0 %2415
      %2417 = vrot.lane.b32.xlu0 %v1766, 106
      %v2418 = vpop.permute.xlu0 %2417
      %2419 = vrot.lane.b32.xlu0 %v1767, 106
      %v2420 = vpop.permute.xlu0 %2419
      %v2421 = vsel %vm892, %v2414, %v2416
      %v2422 = vsel %vm892, %v2416, %v2418
      %v2423 = vsel %vm892, %v2418, %v2420
      %v2429 = vsel %vm273, %v2412, 0
      %2431 = vmatprep.subr.mxu0 %v2422
      %2432 = vmatpush1.msra.mxu0 %v2421
      %2433 = vmatprep.subr.mxu0 0.0
      %2434 = vmatpush1.msra.mxu0 0.0
      %2435 = vmatprep.subr.mxu0 0.0
      %2436 = vmatpush1.msra.mxu0 0.0
      %2437 = vmatprep.subr.mxu0 0.0
      %2438 = vmatpush1.msra.mxu0 0.0
      %2439 = vmatprep.subr.mxu0 0.0
      %2440 = vmatpush1.msra.mxu0 0.0
      %2441 = vmatprep.subr.mxu0 0.0
      %2442 = vmatpush1.msra.mxu0 0.0
      %2443 = vmatprep.subr.mxu0 0.0
      %2444 = vmatpush1.msra.mxu0 0.0
      %2445 = vmatprep.subr.mxu0 0.0
      %2446 = vmatpush1.msra.mxu0 0.0
      %2447 = vmatprep.subr.mxu0 0.0
      %2448 = vmatpush1.msra.mxu0 0.0
      %2449 = vmatprep.subr.mxu0 0.0
      %2450 = vmatpush1.msra.mxu0 0.0
      %2451 = vmatprep.subr.mxu0 0.0
      %2452 = vmatpush1.msra.mxu0 0.0
      %2453 = vmatprep.subr.mxu0 0.0
      %2454 = vmatpush1.msra.mxu0 0.0
      %2455 = vmatprep.subr.mxu0 0.0
      %2456 = vmatpush1.msra.mxu0 0.0
      %2457 = vmatprep.subr.mxu0 0.0
      %2458 = vmatpush1.msra.mxu0 0.0
      %2459 = vmatprep.subr.mxu0 0.0
      %2460 = vmatpush1.msra.mxu0 0.0
      %2461 = vmatprep.subr.mxu0 0.0
      %2462 = vmatpush1.msra.mxu0 0.0
      %2463 = vmatprep.subr.mxu0 0.0
      %2464 = vmatpush1.msra.mxu0 0.0
      %2465 = vmatprep.subr.mxu0 0.0
      %2466 = vmatpush1.msra.mxu0 0.0
      %2467 = vmatprep.subr.mxu0 0.0
      %2468 = vmatpush1.msra.mxu0 0.0
      %2469 = vmatprep.subr.mxu0 0.0
      %2470 = vmatpush1.msra.mxu0 0.0
      %2471 = vmatprep.subr.mxu0 0.0
      %2472 = vmatpush1.msra.mxu0 0.0
      %2473 = vmatprep.subr.mxu0 0.0
      %2474 = vmatpush1.msra.mxu0 0.0
      %2475 = vmatprep.subr.mxu0 0.0
      %2476 = vmatpush1.msra.mxu0 0.0
      %2477 = vmatprep.subr.mxu0 0.0
      %2478 = vmatpush1.msra.mxu0 0.0
      %2479 = vmatprep.subr.mxu0 0.0
      %2480 = vmatpush1.msra.mxu0 0.0
      %2481 = vmatprep.subr.mxu0 0.0
      %2482 = vmatpush1.msra.mxu0 0.0
      %2483 = vmatprep.subr.mxu0 0.0
      %2484 = vmatpush1.msra.mxu0 0.0
      %2485 = vmatprep.subr.mxu0 0.0
      %2486 = vmatpush1.msra.mxu0 0.0
      %2487 = vmatprep.subr.mxu0 0.0
      %2488 = vmatpush1.msra.mxu0 0.0
      %2489 = vmatprep.subr.mxu0 0.0
      %2490 = vmatpush1.msra.mxu0 0.0
      %2491 = vmatprep.subr.mxu0 0.0
      %2492 = vmatpush1.msra.mxu0 0.0
      %2493 = vmatprep.subr.mxu0 0.0
      %2494 = vmatpush1.msra.mxu0 0.0
      %2495 = vmatprep.mubr.f32.mxu0 0.0
      %2496 = vmatmul.mubr.f32.gmra.mrb[0].mxu0 %v2429
      %v2497 = vpop.f32.mrb[0].mxu0
      %v2498 = vadd.f32 0.0, %v2497
      %v2499 = vpop.f32.mrb[0].mxu0
      %v2500 = vadd.f32 0.0, %v2499
      %2501 = vdwg.mxu0
      %2502 = vmatprep.subr.mxu0 %v2420
      %2503 = vmatpush1.msra.mxu0 %v2423
      %2504 = vmatprep.subr.mxu0 0.0
      %2505 = vmatpush1.msra.mxu0 0.0
      %2506 = vmatprep.subr.mxu0 0.0
      %2507 = vmatpush1.msra.mxu0 0.0
      %2508 = vmatprep.subr.mxu0 0.0
      %2509 = vmatpush1.msra.mxu0 0.0
      %2510 = vmatprep.subr.mxu0 0.0
      %2511 = vmatpush1.msra.mxu0 0.0
      %2512 = vmatprep.subr.mxu0 0.0
      %2513 = vmatpush1.msra.mxu0 0.0
      %2514 = vmatprep.subr.mxu0 0.0
      %2515 = vmatpush1.msra.mxu0 0.0
      %2516 = vmatprep.subr.mxu0 0.0
      %2517 = vmatpush1.msra.mxu0 0.0
      %2518 = vmatprep.subr.mxu0 0.0
      %2519 = vmatpush1.msra.mxu0 0.0
      %2520 = vmatprep.subr.mxu0 0.0
      %2521 = vmatpush1.msra.mxu0 0.0
      %2522 = vmatprep.subr.mxu0 0.0
      %2523 = vmatpush1.msra.mxu0 0.0
      %2524 = vmatprep.subr.mxu0 0.0
      %2525 = vmatpush1.msra.mxu0 0.0
      %2526 = vmatprep.subr.mxu0 0.0
      %2527 = vmatpush1.msra.mxu0 0.0
      %2528 = vmatprep.subr.mxu0 0.0
      %2529 = vmatpush1.msra.mxu0 0.0
      %2530 = vmatprep.subr.mxu0 0.0
      %2531 = vmatpush1.msra.mxu0 0.0
      %2532 = vmatprep.subr.mxu0 0.0
      %2533 = vmatpush1.msra.mxu0 0.0
      %2534 = vmatprep.subr.mxu0 0.0
      %2535 = vmatpush1.msra.mxu0 0.0
      %2536 = vmatprep.subr.mxu0 0.0
      %2537 = vmatpush1.msra.mxu0 0.0
      %2538 = vmatprep.subr.mxu0 0.0
      %2539 = vmatpush1.msra.mxu0 0.0
      %2540 = vmatprep.subr.mxu0 0.0
      %2541 = vmatpush1.msra.mxu0 0.0
      %2542 = vmatprep.subr.mxu0 0.0
      %2543 = vmatpush1.msra.mxu0 0.0
      %2544 = vmatprep.subr.mxu0 0.0
      %2545 = vmatpush1.msra.mxu0 0.0
      %2546 = vmatprep.subr.mxu0 0.0
      %2547 = vmatpush1.msra.mxu0 0.0
      %2548 = vmatprep.subr.mxu0 0.0
      %2549 = vmatpush1.msra.mxu0 0.0
      %2550 = vmatprep.subr.mxu0 0.0
      %2551 = vmatpush1.msra.mxu0 0.0
      %2552 = vmatprep.subr.mxu0 0.0
      %2553 = vmatpush1.msra.mxu0 0.0
      %2554 = vmatprep.subr.mxu0 0.0
      %2555 = vmatpush1.msra.mxu0 0.0
      %2556 = vmatprep.subr.mxu0 0.0
      %2557 = vmatpush1.msra.mxu0 0.0
      %2558 = vmatprep.subr.mxu0 0.0
      %2559 = vmatpush1.msra.mxu0 0.0
      %2560 = vmatprep.subr.mxu0 0.0
      %2561 = vmatpush1.msra.mxu0 0.0
      %2562 = vmatprep.subr.mxu0 0.0
      %2563 = vmatpush1.msra.mxu0 0.0
      %2564 = vmatprep.subr.mxu0 0.0
      %2565 = vmatpush1.msra.mxu0 0.0
      %2566 = vmatprep.mubr.f32.mxu0 0.0
      %2567 = vmatmul.mubr.f32.gmra.mrb[0].mxu0 %v2429
      %v2568 = vpop.f32.mrb[0].mxu0
      %v2569 = vadd.f32 0.0, %v2568
      %v2570 = vpop.f32.mrb[0].mxu0
      %v2571 = vadd.f32 0.0, %v2570
      %2572 = vdwg.mxu0
      %v2573 = vadd.f32 %v2407, %v2498
      %v2574 = vadd.f32 %v2408, %v2500
      %v2575 = vadd.f32 %v2409, %v2569
      %v2576 = vadd.f32 %v2410, %v2571
      %s2577 = scalar_lea.vmem %s3, 20
      %v2578 = vld [vmem:[%s2577] sm:$0xf]
      %2579 = vrot.lane.b32.xlu0 %v1764, 105
      %v2580 = vpop.permute.xlu0 %2579
      %2581 = vrot.lane.b32.xlu0 %v1765, 105
      %v2582 = vpop.permute.xlu0 %2581
      %2583 = vrot.lane.b32.xlu0 %v1766, 105
      %v2584 = vpop.permute.xlu0 %2583
      %2585 = vrot.lane.b32.xlu0 %v1767, 105
      %v2586 = vpop.permute.xlu0 %2585
      %v2587 = vsel %vm1053, %v2580, %v2582
      %v2588 = vsel %vm1053, %v2582, %v2584
      %v2589 = vsel %vm1053, %v2584, %v2586
      %v2595 = vsel %vm273, %v2578, 0
      %2597 = vmatprep.subr.mxu0 %v2588
      %2598 = vmatpush1.msra.mxu0 %v2587
      %2599 = vmatprep.subr.mxu0 0.0
      %2600 = vmatpush1.msra.mxu0 0.0
      %2601 = vmatprep.subr.mxu0 0.0
      %2602 = vmatpush1.msra.mxu0 0.0
      %2603 = vmatprep.subr.mxu0 0.0
      %2604 = vmatpush1.msra.mxu0 0.0
      %2605 = vmatprep.subr.mxu0 0.0
      %2606 = vmatpush1.msra.mxu0 0.0
      %2607 = vmatprep.subr.mxu0 0.0
      %2608 = vmatpush1.msra.mxu0 0.0
      %2609 = vmatprep.subr.mxu0 0.0
      %2610 = vmatpush1.msra.mxu0 0.0
      %2611 = vmatprep.subr.mxu0 0.0
      %2612 = vmatpush1.msra.mxu0 0.0
      %2613 = vmatprep.subr.mxu0 0.0
      %2614 = vmatpush1.msra.mxu0 0.0
      %2615 = vmatprep.subr.mxu0 0.0
      %2616 = vmatpush1.msra.mxu0 0.0
      %2617 = vmatprep.subr.mxu0 0.0
      %2618 = vmatpush1.msra.mxu0 0.0
      %2619 = vmatprep.subr.mxu0 0.0
      %2620 = vmatpush1.msra.mxu0 0.0
      %2621 = vmatprep.subr.mxu0 0.0
      %2622 = vmatpush1.msra.mxu0 0.0
      %2623 = vmatprep.subr.mxu0 0.0
      %2624 = vmatpush1.msra.mxu0 0.0
      %2625 = vmatprep.subr.mxu0 0.0
      %2626 = vmatpush1.msra.mxu0 0.0
      %2627 = vmatprep.subr.mxu0 0.0
      %2628 = vmatpush1.msra.mxu0 0.0
      %2629 = vmatprep.subr.mxu0 0.0
      %2630 = vmatpush1.msra.mxu0 0.0
      %2631 = vmatprep.subr.mxu0 0.0
      %2632 = vmatpush1.msra.mxu0 0.0
      %2633 = vmatprep.subr.mxu0 0.0
      %2634 = vmatpush1.msra.mxu0 0.0
      %2635 = vmatprep.subr.mxu0 0.0
      %2636 = vmatpush1.msra.mxu0 0.0
      %2637 = vmatprep.subr.mxu0 0.0
      %2638 = vmatpush1.msra.mxu0 0.0
      %2639 = vmatprep.subr.mxu0 0.0
      %2640 = vmatpush1.msra.mxu0 0.0
      %2641 = vmatprep.subr.mxu0 0.0
      %2642 = vmatpush1.msra.mxu0 0.0
      %2643 = vmatprep.subr.mxu0 0.0
      %2644 = vmatpush1.msra.mxu0 0.0
      %2645 = vmatprep.subr.mxu0 0.0
      %2646 = vmatpush1.msra.mxu0 0.0
      %2647 = vmatprep.subr.mxu0 0.0
      %2648 = vmatpush1.msra.mxu0 0.0
      %2649 = vmatprep.subr.mxu0 0.0
      %2650 = vmatpush1.msra.mxu0 0.0
      %2651 = vmatprep.subr.mxu0 0.0
      %2652 = vmatpush1.msra.mxu0 0.0
      %2653 = vmatprep.subr.mxu0 0.0
      %2654 = vmatpush1.msra.mxu0 0.0
      %2655 = vmatprep.subr.mxu0 0.0
      %2656 = vmatpush1.msra.mxu0 0.0
      %2657 = vmatprep.subr.mxu0 0.0
      %2658 = vmatpush1.msra.mxu0 0.0
      %2659 = vmatprep.subr.mxu0 0.0
      %2660 = vmatpush1.msra.mxu0 0.0
      %2661 = vmatprep.mubr.f32.mxu0 0.0
      %2662 = vmatmul.mubr.f32.gmra.mrb[0].mxu0 %v2595
      %v2663 = vpop.f32.mrb[0].mxu0
      %v2664 = vadd.f32 0.0, %v2663
      %v2665 = vpop.f32.mrb[0].mxu0
      %v2666 = vadd.f32 0.0, %v2665
      %2667 = vdwg.mxu0
      %2668 = vmatprep.subr.mxu0 %v2586
      %2669 = vmatpush1.msra.mxu0 %v2589
      %2670 = vmatprep.subr.mxu0 0.0
      %2671 = vmatpush1.msra.mxu0 0.0
      %2672 = vmatprep.subr.mxu0 0.0
      %2673 = vmatpush1.msra.mxu0 0.0
      %2674 = vmatprep.subr.mxu0 0.0
      %2675 = vmatpush1.msra.mxu0 0.0
      %2676 = vmatprep.subr.mxu0 0.0
      %2677 = vmatpush1.msra.mxu0 0.0
      %2678 = vmatprep.subr.mxu0 0.0
      %2679 = vmatpush1.msra.mxu0 0.0
      %2680 = vmatprep.subr.mxu0 0.0
      %2681 = vmatpush1.msra.mxu0 0.0
      %2682 = vmatprep.subr.mxu0 0.0
      %2683 = vmatpush1.msra.mxu0 0.0
      %2684 = vmatprep.subr.mxu0 0.0
      %2685 = vmatpush1.msra.mxu0 0.0
      %2686 = vmatprep.subr.mxu0 0.0
      %2687 = vmatpush1.msra.mxu0 0.0
      %2688 = vmatprep.subr.mxu0 0.0
      %2689 = vmatpush1.msra.mxu0 0.0
      %2690 = vmatprep.subr.mxu0 0.0
      %2691 = vmatpush1.msra.mxu0 0.0
      %2692 = vmatprep.subr.mxu0 0.0
      %2693 = vmatpush1.msra.mxu0 0.0
      %2694 = vmatprep.subr.mxu0 0.0
      %2695 = vmatpush1.msra.mxu0 0.0
      %2696 = vmatprep.subr.mxu0 0.0
      %2697 = vmatpush1.msra.mxu0 0.0
      %2698 = vmatprep.subr.mxu0 0.0
      %2699 = vmatpush1.msra.mxu0 0.0
      %2700 = vmatprep.subr.mxu0 0.0
      %2701 = vmatpush1.msra.mxu0 0.0
      %2702 = vmatprep.subr.mxu0 0.0
      %2703 = vmatpush1.msra.mxu0 0.0
      %2704 = vmatprep.subr.mxu0 0.0
      %2705 = vmatpush1.msra.mxu0 0.0
      %2706 = vmatprep.subr.mxu0 0.0
      %2707 = vmatpush1.msra.mxu0 0.0
      %2708 = vmatprep.subr.mxu0 0.0
      %2709 = vmatpush1.msra.mxu0 0.0
      %2710 = vmatprep.subr.mxu0 0.0
      %2711 = vmatpush1.msra.mxu0 0.0
      %2712 = vmatprep.subr.mxu0 0.0
      %2713 = vmatpush1.msra.mxu0 0.0
      %2714 = vmatprep.subr.mxu0 0.0
      %2715 = vmatpush1.msra.mxu0 0.0
      %2716 = vmatprep.subr.mxu0 0.0
      %2717 = vmatpush1.msra.mxu0 0.0
      %2718 = vmatprep.subr.mxu0 0.0
      %2719 = vmatpush1.msra.mxu0 0.0
      %2720 = vmatprep.subr.mxu0 0.0
      %2721 = vmatpush1.msra.mxu0 0.0
      %2722 = vmatprep.subr.mxu0 0.0
      %2723 = vmatpush1.msra.mxu0 0.0
      %2724 = vmatprep.subr.mxu0 0.0
      %2725 = vmatpush1.msra.mxu0 0.0
      %2726 = vmatprep.subr.mxu0 0.0
      %2727 = vmatpush1.msra.mxu0 0.0
      %2728 = vmatprep.subr.mxu0 0.0
      %2729 = vmatpush1.msra.mxu0 0.0
      %2730 = vmatprep.subr.mxu0 0.0
      %2731 = vmatpush1.msra.mxu0 0.0
      %2732 = vmatprep.mubr.f32.mxu0 0.0
      %2733 = vmatmul.mubr.f32.gmra.mrb[0].mxu0 %v2595
      %v2734 = vpop.f32.mrb[0].mxu0
      %v2735 = vadd.f32 0.0, %v2734
      %v2736 = vpop.f32.mrb[0].mxu0
      %v2737 = vadd.f32 0.0, %v2736
      %2738 = vdwg.mxu0
      %v2739 = vadd.f32 %v2573, %v2664
      %v2740 = vadd.f32 %v2574, %v2666
      %v2741 = vadd.f32 %v2575, %v2735
      %v2742 = vadd.f32 %v2576, %v2737
      %s2743 = scalar_lea.vmem %s3, 24
      %v2744 = vld [vmem:[%s2743] sm:$0xf]
      %2745 = vrot.lane.b32.xlu0 %v1764, 86
      %v2746 = vpop.permute.xlu0 %2745
      %2747 = vrot.lane.b32.xlu0 %v1765, 86
      %v2748 = vpop.permute.xlu0 %2747
      %2749 = vrot.lane.b32.xlu0 %v1766, 86
      %v2750 = vpop.permute.xlu0 %2749
      %2751 = vrot.lane.b32.xlu0 %v1767, 86
      %v2752 = vpop.permute.xlu0 %2751
      %v2753 = vsel %vm1224, %v2746, %v2748
      %v2754 = vsel %vm1224, %v2748, %v2750
      %v2755 = vsel %vm1224, %v2750, %v2752
      %v2761 = vsel %vm273, %v2744, 0
      %2763 = vmatprep.subr.mxu0 %v2754
      %2764 = vmatpush1.msra.mxu0 %v2753
      %2765 = vmatprep.subr.mxu0 0.0
      %2766 = vmatpush1.msra.mxu0 0.0
      %2767 = vmatprep.subr.mxu0 0.0
      %2768 = vmatpush1.msra.mxu0 0.0
      %2769 = vmatprep.subr.mxu0 0.0
      %2770 = vmatpush1.msra.mxu0 0.0
      %2771 = vmatprep.subr.mxu0 0.0
      %2772 = vmatpush1.msra.mxu0 0.0
      %2773 = vmatprep.subr.mxu0 0.0
      %2774 = vmatpush1.msra.mxu0 0.0
      %2775 = vmatprep.subr.mxu0 0.0
      %2776 = vmatpush1.msra.mxu0 0.0
      %2777 = vmatprep.subr.mxu0 0.0
      %2778 = vmatpush1.msra.mxu0 0.0
      %2779 = vmatprep.subr.mxu0 0.0
      %2780 = vmatpush1.msra.mxu0 0.0
      %2781 = vmatprep.subr.mxu0 0.0
      %2782 = vmatpush1.msra.mxu0 0.0
      %2783 = vmatprep.subr.mxu0 0.0
      %2784 = vmatpush1.msra.mxu0 0.0
      %2785 = vmatprep.subr.mxu0 0.0
      %2786 = vmatpush1.msra.mxu0 0.0
      %2787 = vmatprep.subr.mxu0 0.0
      %2788 = vmatpush1.msra.mxu0 0.0
      %2789 = vmatprep.subr.mxu0 0.0
      %2790 = vmatpush1.msra.mxu0 0.0
      %2791 = vmatprep.subr.mxu0 0.0
      %2792 = vmatpush1.msra.mxu0 0.0
      %2793 = vmatprep.subr.mxu0 0.0
      %2794 = vmatpush1.msra.mxu0 0.0
      %2795 = vmatprep.subr.mxu0 0.0
      %2796 = vmatpush1.msra.mxu0 0.0
      %2797 = vmatprep.subr.mxu0 0.0
      %2798 = vmatpush1.msra.mxu0 0.0
      %2799 = vmatprep.subr.mxu0 0.0
      %2800 = vmatpush1.msra.mxu0 0.0
      %2801 = vmatprep.subr.mxu0 0.0
      %2802 = vmatpush1.msra.mxu0 0.0
      %2803 = vmatprep.subr.mxu0 0.0
      %2804 = vmatpush1.msra.mxu0 0.0
      %2805 = vmatprep.subr.mxu0 0.0
      %2806 = vmatpush1.msra.mxu0 0.0
      %2807 = vmatprep.subr.mxu0 0.0
      %2808 = vmatpush1.msra.mxu0 0.0
      %2809 = vmatprep.subr.mxu0 0.0
      %2810 = vmatpush1.msra.mxu0 0.0
      %2811 = vmatprep.subr.mxu0 0.0
      %2812 = vmatpush1.msra.mxu0 0.0
      %2813 = vmatprep.subr.mxu0 0.0
      %2814 = vmatpush1.msra.mxu0 0.0
      %2815 = vmatprep.subr.mxu0 0.0
      %2816 = vmatpush1.msra.mxu0 0.0
      %2817 = vmatprep.subr.mxu0 0.0
      %2818 = vmatpush1.msra.mxu0 0.0
      %2819 = vmatprep.subr.mxu0 0.0
      %2820 = vmatpush1.msra.mxu0 0.0
      %2821 = vmatprep.subr.mxu0 0.0
      %2822 = vmatpush1.msra.mxu0 0.0
      %2823 = vmatprep.subr.mxu0 0.0
      %2824 = vmatpush1.msra.mxu0 0.0
      %2825 = vmatprep.subr.mxu0 0.0
      %2826 = vmatpush1.msra.mxu0 0.0
      %2827 = vmatprep.mubr.f32.mxu0 0.0
      %2828 = vmatmul.mubr.f32.gmra.mrb[0].mxu0 %v2761
      %v2829 = vpop.f32.mrb[0].mxu0
      %v2830 = vadd.f32 0.0, %v2829
      %v2831 = vpop.f32.mrb[0].mxu0
      %v2832 = vadd.f32 0.0, %v2831
      %2833 = vdwg.mxu0
      %2834 = vmatprep.subr.mxu0 %v2752
      %2835 = vmatpush1.msra.mxu0 %v2755
      %2836 = vmatprep.subr.mxu0 0.0
      %2837 = vmatpush1.msra.mxu0 0.0
      %2838 = vmatprep.subr.mxu0 0.0
      %2839 = vmatpush1.msra.mxu0 0.0
      %2840 = vmatprep.subr.mxu0 0.0
      %2841 = vmatpush1.msra.mxu0 0.0
      %2842 = vmatprep.subr.mxu0 0.0
      %2843 = vmatpush1.msra.mxu0 0.0
      %2844 = vmatprep.subr.mxu0 0.0
      %2845 = vmatpush1.msra.mxu0 0.0
      %2846 = vmatprep.subr.mxu0 0.0
      %2847 = vmatpush1.msra.mxu0 0.0
      %2848 = vmatprep.subr.mxu0 0.0
      %2849 = vmatpush1.msra.mxu0 0.0
      %2850 = vmatprep.subr.mxu0 0.0
      %2851 = vmatpush1.msra.mxu0 0.0
      %2852 = vmatprep.subr.mxu0 0.0
      %2853 = vmatpush1.msra.mxu0 0.0
      %2854 = vmatprep.subr.mxu0 0.0
      %2855 = vmatpush1.msra.mxu0 0.0
      %2856 = vmatprep.subr.mxu0 0.0
      %2857 = vmatpush1.msra.mxu0 0.0
      %2858 = vmatprep.subr.mxu0 0.0
      %2859 = vmatpush1.msra.mxu0 0.0
      %2860 = vmatprep.subr.mxu0 0.0
      %2861 = vmatpush1.msra.mxu0 0.0
      %2862 = vmatprep.subr.mxu0 0.0
      %2863 = vmatpush1.msra.mxu0 0.0
      %2864 = vmatprep.subr.mxu0 0.0
      %2865 = vmatpush1.msra.mxu0 0.0
      %2866 = vmatprep.subr.mxu0 0.0
      %2867 = vmatpush1.msra.mxu0 0.0
      %2868 = vmatprep.subr.mxu0 0.0
      %2869 = vmatpush1.msra.mxu0 0.0
      %2870 = vmatprep.subr.mxu0 0.0
      %2871 = vmatpush1.msra.mxu0 0.0
      %2872 = vmatprep.subr.mxu0 0.0
      %2873 = vmatpush1.msra.mxu0 0.0
      %2874 = vmatprep.subr.mxu0 0.0
      %2875 = vmatpush1.msra.mxu0 0.0
      %2876 = vmatprep.subr.mxu0 0.0
      %2877 = vmatpush1.msra.mxu0 0.0
      %2878 = vmatprep.subr.mxu0 0.0
      %2879 = vmatpush1.msra.mxu0 0.0
      %2880 = vmatprep.subr.mxu0 0.0
      %2881 = vmatpush1.msra.mxu0 0.0
      %2882 = vmatprep.subr.mxu0 0.0
      %2883 = vmatpush1.msra.mxu0 0.0
      %2884 = vmatprep.subr.mxu0 0.0
      %2885 = vmatpush1.msra.mxu0 0.0
      %2886 = vmatprep.subr.mxu0 0.0
      %2887 = vmatpush1.msra.mxu0 0.0
      %2888 = vmatprep.subr.mxu0 0.0
      %2889 = vmatpush1.msra.mxu0 0.0
      %2890 = vmatprep.subr.mxu0 0.0
      %2891 = vmatpush1.msra.mxu0 0.0
      %2892 = vmatprep.subr.mxu0 0.0
      %2893 = vmatpush1.msra.mxu0 0.0
      %2894 = vmatprep.subr.mxu0 0.0
      %2895 = vmatpush1.msra.mxu0 0.0
      %2896 = vmatprep.subr.mxu0 0.0
      %2897 = vmatpush1.msra.mxu0 0.0
      %2898 = vmatprep.mubr.f32.mxu0 0.0
      %2899 = vmatmul.mubr.f32.gmra.mrb[0].mxu0 %v2761
      %v2900 = vpop.f32.mrb[0].mxu0
      %v2901 = vadd.f32 0.0, %v2900
      %v2902 = vpop.f32.mrb[0].mxu0
      %v2903 = vadd.f32 0.0, %v2902
      %2904 = vdwg.mxu0
      %v2905 = vadd.f32 %v2739, %v2830
      %v2906 = vadd.f32 %v2740, %v2832
      %v2907 = vadd.f32 %v2741, %v2901
      %v2908 = vadd.f32 %v2742, %v2903
      %s2909 = scalar_lea.vmem %s3, 28
      %v2910 = vld [vmem:[%s2909] sm:$0xf]
      %2911 = vrot.lane.b32.xlu0 %v1764, 85
      %v2912 = vpop.permute.xlu0 %2911
      %2913 = vrot.lane.b32.xlu0 %v1765, 85
      %v2914 = vpop.permute.xlu0 %2913
      %2915 = vrot.lane.b32.xlu0 %v1766, 85
      %v2916 = vpop.permute.xlu0 %2915
      %2917 = vrot.lane.b32.xlu0 %v1767, 85
      %v2918 = vpop.permute.xlu0 %2917
      %v2919 = vsel %vm1388, %v2912, %v2914
      %v2920 = vsel %vm1388, %v2914, %v2916
      %v2921 = vsel %vm1388, %v2916, %v2918
      %v2927 = vsel %vm273, %v2910, 0
      %2929 = vmatprep.subr.mxu0 %v2920
      %2930 = vmatpush1.msra.mxu0 %v2919
      %2931 = vmatprep.subr.mxu0 0.0
      %2932 = vmatpush1.msra.mxu0 0.0
      %2933 = vmatprep.subr.mxu0 0.0
      %2934 = vmatpush1.msra.mxu0 0.0
      %2935 = vmatprep.subr.mxu0 0.0
      %2936 = vmatpush1.msra.mxu0 0.0
      %2937 = vmatprep.subr.mxu0 0.0
      %2938 = vmatpush1.msra.mxu0 0.0
      %2939 = vmatprep.subr.mxu0 0.0
      %2940 = vmatpush1.msra.mxu0 0.0
      %2941 = vmatprep.subr.mxu0 0.0
      %2942 = vmatpush1.msra.mxu0 0.0
      %2943 = vmatprep.subr.mxu0 0.0
      %2944 = vmatpush1.msra.mxu0 0.0
      %2945 = vmatprep.subr.mxu0 0.0
      %2946 = vmatpush1.msra.mxu0 0.0
      %2947 = vmatprep.subr.mxu0 0.0
      %2948 = vmatpush1.msra.mxu0 0.0
      %2949 = vmatprep.subr.mxu0 0.0
      %2950 = vmatpush1.msra.mxu0 0.0
      %2951 = vmatprep.subr.mxu0 0.0
      %2952 = vmatpush1.msra.mxu0 0.0
      %2953 = vmatprep.subr.mxu0 0.0
      %2954 = vmatpush1.msra.mxu0 0.0
      %2955 = vmatprep.subr.mxu0 0.0
      %2956 = vmatpush1.msra.mxu0 0.0
      %2957 = vmatprep.subr.mxu0 0.0
      %2958 = vmatpush1.msra.mxu0 0.0
      %2959 = vmatprep.subr.mxu0 0.0
      %2960 = vmatpush1.msra.mxu0 0.0
      %2961 = vmatprep.subr.mxu0 0.0
      %2962 = vmatpush1.msra.mxu0 0.0
      %2963 = vmatprep.subr.mxu0 0.0
      %2964 = vmatpush1.msra.mxu0 0.0
      %2965 = vmatprep.subr.mxu0 0.0
      %2966 = vmatpush1.msra.mxu0 0.0
      %2967 = vmatprep.subr.mxu0 0.0
      %2968 = vmatpush1.msra.mxu0 0.0
      %2969 = vmatprep.subr.mxu0 0.0
      %2970 = vmatpush1.msra.mxu0 0.0
      %2971 = vmatprep.subr.mxu0 0.0
      %2972 = vmatpush1.msra.mxu0 0.0
      %2973 = vmatprep.subr.mxu0 0.0
      %2974 = vmatpush1.msra.mxu0 0.0
      %2975 = vmatprep.subr.mxu0 0.0
      %2976 = vmatpush1.msra.mxu0 0.0
      %2977 = vmatprep.subr.mxu0 0.0
      %2978 = vmatpush1.msra.mxu0 0.0
      %2979 = vmatprep.subr.mxu0 0.0
      %2980 = vmatpush1.msra.mxu0 0.0
      %2981 = vmatprep.subr.mxu0 0.0
      %2982 = vmatpush1.msra.mxu0 0.0
      %2983 = vmatprep.subr.mxu0 0.0
      %2984 = vmatpush1.msra.mxu0 0.0
      %2985 = vmatprep.subr.mxu0 0.0
      %2986 = vmatpush1.msra.mxu0 0.0
      %2987 = vmatprep.subr.mxu0 0.0
      %2988 = vmatpush1.msra.mxu0 0.0
      %2989 = vmatprep.subr.mxu0 0.0
      %2990 = vmatpush1.msra.mxu0 0.0
      %2991 = vmatprep.subr.mxu0 0.0
      %2992 = vmatpush1.msra.mxu0 0.0
      %2993 = vmatprep.mubr.f32.mxu0 0.0
      %2994 = vmatmul.mubr.f32.gmra.mrb[0].mxu0 %v2927
      %v2995 = vpop.f32.mrb[0].mxu0
      %v2996 = vadd.f32 0.0, %v2995
      %v2997 = vpop.f32.mrb[0].mxu0
      %v2998 = vadd.f32 0.0, %v2997
      %2999 = vdwg.mxu0
      %3000 = vmatprep.subr.mxu0 %v2918
      %3001 = vmatpush1.msra.mxu0 %v2921
      %3002 = vmatprep.subr.mxu0 0.0
      %3003 = vmatpush1.msra.mxu0 0.0
      %3004 = vmatprep.subr.mxu0 0.0
      %3005 = vmatpush1.msra.mxu0 0.0
      %3006 = vmatprep.subr.mxu0 0.0
      %3007 = vmatpush1.msra.mxu0 0.0
      %3008 = vmatprep.subr.mxu0 0.0
      %3009 = vmatpush1.msra.mxu0 0.0
      %3010 = vmatprep.subr.mxu0 0.0
      %3011 = vmatpush1.msra.mxu0 0.0
      %3012 = vmatprep.subr.mxu0 0.0
      %3013 = vmatpush1.msra.mxu0 0.0
      %3014 = vmatprep.subr.mxu0 0.0
      %3015 = vmatpush1.msra.mxu0 0.0
      %3016 = vmatprep.subr.mxu0 0.0
      %3017 = vmatpush1.msra.mxu0 0.0
      %3018 = vmatprep.subr.mxu0 0.0
      %3019 = vmatpush1.msra.mxu0 0.0
      %3020 = vmatprep.subr.mxu0 0.0
      %3021 = vmatpush1.msra.mxu0 0.0
      %3022 = vmatprep.subr.mxu0 0.0
      %3023 = vmatpush1.msra.mxu0 0.0
      %3024 = vmatprep.subr.mxu0 0.0
      %3025 = vmatpush1.msra.mxu0 0.0
      %3026 = vmatprep.subr.mxu0 0.0
      %3027 = vmatpush1.msra.mxu0 0.0
      %3028 = vmatprep.subr.mxu0 0.0
      %3029 = vmatpush1.msra.mxu0 0.0
      %3030 = vmatprep.subr.mxu0 0.0
      %3031 = vmatpush1.msra.mxu0 0.0
      %3032 = vmatprep.subr.mxu0 0.0
      %3033 = vmatpush1.msra.mxu0 0.0
      %3034 = vmatprep.subr.mxu0 0.0
      %3035 = vmatpush1.msra.mxu0 0.0
      %3036 = vmatprep.subr.mxu0 0.0
      %3037 = vmatpush1.msra.mxu0 0.0
      %3038 = vmatprep.subr.mxu0 0.0
      %3039 = vmatpush1.msra.mxu0 0.0
      %3040 = vmatprep.subr.mxu0 0.0
      %3041 = vmatpush1.msra.mxu0 0.0
      %3042 = vmatprep.subr.mxu0 0.0
      %3043 = vmatpush1.msra.mxu0 0.0
      %3044 = vmatprep.subr.mxu0 0.0
      %3045 = vmatpush1.msra.mxu0 0.0
      %3046 = vmatprep.subr.mxu0 0.0
      %3047 = vmatpush1.msra.mxu0 0.0
      %3048 = vmatprep.subr.mxu0 0.0
      %3049 = vmatpush1.msra.mxu0 0.0
      %3050 = vmatprep.subr.mxu0 0.0
      %3051 = vmatpush1.msra.mxu0 0.0
      %3052 = vmatprep.subr.mxu0 0.0
      %3053 = vmatpush1.msra.mxu0 0.0
      %3054 = vmatprep.subr.mxu0 0.0
      %3055 = vmatpush1.msra.mxu0 0.0
      %3056 = vmatprep.subr.mxu0 0.0
      %3057 = vmatpush1.msra.mxu0 0.0
      %3058 = vmatprep.subr.mxu0 0.0
      %3059 = vmatpush1.msra.mxu0 0.0
      %3060 = vmatprep.subr.mxu0 0.0
      %3061 = vmatpush1.msra.mxu0 0.0
      %3062 = vmatprep.subr.mxu0 0.0
      %3063 = vmatpush1.msra.mxu0 0.0
      %3064 = vmatprep.mubr.f32.mxu0 0.0
      %3065 = vmatmul.mubr.f32.gmra.mrb[0].mxu0 %v2927
      %v3066 = vpop.f32.mrb[0].mxu0
      %v3067 = vadd.f32 0.0, %v3066
      %v3068 = vpop.f32.mrb[0].mxu0
      %v3069 = vadd.f32 0.0, %v3068
      %3070 = vdwg.mxu0
      %v3071 = vadd.f32 %v2905, %v2996
      %v3072 = vadd.f32 %v2906, %v2998
      %v3073 = vadd.f32 %v2907, %v3067
      %v3074 = vadd.f32 %v2908, %v3069
      %s3075 = scalar_lea.vmem %s3, 32
      %v3076 = vld [vmem:[%s3075] sm:$0xf]
      %3077 = vrot.lane.b32.xlu0 %v1764, 84
      %v3078 = vpop.permute.xlu0 %3077
      %3079 = vrot.lane.b32.xlu0 %v1765, 84
      %v3080 = vpop.permute.xlu0 %3079
      %3081 = vrot.lane.b32.xlu0 %v1766, 84
      %v3082 = vpop.permute.xlu0 %3081
      %3083 = vrot.lane.b32.xlu0 %v1767, 84
      %v3084 = vpop.permute.xlu0 %3083
      %v3085 = vsel %vm1552, %v3078, %v3080
      %v3086 = vsel %vm1552, %v3080, %v3082
      %v3087 = vsel %vm1552, %v3082, %v3084
      %v3093 = vsel %vm273, %v3076, 0
      %3095 = vmatprep.subr.mxu0 %v3086
      %3096 = vmatpush1.msra.mxu0 %v3085
      %3097 = vmatprep.subr.mxu0 0.0
      %3098 = vmatpush1.msra.mxu0 0.0
      %3099 = vmatprep.subr.mxu0 0.0
      %3100 = vmatpush1.msra.mxu0 0.0
      %3101 = vmatprep.subr.mxu0 0.0
      %3102 = vmatpush1.msra.mxu0 0.0
      %3103 = vmatprep.subr.mxu0 0.0
      %3104 = vmatpush1.msra.mxu0 0.0
      %3105 = vmatprep.subr.mxu0 0.0
      %3106 = vmatpush1.msra.mxu0 0.0
      %3107 = vmatprep.subr.mxu0 0.0
      %3108 = vmatpush1.msra.mxu0 0.0
      %3109 = vmatprep.subr.mxu0 0.0
      %3110 = vmatpush1.msra.mxu0 0.0
      %3111 = vmatprep.subr.mxu0 0.0
      %3112 = vmatpush1.msra.mxu0 0.0
      %3113 = vmatprep.subr.mxu0 0.0
      %3114 = vmatpush1.msra.mxu0 0.0
      %3115 = vmatprep.subr.mxu0 0.0
      %3116 = vmatpush1.msra.mxu0 0.0
      %3117 = vmatprep.subr.mxu0 0.0
      %3118 = vmatpush1.msra.mxu0 0.0
      %3119 = vmatprep.subr.mxu0 0.0
      %3120 = vmatpush1.msra.mxu0 0.0
      %3121 = vmatprep.subr.mxu0 0.0
      %3122 = vmatpush1.msra.mxu0 0.0
      %3123 = vmatprep.subr.mxu0 0.0
      %3124 = vmatpush1.msra.mxu0 0.0
      %3125 = vmatprep.subr.mxu0 0.0
      %3126 = vmatpush1.msra.mxu0 0.0
      %3127 = vmatprep.subr.mxu0 0.0
      %3128 = vmatpush1.msra.mxu0 0.0
      %3129 = vmatprep.subr.mxu0 0.0
      %3130 = vmatpush1.msra.mxu0 0.0
      %3131 = vmatprep.subr.mxu0 0.0
      %3132 = vmatpush1.msra.mxu0 0.0
      %3133 = vmatprep.subr.mxu0 0.0
      %3134 = vmatpush1.msra.mxu0 0.0
      %3135 = vmatprep.subr.mxu0 0.0
      %3136 = vmatpush1.msra.mxu0 0.0
      %3137 = vmatprep.subr.mxu0 0.0
      %3138 = vmatpush1.msra.mxu0 0.0
      %3139 = vmatprep.subr.mxu0 0.0
      %3140 = vmatpush1.msra.mxu0 0.0
      %3141 = vmatprep.subr.mxu0 0.0
      %3142 = vmatpush1.msra.mxu0 0.0
      %3143 = vmatprep.subr.mxu0 0.0
      %3144 = vmatpush1.msra.mxu0 0.0
      %3145 = vmatprep.subr.mxu0 0.0
      %3146 = vmatpush1.msra.mxu0 0.0
      %3147 = vmatprep.subr.mxu0 0.0
      %3148 = vmatpush1.msra.mxu0 0.0
      %3149 = vmatprep.subr.mxu0 0.0
      %3150 = vmatpush1.msra.mxu0 0.0
      %3151 = vmatprep.subr.mxu0 0.0
      %3152 = vmatpush1.msra.mxu0 0.0
      %3153 = vmatprep.subr.mxu0 0.0
      %3154 = vmatpush1.msra.mxu0 0.0
      %3155 = vmatprep.subr.mxu0 0.0
      %3156 = vmatpush1.msra.mxu0 0.0
      %3157 = vmatprep.subr.mxu0 0.0
      %3158 = vmatpush1.msra.mxu0 0.0
      %3159 = vmatprep.mubr.f32.mxu0 0.0
      %3160 = vmatmul.mubr.f32.gmra.mrb[0].mxu0 %v3093
      %v3161 = vpop.f32.mrb[0].mxu0
      %v3162 = vadd.f32 0.0, %v3161
      %v3163 = vpop.f32.mrb[0].mxu0
      %v3164 = vadd.f32 0.0, %v3163
      %3165 = vdwg.mxu0
      %3166 = vmatprep.subr.mxu0 %v3084
      %3167 = vmatpush1.msra.mxu0 %v3087
      %3168 = vmatprep.subr.mxu0 0.0
      %3169 = vmatpush1.msra.mxu0 0.0
      %3170 = vmatprep.subr.mxu0 0.0
      %3171 = vmatpush1.msra.mxu0 0.0
      %3172 = vmatprep.subr.mxu0 0.0
      %3173 = vmatpush1.msra.mxu0 0.0
      %3174 = vmatprep.subr.mxu0 0.0
      %3175 = vmatpush1.msra.mxu0 0.0
      %3176 = vmatprep.subr.mxu0 0.0
      %3177 = vmatpush1.msra.mxu0 0.0
      %3178 = vmatprep.subr.mxu0 0.0
      %3179 = vmatpush1.msra.mxu0 0.0
      %3180 = vmatprep.subr.mxu0 0.0
      %3181 = vmatpush1.msra.mxu0 0.0
      %3182 = vmatprep.subr.mxu0 0.0
      %3183 = vmatpush1.msra.mxu0 0.0
      %3184 = vmatprep.subr.mxu0 0.0
      %3185 = vmatpush1.msra.mxu0 0.0
      %3186 = vmatprep.subr.mxu0 0.0
      %3187 = vmatpush1.msra.mxu0 0.0
      %3188 = vmatprep.subr.mxu0 0.0
      %3189 = vmatpush1.msra.mxu0 0.0
      %3190 = vmatprep.subr.mxu0 0.0
      %3191 = vmatpush1.msra.mxu0 0.0
      %3192 = vmatprep.subr.mxu0 0.0
      %3193 = vmatpush1.msra.mxu0 0.0
      %3194 = vmatprep.subr.mxu0 0.0
      %3195 = vmatpush1.msra.mxu0 0.0
      %3196 = vmatprep.subr.mxu0 0.0
      %3197 = vmatpush1.msra.mxu0 0.0
      %3198 = vmatprep.subr.mxu0 0.0
      %3199 = vmatpush1.msra.mxu0 0.0
      %3200 = vmatprep.subr.mxu0 0.0
      %3201 = vmatpush1.msra.mxu0 0.0
      %3202 = vmatprep.subr.mxu0 0.0
      %3203 = vmatpush1.msra.mxu0 0.0
      %3204 = vmatprep.subr.mxu0 0.0
      %3205 = vmatpush1.msra.mxu0 0.0
      %3206 = vmatprep.subr.mxu0 0.0
      %3207 = vmatpush1.msra.mxu0 0.0
      %3208 = vmatprep.subr.mxu0 0.0
      %3209 = vmatpush1.msra.mxu0 0.0
      %3210 = vmatprep.subr.mxu0 0.0
      %3211 = vmatpush1.msra.mxu0 0.0
      %3212 = vmatprep.subr.mxu0 0.0
      %3213 = vmatpush1.msra.mxu0 0.0
      %3214 = vmatprep.subr.mxu0 0.0
      %3215 = vmatpush1.msra.mxu0 0.0
      %3216 = vmatprep.subr.mxu0 0.0
      %3217 = vmatpush1.msra.mxu0 0.0
      %3218 = vmatprep.subr.mxu0 0.0
      %3219 = vmatpush1.msra.mxu0 0.0
      %3220 = vmatprep.subr.mxu0 0.0
      %3221 = vmatpush1.msra.mxu0 0.0
      %3222 = vmatprep.subr.mxu0 0.0
      %3223 = vmatpush1.msra.mxu0 0.0
      %3224 = vmatprep.subr.mxu0 0.0
      %3225 = vmatpush1.msra.mxu0 0.0
      %3226 = vmatprep.subr.mxu0 0.0
      %3227 = vmatpush1.msra.mxu0 0.0
      %3228 = vmatprep.subr.mxu0 0.0
      %3229 = vmatpush1.msra.mxu0 0.0
      %3230 = vmatprep.mubr.f32.mxu0 0.0
      %3231 = vmatmul.mubr.f32.gmra.mrb[0].mxu0 %v3093
      %v3232 = vpop.f32.mrb[0].mxu0
      %v3233 = vadd.f32 0.0, %v3232
      %v3234 = vpop.f32.mrb[0].mxu0
      %v3235 = vadd.f32 0.0, %v3234
      %3236 = vdwg.mxu0
      %v3237 = vadd.f32 %v3071, %v3162
      %v3238 = vadd.f32 %v3072, %v3164
      %v3239 = vadd.f32 %v3073, %v3233
      %v3240 = vadd.f32 %v3074, %v3235
      %v3241 = vld [vmem:[%s4] sm:$0xf]
      %3243 = vset.pattern.permute.xlu0 0
      %3244 = vperm.xlu0 %3243, %v3241
      %v3245 = vpop.permute.xlu0 %3244
      %v3247 = vadd.f32 %v3237, %v3245
      %v3248 = vadd.f32 %v3238, %v3245
      %v3249 = vadd.f32 %v3239, %v3245
      %v3250 = vadd.f32 %v3240, %v3245
      %v3251 = vmax.f32 %v3247, 0.0
      %v3252 = vmax.f32 %v3248, 0.0
      %v3253 = vmax.f32 %v3249, 0.0
      %v3254 = vmax.f32 %v3250, 0.0
      %v3259 = vcombine.low %v3251, %v3252
      %v3260 = vcombine.low %v3253, %v3254
      %3263 = vst [vmem:[%s251] sm:$0xff] %v3259
      %vm3264 = vcmask 1043456
      %vm3265 = vcmask 121860
      %vm3266 = vmor %vm3265, %vm3264
      %3267 = vst.msk [vmem:[%s251 + $0x8] sm:$0xff] %vm3266, %v3260
      %p3268 = scmp.lt.s32.totalorder %s17, 1
      %s3269 = scalar_select %p3268, %s17, 1
      %s3270 = smul.addr %s3269, 4
      %s3271 = smul.addr %s3270, 4
      %s3272 = scalar_lea.vmem %s6, %s3271
      // Predicated region
      $region45: #{_lambda_.1} parent=43 // pred_check
        %p3273 = pneg %p166
      $region46: #{_lambda_.1} parent=43 // pred_check_branch
        %3275 = sbr.rel (%p3273) target = $region48
      $region47: #{_lambda_.1} parent=43 // pred_region
        _
      $region48: #{_lambda_.1} parent=43 // pred_fallthru
        _
    $region44: #{_lambda_.1} parent=5 // pred_fallthru
      _
    %p3276 = scmp.le.s32.totalorder 2, %s12
    // Predicated region
    $region49: #{_lambda_.1} parent=5 // pred_check
      %p3277 = pneg %p3276
    $region50: #{_lambda_.1} parent=5 // pred_check_branch
      %3279 = sbr.rel (%p3277) target = $region52
    $region51: #{_lambda_.1} parent=5 // pred_region
      %s3280 = ssub.s32 %s12, 2
      // Predicated region
      $region53: #{_lambda_.1} parent=51 // pred_check
        %p3281 = pneg %p172
      $region54: #{_lambda_.1} parent=51 // pred_check_branch
        %3283 = sbr.rel (%p3281) target = $region56
      $region55: #{_lambda_.1} parent=51 // pred_region
        %p3284 = scmp.lt.s32.totalorder %s18, 1
        %s3285 = scalar_select %p3284, %s18, 1
        %s3286 = smul.addr %s3285, 4
        %s3287 = smul.addr %s3286, 4
        %s3288 = scalar_lea.vmem %s6, %s3287
      $region56: #{_lambda_.1} parent=51 // pred_fallthru
        _
    $region52: #{_lambda_.1} parent=5 // pred_fallthru
      _
  $region6: #{_lambda_.1} parent=0 // loop_footer
    %s16 = sadd.s32 1, %s12
  $region7: #{_lambda_.1} parent=0 // loop_footer_branch
    %11 = sbr.rel target = $region3
  $region8: #{_lambda_.1} parent=0 // loop_exit
    _

</llo_original>
